<compile_context>
chip_gen: v7x
topology: tpu7x:2x2x1
jax: 0.10.0
libtpu: 0.0.40
codegen_flags: <defaults>
</compile_context>

<pallas_src>
import functools

import numpy as np

import jax
import jax.numpy as jnp
from jax.experimental import pallas as pl
from jax.experimental.pallas import tpu as pltpu


def _tap_geometry(H, W):
    """Static geometry of the 9 taps of a 3x3 SAME conv on a flat (C, H*W) tile.

    For tap (ky, kx), the source pixel of output (y, x) is (y+dy, x+dx) with
    dy=ky-1, dx=kx-1, i.e. flat index p + dy*W + dx.  We therefore rotate the tile
    by -(dy*W + dx) (mod HW) and mask the positions whose source pixel is outside
    the image (the zero padding).
    """
    HW = H * W
    taps = []
    for ky in range(3):
        for kx in range(3):
            dy, dx = ky - 1, kx - 1
            taps.append((dy, dx, (-(dy * W + dx)) % HW))
    return taps


def _border_masks_np(H, W):
    """Precomputed 0/1 masks (9, 1, HW): 1 where the shifted source pixel is in-bounds."""
    HW = H * W
    r, c = np.divmod(np.arange(HW), W)
    masks = np.empty((9, 1, HW), dtype=np.float32)
    t = 0
    for ky in range(3):
        for kx in range(3):
            dy, dx = ky - 1, kx - 1
            valid = (r + dy >= 0) & (r + dy < H) & (c + dx >= 0) & (c + dx < W)
            masks[t, 0] = valid.astype(np.float32)
            t += 1
    return jnp.asarray(masks)


def _conv3x3_cm(x_cm, w_taps_ref, mask_ref, taps):
    """3x3 SAME conv, channel-major.

    x_cm       : (Cin, HW)  f32, lane-dense
    w_taps_ref : (9, Cout, Cin) ref, tap index t = ky*3 + kx
    mask_ref   : (9, 1, HW) ref, 0/1 border masks
    returns    : (Cout, HW) f32
    """
    acc = None
    for t, (dy, dx, shift) in enumerate(taps):
        if dy == 0 and dx == 0:
            xt = x_cm                                      # center tap: no roll, no mask
        else:
            xt = pltpu.roll(x_cm, shift, axis=1)           # cheap XLU lane rotation
            xt = xt * mask_ref[t]                          # zero the out-of-image pixels
        part = jnp.dot(w_taps_ref[t], xt, preferred_element_type=jnp.float32)
        acc = part if acc is None else acc + part
    return acc


def _group_norm_relu_cm(h, gamma, beta, *, groups, eps):
    """Two-pass GroupNorm + affine + ReLU on a channel-major (C, HW) tile.

    gamma/beta: (C, 1).  Channels within a group are contiguous (PyTorch semantics).
    """
    C, HW = h.shape
    cpg = C // groups
    inv_n = jnp.float32(1.0 / (HW * cpg))

    def group_reduce(stat):
        # stat: (C, 1) per-channel sums.  Sum each contiguous channel group along the
        # sublane axis and broadcast back per channel -- tiny work on a single column,
        # no lane-axis shuffles and no one-hot matmuls.
        pieces = []
        for g in range(groups):
            s = jnp.sum(stat[g * cpg:(g + 1) * cpg, :], axis=0, keepdims=True)
            pieces.append(jnp.broadcast_to(s, (cpg, 1)))
        return jnp.concatenate(pieces, axis=0)

    # Two-pass statistics (mean, then centered sum of squares) -- avoids the
    # E[x^2] - E[x]^2 cancellation.
    mean = group_reduce(jnp.sum(h, axis=1, keepdims=True)) * inv_n
    d = h - mean
    var = group_reduce(jnp.sum(d * d, axis=1, keepdims=True)) * inv_n
    y = d * jax.lax.rsqrt(var + jnp.float32(eps)) * gamma + beta
    return jnp.maximum(y, 0.0)


def _fused_conv_block_kernel(x_ref, mask_ref, w1_ref, b1_ref, g1_ref, bt1_ref,
                             w2_ref, b2_ref, g2_ref, bt2_ref,
                             o_ref, *, H, W, groups, eps):
    """One batch sample: [conv3x3 + bias + GN + ReLU] x 2, fully channel-major.

    x_ref    : (1, Cin, HW)      input tile (flat NCHW, lane-dense)
    mask_ref : (9, 1, HW)        per-tap border masks
    w1_ref   : (9, Cmid, Cin)    layer-1 per-tap weights
    b1/g1/bt1: (Cmid, 1)         layer-1 bias / GN scale / GN shift
    w2_ref   : (9, Cout, Cmid)   layer-2 per-tap weights
    b2/g2/bt2: (Cout, 1)         layer-2 bias / GN scale / GN shift
    o_ref    : (1, Cout, HW)     lane-dense output (already NCHW-ordered)
    """
    taps = _tap_geometry(H, W)

    x = x_ref[0]                                                    # (Cin, HW)

    # ----------------- layer 1: conv3x3(SAME) + bias + GN + ReLU -----------------
    h1 = _conv3x3_cm(x, w1_ref, mask_ref, taps) + b1_ref[...]       # (Cmid, HW)
    h1 = _group_norm_relu_cm(h1, g1_ref[...], bt1_ref[...], groups=groups, eps=eps)

    # ----------------- layer 2: conv3x3(SAME) + bias + GN + ReLU -----------------
    h2 = _conv3x3_cm(h1, w2_ref, mask_ref, taps) + b2_ref[...]      # (Cout, HW)
    h2 = _group_norm_relu_cm(h2, g2_ref[...], bt2_ref[...], groups=groups, eps=eps)

    o_ref[0] = h2.astype(o_ref.dtype)                               # unmasked lane-dense store


def conv_block(x_nchw, params, groups=8, eps=1e-5):
    """Equivalent of ConvBlock.forward. x_nchw: (N, Cin, H, W) -> (N, Cout, H, W)."""
    N, Cin, H, W = x_nchw.shape
    w1, w2 = params["w1"], params["w2"]          # HWIO: (3,3,Cin,Cmid), (3,3,Cmid,Cout)
    Cmid, Cout = w1.shape[-1], w2.shape[-1]
    HW = H * W
    assert Cmid % groups == 0 and Cout % groups == 0

    # Channel-major flat input: a free reshape of NCHW (no transpose, no extra HBM pass).
    x_flat = x_nchw.reshape(N, Cin, HW)

    # Per-tap weights, tap index t = ky*3 + kx, each (C_out_layer, C_in_layer).
    w1_taps = jnp.transpose(w1, (0, 1, 3, 2)).reshape(9, Cmid, Cin)
    w2_taps = jnp.transpose(w2, (0, 1, 3, 2)).reshape(9, Cout, Cmid)

    masks = _border_masks_np(H, W)               # (9, 1, HW) static 0/1 border masks

    b1 = params["b1"].reshape(Cmid, 1)
    g1 = params["g1"].reshape(Cmid, 1)
    bt1 = params["beta1"].reshape(Cmid, 1)
    b2 = params["b2"].reshape(Cout, 1)
    g2 = params["g2"].reshape(Cout, 1)
    bt2 = params["beta2"].reshape(Cout, 1)

    kernel = functools.partial(_fused_conv_block_kernel,
                               H=H, W=W, groups=groups, eps=eps)

    flops = 2 * N * HW * 9 * (Cin * Cmid + Cmid * Cout)
    bytes_accessed = 4 * (x_flat.size + masks.size + w1_taps.size + w2_taps.size
                          + 3 * (Cmid + Cout) + N * Cout * HW)

    out = pl.pallas_call(
        kernel,
        out_shape=jax.ShapeDtypeStruct((N, Cout, HW), jnp.float32),
        grid=(N,),
        in_specs=[
            pl.BlockSpec((1, Cin, HW), lambda n: (n, 0, 0)),
            pl.BlockSpec((9, 1, HW), lambda n: (0, 0, 0)),
            pl.BlockSpec((9, Cmid, Cin), lambda n: (0, 0, 0)),
            pl.BlockSpec((Cmid, 1), lambda n: (0, 0)),
            pl.BlockSpec((Cmid, 1), lambda n: (0, 0)),
            pl.BlockSpec((Cmid, 1), lambda n: (0, 0)),
            pl.BlockSpec((9, Cout, Cmid), lambda n: (0, 0, 0)),
            pl.BlockSpec((Cout, 1), lambda n: (0, 0)),
            pl.BlockSpec((Cout, 1), lambda n: (0, 0)),
            pl.BlockSpec((Cout, 1), lambda n: (0, 0)),
        ],
        out_specs=pl.BlockSpec((1, Cout, HW), lambda n: (n, 0, 0)),
        compiler_params=pltpu.CompilerParams(
            dimension_semantics=("parallel",)),   # N=2 -> both v7x TensorCores
        cost_estimate=pl.CostEstimate(
            flops=flops,
            transcendentals=N * (Cmid + Cout),    # rsqrt per channel per layer
            bytes_accessed=bytes_accessed),
    )(x_flat, masks, w1_taps, b1, g1, bt1, w2_taps, b2, g2, bt2)

    # TODO(synk): on single-TC v5e/v6e the batch could be folded into one grid step
    # ((Cout, N*HW) tiles) to double lane fill; kept per-sample here so v7x's two
    # TensorCores each take one sample.
    return out.reshape(N, Cout, H, W)             # already NCHW-ordered; no transpose


# ----------------------------- reference (pure JAX) -----------------------------
def _ref_conv_gn_relu(x_nhwc, w_hwio, bias, gamma, beta, groups, eps=1e-5):
    y = jax.lax.conv_general_dilated(
        x_nhwc, w_hwio, window_strides=(1, 1), padding="SAME",
        dimension_numbers=("NHWC", "HWIO", "NHWC"))
    y = y + bias[None, None, None, :]
    N, H, W, C = y.shape
    yg = y.reshape(N, H, W, groups, C // groups)
    mean = yg.mean(axis=(1, 2, 4), keepdims=True)
    var = yg.var(axis=(1, 2, 4), keepdims=True)
    yg = (yg - mean) / jnp.sqrt(var + eps)
    y = yg.reshape(N, H, W, C) * gamma[None, None, None, :] + beta[None, None, None, :]
    return jnp.maximum(y, 0.0)


def _ref_conv_block(x_nchw, params, groups=8):
    x = jnp.transpose(x_nchw, (0, 2, 3, 1))
    y = _ref_conv_gn_relu(x, params["w1"], params["b1"], params["g1"],
                          params["beta1"], groups)
    y = _ref_conv_gn_relu(y, params["w2"], params["b2"], params["g2"],
                          params["beta2"], groups)
    return jnp.transpose(y, (0, 3, 1, 2))


if __name__ == "__main__":
    # Small shapes consistent with the module: batch=2, in_channels=4,
    # out_channels=16 (divisible by groups=8), spatial=16x16.
    N, Cin, Cout, H, W, G = 2, 4, 16, 16, 16, 8

    key = jax.random.PRNGKey(0)
    k = jax.random.split(key, 7)
    x = jax.random.normal(k[0], (N, Cin, H, W), dtype=jnp.float32)

    params = {
        # Conv weights in HWIO; deterministic synthetic init (not a checkpoint).
        "w1": 0.1 * jax.random.normal(k[1], (3, 3, Cin, Cout), dtype=jnp.float32),
        "b1": 0.05 * jax.random.normal(k[2], (Cout,), dtype=jnp.float32),
        "g1": jnp.ones((Cout,), dtype=jnp.float32),      # GroupNorm weight default
        "beta1": jnp.zeros((Cout,), dtype=jnp.float32),  # GroupNorm bias default
        "w2": 0.1 * jax.random.normal(k[3], (3, 3, Cout, Cout), dtype=jnp.float32),
        "b2": 0.05 * jax.random.normal(k[4], (Cout,), dtype=jnp.float32),
        "g2": 1.0 + 0.1 * jax.random.normal(k[5], (Cout,), dtype=jnp.float32),
        "beta2": 0.1 * jax.random.normal(k[6], (Cout,), dtype=jnp.float32),
    }

    out = jax.block_until_ready(conv_block(x, params, groups=G))
    ref = jax.block_until_ready(_ref_conv_block(x, params, groups=G))

    assert out.shape == (N, Cout, H, W), out.shape
    assert jnp.allclose(out, ref, rtol=1e-3, atol=1e-3), (
        float(jnp.max(jnp.abs(out - ref))))
    print("KERNEL_OK")
</pallas_src>

<mosaic_0001>
module attributes {stable_mosaic.version = 11 : i64} {
  func.func @_fused_conv_block_kernel(%arg0: i32, %arg1: memref<1x4x256xf32, #tpu.memory_space<vmem>>, %arg2: memref<9x1x256xf32, #tpu.memory_space<vmem>>, %arg3: memref<9x16x4xf32, #tpu.memory_space<vmem>>, %arg4: memref<16x1xf32, #tpu.memory_space<vmem>>, %arg5: memref<16x1xf32, #tpu.memory_space<vmem>>, %arg6: memref<16x1xf32, #tpu.memory_space<vmem>>, %arg7: memref<9x16x16xf32, #tpu.memory_space<vmem>>, %arg8: memref<16x1xf32, #tpu.memory_space<vmem>>, %arg9: memref<16x1xf32, #tpu.memory_space<vmem>>, %arg10: memref<16x1xf32, #tpu.memory_space<vmem>>, %arg11: memref<1x16x256xf32, #tpu.memory_space<vmem>>) attributes {dimension_semantics = [#tpu.dimension_semantics<parallel>], iteration_bounds = array<i64: 2>, scalar_prefetch = 0 : i64, scratch_operands = 0 : i64, tpu.core_type = #tpu.core_type<tc>, window_params = [{transform_indices = @transform_0, window_bounds = array<i64: 1, 4, 256>}, {pipeline_mode = #tpu.pipeline_mode<synchronous>, transform_indices = @transform_1, window_bounds = array<i64: 9, 1, 256>}, {pipeline_mode = #tpu.pipeline_mode<synchronous>, transform_indices = @transform_2, window_bounds = array<i64: 9, 16, 4>}, {pipeline_mode = #tpu.pipeline_mode<synchronous>, transform_indices = @transform_3, window_bounds = array<i64: 16, 1>}, {pipeline_mode = #tpu.pipeline_mode<synchronous>, transform_indices = @transform_4, window_bounds = array<i64: 16, 1>}, {pipeline_mode = #tpu.pipeline_mode<synchronous>, transform_indices = @transform_5, window_bounds = array<i64: 16, 1>}, {pipeline_mode = #tpu.pipeline_mode<synchronous>, transform_indices = @transform_6, window_bounds = array<i64: 9, 16, 16>}, {pipeline_mode = #tpu.pipeline_mode<synchronous>, transform_indices = @transform_7, window_bounds = array<i64: 16, 1>}, {pipeline_mode = #tpu.pipeline_mode<synchronous>, transform_indices = @transform_8, window_bounds = array<i64: 16, 1>}, {pipeline_mode = #tpu.pipeline_mode<synchronous>, transform_indices = @transform_9, window_bounds = array<i64: 16, 1>}, {transform_indices = @transform_10, window_bounds = array<i64: 1, 16, 256>}]} {
    %c0 = arith.constant 0 : index
    %c0_0 = arith.constant 0 : index
    %c0_1 = arith.constant 0 : index
    %0 = vector.load %arg1[%c0, %c0_0, %c0_1] : memref<1x4x256xf32, #tpu.memory_space<vmem>>, vector<1x4x256xf32>
    %1 = vector.shape_cast %0 : vector<1x4x256xf32> to vector<4x256xf32>
    %c17_i32 = arith.constant 17 : i32
    %2 = tpu.dynamic_rotate %1 by %c17_i32 dim 1 : vector<4x256xf32>, i32 -> vector<4x256xf32>
    %c0_2 = arith.constant 0 : index
    %c0_3 = arith.constant 0 : index
    %c0_4 = arith.constant 0 : index
    %3 = vector.load %arg2[%c0_2, %c0_3, %c0_4] : memref<9x1x256xf32, #tpu.memory_space<vmem>>, vector<1x1x256xf32>
    %4 = vector.shape_cast %3 : vector<1x1x256xf32> to vector<1x256xf32>
    %5 = vector.broadcast %4 : vector<1x256xf32> to vector<4x256xf32>
    %6 = arith.mulf %2, %5 : vector<4x256xf32>
    %c0_5 = arith.constant 0 : index
    %c0_6 = arith.constant 0 : index
    %c0_7 = arith.constant 0 : index
    %7 = vector.load %arg3[%c0_5, %c0_6, %c0_7] : memref<9x16x4xf32, #tpu.memory_space<vmem>>, vector<1x16x4xf32>
    %8 = vector.shape_cast %7 : vector<1x16x4xf32> to vector<16x4xf32>
    %cst = arith.constant dense<0.000000e+00> : vector<16x256xf32>
    %9 = tpu.matmul %8, %6, %cst {dimension_numbers = #tpu.dot_dimension_numbers<[1], [0], [0], [1], [0, 0, 1, 1], [], []>} : vector<16x4xf32>, vector<4x256xf32>, vector<16x256xf32> -> vector<16x256xf32>
    %c16_i32 = arith.constant 16 : i32
    %10 = tpu.dynamic_rotate %1 by %c16_i32 dim 1 : vector<4x256xf32>, i32 -> vector<4x256xf32>
    %c1 = arith.constant 1 : index
    %c0_8 = arith.constant 0 : index
    %c0_9 = arith.constant 0 : index
    %11 = vector.load %arg2[%c1, %c0_8, %c0_9] : memref<9x1x256xf32, #tpu.memory_space<vmem>>, vector<1x1x256xf32>
    %12 = vector.shape_cast %11 : vector<1x1x256xf32> to vector<1x256xf32>
    %13 = vector.broadcast %12 : vector<1x256xf32> to vector<4x256xf32>
    %14 = arith.mulf %10, %13 : vector<4x256xf32>
    %c1_10 = arith.constant 1 : index
    %c0_11 = arith.constant 0 : index
    %c0_12 = arith.constant 0 : index
    %15 = vector.load %arg3[%c1_10, %c0_11, %c0_12] : memref<9x16x4xf32, #tpu.memory_space<vmem>>, vector<1x16x4xf32>
    %16 = vector.shape_cast %15 : vector<1x16x4xf32> to vector<16x4xf32>
    %cst_13 = arith.constant dense<0.000000e+00> : vector<16x256xf32>
    %17 = tpu.matmul %16, %14, %cst_13 {dimension_numbers = #tpu.dot_dimension_numbers<[1], [0], [0], [1], [0, 0, 1, 1], [], []>} : vector<16x4xf32>, vector<4x256xf32>, vector<16x256xf32> -> vector<16x256xf32>
    %18 = arith.addf %9, %17 : vector<16x256xf32>
    %c15_i32 = arith.constant 15 : i32
    %19 = tpu.dynamic_rotate %1 by %c15_i32 dim 1 : vector<4x256xf32>, i32 -> vector<4x256xf32>
    %c2 = arith.constant 2 : index
    %c0_14 = arith.constant 0 : index
    %c0_15 = arith.constant 0 : index
    %20 = vector.load %arg2[%c2, %c0_14, %c0_15] : memref<9x1x256xf32, #tpu.memory_space<vmem>>, vector<1x1x256xf32>
    %21 = vector.shape_cast %20 : vector<1x1x256xf32> to vector<1x256xf32>
    %22 = vector.broadcast %21 : vector<1x256xf32> to vector<4x256xf32>
    %23 = arith.mulf %19, %22 : vector<4x256xf32>
    %c2_16 = arith.constant 2 : index
    %c0_17 = arith.constant 0 : index
    %c0_18 = arith.constant 0 : index
    %24 = vector.load %arg3[%c2_16, %c0_17, %c0_18] : memref<9x16x4xf32, #tpu.memory_space<vmem>>, vector<1x16x4xf32>
    %25 = vector.shape_cast %24 : vector<1x16x4xf32> to vector<16x4xf32>
    %cst_19 = arith.constant dense<0.000000e+00> : vector<16x256xf32>
    %26 = tpu.matmul %25, %23, %cst_19 {dimension_numbers = #tpu.dot_dimension_numbers<[1], [0], [0], [1], [0, 0, 1, 1], [], []>} : vector<16x4xf32>, vector<4x256xf32>, vector<16x256xf32> -> vector<16x256xf32>
    %27 = arith.addf %18, %26 : vector<16x256xf32>
    %c1_i32 = arith.constant 1 : i32
    %28 = tpu.dynamic_rotate %1 by %c1_i32 dim 1 : vector<4x256xf32>, i32 -> vector<4x256xf32>
    %c3 = arith.constant 3 : index
    %c0_20 = arith.constant 0 : index
    %c0_21 = arith.constant 0 : index
    %29 = vector.load %arg2[%c3, %c0_20, %c0_21] : memref<9x1x256xf32, #tpu.memory_space<vmem>>, vector<1x1x256xf32>
    %30 = vector.shape_cast %29 : vector<1x1x256xf32> to vector<1x256xf32>
    %31 = vector.broadcast %30 : vector<1x256xf32> to vector<4x256xf32>
    %32 = arith.mulf %28, %31 : vector<4x256xf32>
    %c3_22 = arith.constant 3 : index
    %c0_23 = arith.constant 0 : index
    %c0_24 = arith.constant 0 : index
    %33 = vector.load %arg3[%c3_22, %c0_23, %c0_24] : memref<9x16x4xf32, #tpu.memory_space<vmem>>, vector<1x16x4xf32>
    %34 = vector.shape_cast %33 : vector<1x16x4xf32> to vector<16x4xf32>
    %cst_25 = arith.constant dense<0.000000e+00> : vector<16x256xf32>
    %35 = tpu.matmul %34, %32, %cst_25 {dimension_numbers = #tpu.dot_dimension_numbers<[1], [0], [0], [1], [0, 0, 1, 1], [], []>} : vector<16x4xf32>, vector<4x256xf32>, vector<16x256xf32> -> vector<16x256xf32>
    %36 = arith.addf %27, %35 : vector<16x256xf32>
    %c4 = arith.constant 4 : index
    %c0_26 = arith.constant 0 : index
    %c0_27 = arith.constant 0 : index
    %37 = vector.load %arg3[%c4, %c0_26, %c0_27] : memref<9x16x4xf32, #tpu.memory_space<vmem>>, vector<1x16x4xf32>
    %38 = vector.shape_cast %37 : vector<1x16x4xf32> to vector<16x4xf32>
    %cst_28 = arith.constant dense<0.000000e+00> : vector<16x256xf32>
    %39 = tpu.matmul %38, %1, %cst_28 {dimension_numbers = #tpu.dot_dimension_numbers<[1], [0], [0], [1], [0, 0, 1, 1], [], []>} : vector<16x4xf32>, vector<4x256xf32>, vector<16x256xf32> -> vector<16x256xf32>
    %40 = arith.addf %36, %39 : vector<16x256xf32>
    %c255_i32 = arith.constant 255 : i32
    %41 = tpu.dynamic_rotate %1 by %c255_i32 dim 1 : vector<4x256xf32>, i32 -> vector<4x256xf32>
    %c5 = arith.constant 5 : index
    %c0_29 = arith.constant 0 : index
    %c0_30 = arith.constant 0 : index
    %42 = vector.load %arg2[%c5, %c0_29, %c0_30] : memref<9x1x256xf32, #tpu.memory_space<vmem>>, vector<1x1x256xf32>
    %43 = vector.shape_cast %42 : vector<1x1x256xf32> to vector<1x256xf32>
    %44 = vector.broadcast %43 : vector<1x256xf32> to vector<4x256xf32>
    %45 = arith.mulf %41, %44 : vector<4x256xf32>
    %c5_31 = arith.constant 5 : index
    %c0_32 = arith.constant 0 : index
    %c0_33 = arith.constant 0 : index
    %46 = vector.load %arg3[%c5_31, %c0_32, %c0_33] : memref<9x16x4xf32, #tpu.memory_space<vmem>>, vector<1x16x4xf32>
    %47 = vector.shape_cast %46 : vector<1x16x4xf32> to vector<16x4xf32>
    %cst_34 = arith.constant dense<0.000000e+00> : vector<16x256xf32>
    %48 = tpu.matmul %47, %45, %cst_34 {dimension_numbers = #tpu.dot_dimension_numbers<[1], [0], [0], [1], [0, 0, 1, 1], [], []>} : vector<16x4xf32>, vector<4x256xf32>, vector<16x256xf32> -> vector<16x256xf32>
    %49 = arith.addf %40, %48 : vector<16x256xf32>
    %c241_i32 = arith.constant 241 : i32
    %50 = tpu.dynamic_rotate %1 by %c241_i32 dim 1 : vector<4x256xf32>, i32 -> vector<4x256xf32>
    %c6 = arith.constant 6 : index
    %c0_35 = arith.constant 0 : index
    %c0_36 = arith.constant 0 : index
    %51 = vector.load %arg2[%c6, %c0_35, %c0_36] : memref<9x1x256xf32, #tpu.memory_space<vmem>>, vector<1x1x256xf32>
    %52 = vector.shape_cast %51 : vector<1x1x256xf32> to vector<1x256xf32>
    %53 = vector.broadcast %52 : vector<1x256xf32> to vector<4x256xf32>
    %54 = arith.mulf %50, %53 : vector<4x256xf32>
    %c6_37 = arith.constant 6 : index
    %c0_38 = arith.constant 0 : index
    %c0_39 = arith.constant 0 : index
    %55 = vector.load %arg3[%c6_37, %c0_38, %c0_39] : memref<9x16x4xf32, #tpu.memory_space<vmem>>, vector<1x16x4xf32>
    %56 = vector.shape_cast %55 : vector<1x16x4xf32> to vector<16x4xf32>
    %cst_40 = arith.constant dense<0.000000e+00> : vector<16x256xf32>
    %57 = tpu.matmul %56, %54, %cst_40 {dimension_numbers = #tpu.dot_dimension_numbers<[1], [0], [0], [1], [0, 0, 1, 1], [], []>} : vector<16x4xf32>, vector<4x256xf32>, vector<16x256xf32> -> vector<16x256xf32>
    %58 = arith.addf %49, %57 : vector<16x256xf32>
    %c240_i32 = arith.constant 240 : i32
    %59 = tpu.dynamic_rotate %1 by %c240_i32 dim 1 : vector<4x256xf32>, i32 -> vector<4x256xf32>
    %c7 = arith.constant 7 : index
    %c0_41 = arith.constant 0 : index
    %c0_42 = arith.constant 0 : index
    %60 = vector.load %arg2[%c7, %c0_41, %c0_42] : memref<9x1x256xf32, #tpu.memory_space<vmem>>, vector<1x1x256xf32>
    %61 = vector.shape_cast %60 : vector<1x1x256xf32> to vector<1x256xf32>
    %62 = vector.broadcast %61 : vector<1x256xf32> to vector<4x256xf32>
    %63 = arith.mulf %59, %62 : vector<4x256xf32>
    %c7_43 = arith.constant 7 : index
    %c0_44 = arith.constant 0 : index
    %c0_45 = arith.constant 0 : index
    %64 = vector.load %arg3[%c7_43, %c0_44, %c0_45] : memref<9x16x4xf32, #tpu.memory_space<vmem>>, vector<1x16x4xf32>
    %65 = vector.shape_cast %64 : vector<1x16x4xf32> to vector<16x4xf32>
    %cst_46 = arith.constant dense<0.000000e+00> : vector<16x256xf32>
    %66 = tpu.matmul %65, %63, %cst_46 {dimension_numbers = #tpu.dot_dimension_numbers<[1], [0], [0], [1], [0, 0, 1, 1], [], []>} : vector<16x4xf32>, vector<4x256xf32>, vector<16x256xf32> -> vector<16x256xf32>
    %67 = arith.addf %58, %66 : vector<16x256xf32>
    %c239_i32 = arith.constant 239 : i32
    %68 = tpu.dynamic_rotate %1 by %c239_i32 dim 1 : vector<4x256xf32>, i32 -> vector<4x256xf32>
    %c8 = arith.constant 8 : index
    %c0_47 = arith.constant 0 : index
    %c0_48 = arith.constant 0 : index
    %69 = vector.load %arg2[%c8, %c0_47, %c0_48] : memref<9x1x256xf32, #tpu.memory_space<vmem>>, vector<1x1x256xf32>
    %70 = vector.shape_cast %69 : vector<1x1x256xf32> to vector<1x256xf32>
    %71 = vector.broadcast %70 : vector<1x256xf32> to vector<4x256xf32>
    %72 = arith.mulf %68, %71 : vector<4x256xf32>
    %c8_49 = arith.constant 8 : index
    %c0_50 = arith.constant 0 : index
    %c0_51 = arith.constant 0 : index
    %73 = vector.load %arg3[%c8_49, %c0_50, %c0_51] : memref<9x16x4xf32, #tpu.memory_space<vmem>>, vector<1x16x4xf32>
    %74 = vector.shape_cast %73 : vector<1x16x4xf32> to vector<16x4xf32>
    %cst_52 = arith.constant dense<0.000000e+00> : vector<16x256xf32>
    %75 = tpu.matmul %74, %72, %cst_52 {dimension_numbers = #tpu.dot_dimension_numbers<[1], [0], [0], [1], [0, 0, 1, 1], [], []>} : vector<16x4xf32>, vector<4x256xf32>, vector<16x256xf32> -> vector<16x256xf32>
    %76 = arith.addf %67, %75 : vector<16x256xf32>
    %c0_53 = arith.constant 0 : index
    %c0_54 = arith.constant 0 : index
    %77 = vector.load %arg4[%c0_53, %c0_54] : memref<16x1xf32, #tpu.memory_space<vmem>>, vector<16x1xf32>
    %78 = vector.broadcast %77 : vector<16x1xf32> to vector<16x256xf32>
    %79 = arith.addf %76, %78 : vector<16x256xf32>
    %c0_55 = arith.constant 0 : index
    %c0_56 = arith.constant 0 : index
    %80 = vector.load %arg5[%c0_55, %c0_56] : memref<16x1xf32, #tpu.memory_space<vmem>>, vector<16x1xf32>
    %c0_57 = arith.constant 0 : index
    %c0_58 = arith.constant 0 : index
    %81 = vector.load %arg6[%c0_57, %c0_58] : memref<16x1xf32, #tpu.memory_space<vmem>>, vector<16x1xf32>
    %cst_59 = arith.constant dense<0.000000e+00> : vector<16xf32>
    %82 = vector.multi_reduction <add>, %79, %cst_59 [1] : vector<16x256xf32> to vector<16xf32>
    %83 = vector.shape_cast %82 : vector<16xf32> to vector<16x1xf32>
    %84 = vector.extract_strided_slice %83 {offsets = [0, 0], sizes = [2, 1], strides = [1, 1]} : vector<16x1xf32> to vector<2x1xf32>
    %cst_60 = arith.constant dense<0.000000e+00> : vector<1xf32>
    %85 = vector.multi_reduction <add>, %84, %cst_60 [0] : vector<2x1xf32> to vector<1xf32>
    %86 = vector.shape_cast %85 : vector<1xf32> to vector<1x1xf32>
    %87 = vector.shape_cast %86 : vector<1x1xf32> to vector<1x1xf32>
    %88 = vector.broadcast %87 : vector<1x1xf32> to vector<2x1xf32>
    %89 = vector.extract_strided_slice %83 {offsets = [2, 0], sizes = [2, 1], strides = [1, 1]} : vector<16x1xf32> to vector<2x1xf32>
    %cst_61 = arith.constant dense<0.000000e+00> : vector<1xf32>
    %90 = vector.multi_reduction <add>, %89, %cst_61 [0] : vector<2x1xf32> to vector<1xf32>
    %91 = vector.shape_cast %90 : vector<1xf32> to vector<1x1xf32>
    %92 = vector.shape_cast %91 : vector<1x1xf32> to vector<1x1xf32>
    %93 = vector.broadcast %92 : vector<1x1xf32> to vector<2x1xf32>
    %94 = vector.extract_strided_slice %83 {offsets = [4, 0], sizes = [2, 1], strides = [1, 1]} : vector<16x1xf32> to vector<2x1xf32>
    %cst_62 = arith.constant dense<0.000000e+00> : vector<1xf32>
    %95 = vector.multi_reduction <add>, %94, %cst_62 [0] : vector<2x1xf32> to vector<1xf32>
    %96 = vector.shape_cast %95 : vector<1xf32> to vector<1x1xf32>
    %97 = vector.shape_cast %96 : vector<1x1xf32> to vector<1x1xf32>
    %98 = vector.broadcast %97 : vector<1x1xf32> to vector<2x1xf32>
    %99 = vector.extract_strided_slice %83 {offsets = [6, 0], sizes = [2, 1], strides = [1, 1]} : vector<16x1xf32> to vector<2x1xf32>
    %cst_63 = arith.constant dense<0.000000e+00> : vector<1xf32>
    %100 = vector.multi_reduction <add>, %99, %cst_63 [0] : vector<2x1xf32> to vector<1xf32>
    %101 = vector.shape_cast %100 : vector<1xf32> to vector<1x1xf32>
    %102 = vector.shape_cast %101 : vector<1x1xf32> to vector<1x1xf32>
    %103 = vector.broadcast %102 : vector<1x1xf32> to vector<2x1xf32>
    %104 = vector.extract_strided_slice %83 {offsets = [8, 0], sizes = [2, 1], strides = [1, 1]} : vector<16x1xf32> to vector<2x1xf32>
    %cst_64 = arith.constant dense<0.000000e+00> : vector<1xf32>
    %105 = vector.multi_reduction <add>, %104, %cst_64 [0] : vector<2x1xf32> to vector<1xf32>
    %106 = vector.shape_cast %105 : vector<1xf32> to vector<1x1xf32>
    %107 = vector.shape_cast %106 : vector<1x1xf32> to vector<1x1xf32>
    %108 = vector.broadcast %107 : vector<1x1xf32> to vector<2x1xf32>
    %109 = vector.extract_strided_slice %83 {offsets = [10, 0], sizes = [2, 1], strides = [1, 1]} : vector<16x1xf32> to vector<2x1xf32>
    %cst_65 = arith.constant dense<0.000000e+00> : vector<1xf32>
    %110 = vector.multi_reduction <add>, %109, %cst_65 [0] : vector<2x1xf32> to vector<1xf32>
    %111 = vector.shape_cast %110 : vector<1xf32> to vector<1x1xf32>
    %112 = vector.shape_cast %111 : vector<1x1xf32> to vector<1x1xf32>
    %113 = vector.broadcast %112 : vector<1x1xf32> to vector<2x1xf32>
    %114 = vector.extract_strided_slice %83 {offsets = [12, 0], sizes = [2, 1], strides = [1, 1]} : vector<16x1xf32> to vector<2x1xf32>
    %cst_66 = arith.constant dense<0.000000e+00> : vector<1xf32>
    %115 = vector.multi_reduction <add>, %114, %cst_66 [0] : vector<2x1xf32> to vector<1xf32>
    %116 = vector.shape_cast %115 : vector<1xf32> to vector<1x1xf32>
    %117 = vector.shape_cast %116 : vector<1x1xf32> to vector<1x1xf32>
    %118 = vector.broadcast %117 : vector<1x1xf32> to vector<2x1xf32>
    %119 = vector.extract_strided_slice %83 {offsets = [14, 0], sizes = [2, 1], strides = [1, 1]} : vector<16x1xf32> to vector<2x1xf32>
    %cst_67 = arith.constant dense<0.000000e+00> : vector<1xf32>
    %120 = vector.multi_reduction <add>, %119, %cst_67 [0] : vector<2x1xf32> to vector<1xf32>
    %121 = vector.shape_cast %120 : vector<1xf32> to vector<1x1xf32>
    %122 = vector.shape_cast %121 : vector<1x1xf32> to vector<1x1xf32>
    %123 = vector.broadcast %122 : vector<1x1xf32> to vector<2x1xf32>
    %124 = tpu.concatenate %88, %93, %98, %103, %108, %113, %118, %123 in 0 : vector<2x1xf32>, vector<2x1xf32>, vector<2x1xf32>, vector<2x1xf32>, vector<2x1xf32>, vector<2x1xf32>, vector<2x1xf32>, vector<2x1xf32> -> vector<16x1xf32>
    %cst_68 = arith.constant 0.001953125 : f32
    %125 = vector.broadcast %cst_68 : f32 to vector<16x1xf32>
    %126 = arith.mulf %124, %125 : vector<16x1xf32>
    %127 = vector.broadcast %126 : vector<16x1xf32> to vector<16x256xf32>
    %128 = arith.subf %79, %127 : vector<16x256xf32>
    %129 = arith.mulf %128, %128 : vector<16x256xf32>
    %cst_69 = arith.constant dense<0.000000e+00> : vector<16xf32>
    %130 = vector.multi_reduction <add>, %129, %cst_69 [1] : vector<16x256xf32> to vector<16xf32>
    %131 = vector.shape_cast %130 : vector<16xf32> to vector<16x1xf32>
    %132 = vector.extract_strided_slice %131 {offsets = [0, 0], sizes = [2, 1], strides = [1, 1]} : vector<16x1xf32> to vector<2x1xf32>
    %cst_70 = arith.constant dense<0.000000e+00> : vector<1xf32>
    %133 = vector.multi_reduction <add>, %132, %cst_70 [0] : vector<2x1xf32> to vector<1xf32>
    %134 = vector.shape_cast %133 : vector<1xf32> to vector<1x1xf32>
    %135 = vector.shape_cast %134 : vector<1x1xf32> to vector<1x1xf32>
    %136 = vector.broadcast %135 : vector<1x1xf32> to vector<2x1xf32>
    %137 = vector.extract_strided_slice %131 {offsets = [2, 0], sizes = [2, 1], strides = [1, 1]} : vector<16x1xf32> to vector<2x1xf32>
    %cst_71 = arith.constant dense<0.000000e+00> : vector<1xf32>
    %138 = vector.multi_reduction <add>, %137, %cst_71 [0] : vector<2x1xf32> to vector<1xf32>
    %139 = vector.shape_cast %138 : vector<1xf32> to vector<1x1xf32>
    %140 = vector.shape_cast %139 : vector<1x1xf32> to vector<1x1xf32>
    %141 = vector.broadcast %140 : vector<1x1xf32> to vector<2x1xf32>
    %142 = vector.extract_strided_slice %131 {offsets = [4, 0], sizes = [2, 1], strides = [1, 1]} : vector<16x1xf32> to vector<2x1xf32>
    %cst_72 = arith.constant dense<0.000000e+00> : vector<1xf32>
    %143 = vector.multi_reduction <add>, %142, %cst_72 [0] : vector<2x1xf32> to vector<1xf32>
    %144 = vector.shape_cast %143 : vector<1xf32> to vector<1x1xf32>
    %145 = vector.shape_cast %144 : vector<1x1xf32> to vector<1x1xf32>
    %146 = vector.broadcast %145 : vector<1x1xf32> to vector<2x1xf32>
    %147 = vector.extract_strided_slice %131 {offsets = [6, 0], sizes = [2, 1], strides = [1, 1]} : vector<16x1xf32> to vector<2x1xf32>
    %cst_73 = arith.constant dense<0.000000e+00> : vector<1xf32>
    %148 = vector.multi_reduction <add>, %147, %cst_73 [0] : vector<2x1xf32> to vector<1xf32>
    %149 = vector.shape_cast %148 : vector<1xf32> to vector<1x1xf32>
    %150 = vector.shape_cast %149 : vector<1x1xf32> to vector<1x1xf32>
    %151 = vector.broadcast %150 : vector<1x1xf32> to vector<2x1xf32>
    %152 = vector.extract_strided_slice %131 {offsets = [8, 0], sizes = [2, 1], strides = [1, 1]} : vector<16x1xf32> to vector<2x1xf32>
    %cst_74 = arith.constant dense<0.000000e+00> : vector<1xf32>
    %153 = vector.multi_reduction <add>, %152, %cst_74 [0] : vector<2x1xf32> to vector<1xf32>
    %154 = vector.shape_cast %153 : vector<1xf32> to vector<1x1xf32>
    %155 = vector.shape_cast %154 : vector<1x1xf32> to vector<1x1xf32>
    %156 = vector.broadcast %155 : vector<1x1xf32> to vector<2x1xf32>
    %157 = vector.extract_strided_slice %131 {offsets = [10, 0], sizes = [2, 1], strides = [1, 1]} : vector<16x1xf32> to vector<2x1xf32>
    %cst_75 = arith.constant dense<0.000000e+00> : vector<1xf32>
    %158 = vector.multi_reduction <add>, %157, %cst_75 [0] : vector<2x1xf32> to vector<1xf32>
    %159 = vector.shape_cast %158 : vector<1xf32> to vector<1x1xf32>
    %160 = vector.shape_cast %159 : vector<1x1xf32> to vector<1x1xf32>
    %161 = vector.broadcast %160 : vector<1x1xf32> to vector<2x1xf32>
    %162 = vector.extract_strided_slice %131 {offsets = [12, 0], sizes = [2, 1], strides = [1, 1]} : vector<16x1xf32> to vector<2x1xf32>
    %cst_76 = arith.constant dense<0.000000e+00> : vector<1xf32>
    %163 = vector.multi_reduction <add>, %162, %cst_76 [0] : vector<2x1xf32> to vector<1xf32>
    %164 = vector.shape_cast %163 : vector<1xf32> to vector<1x1xf32>
    %165 = vector.shape_cast %164 : vector<1x1xf32> to vector<1x1xf32>
    %166 = vector.broadcast %165 : vector<1x1xf32> to vector<2x1xf32>
    %167 = vector.extract_strided_slice %131 {offsets = [14, 0], sizes = [2, 1], strides = [1, 1]} : vector<16x1xf32> to vector<2x1xf32>
    %cst_77 = arith.constant dense<0.000000e+00> : vector<1xf32>
    %168 = vector.multi_reduction <add>, %167, %cst_77 [0] : vector<2x1xf32> to vector<1xf32>
    %169 = vector.shape_cast %168 : vector<1xf32> to vector<1x1xf32>
    %170 = vector.shape_cast %169 : vector<1x1xf32> to vector<1x1xf32>
    %171 = vector.broadcast %170 : vector<1x1xf32> to vector<2x1xf32>
    %172 = tpu.concatenate %136, %141, %146, %151, %156, %161, %166, %171 in 0 : vector<2x1xf32>, vector<2x1xf32>, vector<2x1xf32>, vector<2x1xf32>, vector<2x1xf32>, vector<2x1xf32>, vector<2x1xf32>, vector<2x1xf32> -> vector<16x1xf32>
    %cst_78 = arith.constant 0.001953125 : f32
    %173 = vector.broadcast %cst_78 : f32 to vector<16x1xf32>
    %174 = arith.mulf %172, %173 : vector<16x1xf32>
    %cst_79 = arith.constant 9.99999974E-6 : f32
    %175 = vector.broadcast %cst_79 : f32 to vector<16x1xf32>
    %176 = arith.addf %174, %175 : vector<16x1xf32>
    %177 = math.rsqrt %176 : vector<16x1xf32>
    %178 = vector.broadcast %177 : vector<16x1xf32> to vector<16x256xf32>
    %179 = arith.mulf %128, %178 : vector<16x256xf32>
    %180 = vector.broadcast %80 : vector<16x1xf32> to vector<16x256xf32>
    %181 = arith.mulf %179, %180 : vector<16x256xf32>
    %182 = vector.broadcast %81 : vector<16x1xf32> to vector<16x256xf32>
    %183 = arith.addf %181, %182 : vector<16x256xf32>
    %cst_80 = arith.constant 0.000000e+00 : f32
    %184 = vector.broadcast %cst_80 : f32 to vector<16x256xf32>
    %185 = arith.maximumf %183, %184 : vector<16x256xf32>
    %c17_i32_81 = arith.constant 17 : i32
    %186 = tpu.dynamic_rotate %185 by %c17_i32_81 dim 1 : vector<16x256xf32>, i32 -> vector<16x256xf32>
    %c0_82 = arith.constant 0 : index
    %c0_83 = arith.constant 0 : index
    %c0_84 = arith.constant 0 : index
    %187 = vector.load %arg2[%c0_82, %c0_83, %c0_84] : memref<9x1x256xf32, #tpu.memory_space<vmem>>, vector<1x1x256xf32>
    %188 = vector.shape_cast %187 : vector<1x1x256xf32> to vector<1x256xf32>
    %189 = vector.broadcast %188 : vector<1x256xf32> to vector<16x256xf32>
    %190 = arith.mulf %186, %189 : vector<16x256xf32>
    %c0_85 = arith.constant 0 : index
    %c0_86 = arith.constant 0 : index
    %c0_87 = arith.constant 0 : index
    %191 = vector.load %arg7[%c0_85, %c0_86, %c0_87] : memref<9x16x16xf32, #tpu.memory_space<vmem>>, vector<1x16x16xf32>
    %192 = vector.shape_cast %191 : vector<1x16x16xf32> to vector<16x16xf32>
    %cst_88 = arith.constant dense<0.000000e+00> : vector<16x256xf32>
    %193 = tpu.matmul %192, %190, %cst_88 {dimension_numbers = #tpu.dot_dimension_numbers<[1], [0], [0], [1], [0, 0, 1, 1], [], []>} : vector<16x16xf32>, vector<16x256xf32>, vector<16x256xf32> -> vector<16x256xf32>
    %c16_i32_89 = arith.constant 16 : i32
    %194 = tpu.dynamic_rotate %185 by %c16_i32_89 dim 1 : vector<16x256xf32>, i32 -> vector<16x256xf32>
    %c1_90 = arith.constant 1 : index
    %c0_91 = arith.constant 0 : index
    %c0_92 = arith.constant 0 : index
    %195 = vector.load %arg2[%c1_90, %c0_91, %c0_92] : memref<9x1x256xf32, #tpu.memory_space<vmem>>, vector<1x1x256xf32>
    %196 = vector.shape_cast %195 : vector<1x1x256xf32> to vector<1x256xf32>
    %197 = vector.broadcast %196 : vector<1x256xf32> to vector<16x256xf32>
    %198 = arith.mulf %194, %197 : vector<16x256xf32>
    %c1_93 = arith.constant 1 : index
    %c0_94 = arith.constant 0 : index
    %c0_95 = arith.constant 0 : index
    %199 = vector.load %arg7[%c1_93, %c0_94, %c0_95] : memref<9x16x16xf32, #tpu.memory_space<vmem>>, vector<1x16x16xf32>
    %200 = vector.shape_cast %199 : vector<1x16x16xf32> to vector<16x16xf32>
    %cst_96 = arith.constant dense<0.000000e+00> : vector<16x256xf32>
    %201 = tpu.matmul %200, %198, %cst_96 {dimension_numbers = #tpu.dot_dimension_numbers<[1], [0], [0], [1], [0, 0, 1, 1], [], []>} : vector<16x16xf32>, vector<16x256xf32>, vector<16x256xf32> -> vector<16x256xf32>
    %202 = arith.addf %193, %201 : vector<16x256xf32>
    %c15_i32_97 = arith.constant 15 : i32
    %203 = tpu.dynamic_rotate %185 by %c15_i32_97 dim 1 : vector<16x256xf32>, i32 -> vector<16x256xf32>
    %c2_98 = arith.constant 2 : index
    %c0_99 = arith.constant 0 : index
    %c0_100 = arith.constant 0 : index
    %204 = vector.load %arg2[%c2_98, %c0_99, %c0_100] : memref<9x1x256xf32, #tpu.memory_space<vmem>>, vector<1x1x256xf32>
    %205 = vector.shape_cast %204 : vector<1x1x256xf32> to vector<1x256xf32>
    %206 = vector.broadcast %205 : vector<1x256xf32> to vector<16x256xf32>
    %207 = arith.mulf %203, %206 : vector<16x256xf32>
    %c2_101 = arith.constant 2 : index
    %c0_102 = arith.constant 0 : index
    %c0_103 = arith.constant 0 : index
    %208 = vector.load %arg7[%c2_101, %c0_102, %c0_103] : memref<9x16x16xf32, #tpu.memory_space<vmem>>, vector<1x16x16xf32>
    %209 = vector.shape_cast %208 : vector<1x16x16xf32> to vector<16x16xf32>
    %cst_104 = arith.constant dense<0.000000e+00> : vector<16x256xf32>
    %210 = tpu.matmul %209, %207, %cst_104 {dimension_numbers = #tpu.dot_dimension_numbers<[1], [0], [0], [1], [0, 0, 1, 1], [], []>} : vector<16x16xf32>, vector<16x256xf32>, vector<16x256xf32> -> vector<16x256xf32>
    %211 = arith.addf %202, %210 : vector<16x256xf32>
    %c1_i32_105 = arith.constant 1 : i32
    %212 = tpu.dynamic_rotate %185 by %c1_i32_105 dim 1 : vector<16x256xf32>, i32 -> vector<16x256xf32>
    %c3_106 = arith.constant 3 : index
    %c0_107 = arith.constant 0 : index
    %c0_108 = arith.constant 0 : index
    %213 = vector.load %arg2[%c3_106, %c0_107, %c0_108] : memref<9x1x256xf32, #tpu.memory_space<vmem>>, vector<1x1x256xf32>
    %214 = vector.shape_cast %213 : vector<1x1x256xf32> to vector<1x256xf32>
    %215 = vector.broadcast %214 : vector<1x256xf32> to vector<16x256xf32>
    %216 = arith.mulf %212, %215 : vector<16x256xf32>
    %c3_109 = arith.constant 3 : index
    %c0_110 = arith.constant 0 : index
    %c0_111 = arith.constant 0 : index
    %217 = vector.load %arg7[%c3_109, %c0_110, %c0_111] : memref<9x16x16xf32, #tpu.memory_space<vmem>>, vector<1x16x16xf32>
    %218 = vector.shape_cast %217 : vector<1x16x16xf32> to vector<16x16xf32>
    %cst_112 = arith.constant dense<0.000000e+00> : vector<16x256xf32>
    %219 = tpu.matmul %218, %216, %cst_112 {dimension_numbers = #tpu.dot_dimension_numbers<[1], [0], [0], [1], [0, 0, 1, 1], [], []>} : vector<16x16xf32>, vector<16x256xf32>, vector<16x256xf32> -> vector<16x256xf32>
    %220 = arith.addf %211, %219 : vector<16x256xf32>
    %c4_113 = arith.constant 4 : index
    %c0_114 = arith.constant 0 : index
    %c0_115 = arith.constant 0 : index
    %221 = vector.load %arg7[%c4_113, %c0_114, %c0_115] : memref<9x16x16xf32, #tpu.memory_space<vmem>>, vector<1x16x16xf32>
    %222 = vector.shape_cast %221 : vector<1x16x16xf32> to vector<16x16xf32>
    %cst_116 = arith.constant dense<0.000000e+00> : vector<16x256xf32>
    %223 = tpu.matmul %222, %185, %cst_116 {dimension_numbers = #tpu.dot_dimension_numbers<[1], [0], [0], [1], [0, 0, 1, 1], [], []>} : vector<16x16xf32>, vector<16x256xf32>, vector<16x256xf32> -> vector<16x256xf32>
    %224 = arith.addf %220, %223 : vector<16x256xf32>
    %c255_i32_117 = arith.constant 255 : i32
    %225 = tpu.dynamic_rotate %185 by %c255_i32_117 dim 1 : vector<16x256xf32>, i32 -> vector<16x256xf32>
    %c5_118 = arith.constant 5 : index
    %c0_119 = arith.constant 0 : index
    %c0_120 = arith.constant 0 : index
    %226 = vector.load %arg2[%c5_118, %c0_119, %c0_120] : memref<9x1x256xf32, #tpu.memory_space<vmem>>, vector<1x1x256xf32>
    %227 = vector.shape_cast %226 : vector<1x1x256xf32> to vector<1x256xf32>
    %228 = vector.broadcast %227 : vector<1x256xf32> to vector<16x256xf32>
    %229 = arith.mulf %225, %228 : vector<16x256xf32>
    %c5_121 = arith.constant 5 : index
    %c0_122 = arith.constant 0 : index
    %c0_123 = arith.constant 0 : index
    %230 = vector.load %arg7[%c5_121, %c0_122, %c0_123] : memref<9x16x16xf32, #tpu.memory_space<vmem>>, vector<1x16x16xf32>
    %231 = vector.shape_cast %230 : vector<1x16x16xf32> to vector<16x16xf32>
    %cst_124 = arith.constant dense<0.000000e+00> : vector<16x256xf32>
    %232 = tpu.matmul %231, %229, %cst_124 {dimension_numbers = #tpu.dot_dimension_numbers<[1], [0], [0], [1], [0, 0, 1, 1], [], []>} : vector<16x16xf32>, vector<16x256xf32>, vector<16x256xf32> -> vector<16x256xf32>
    %233 = arith.addf %224, %232 : vector<16x256xf32>
    %c241_i32_125 = arith.constant 241 : i32
    %234 = tpu.dynamic_rotate %185 by %c241_i32_125 dim 1 : vector<16x256xf32>, i32 -> vector<16x256xf32>
    %c6_126 = arith.constant 6 : index
    %c0_127 = arith.constant 0 : index
    %c0_128 = arith.constant 0 : index
    %235 = vector.load %arg2[%c6_126, %c0_127, %c0_128] : memref<9x1x256xf32, #tpu.memory_space<vmem>>, vector<1x1x256xf32>
    %236 = vector.shape_cast %235 : vector<1x1x256xf32> to vector<1x256xf32>
    %237 = vector.broadcast %236 : vector<1x256xf32> to vector<16x256xf32>
    %238 = arith.mulf %234, %237 : vector<16x256xf32>
    %c6_129 = arith.constant 6 : index
    %c0_130 = arith.constant 0 : index
    %c0_131 = arith.constant 0 : index
    %239 = vector.load %arg7[%c6_129, %c0_130, %c0_131] : memref<9x16x16xf32, #tpu.memory_space<vmem>>, vector<1x16x16xf32>
    %240 = vector.shape_cast %239 : vector<1x16x16xf32> to vector<16x16xf32>
    %cst_132 = arith.constant dense<0.000000e+00> : vector<16x256xf32>
    %241 = tpu.matmul %240, %238, %cst_132 {dimension_numbers = #tpu.dot_dimension_numbers<[1], [0], [0], [1], [0, 0, 1, 1], [], []>} : vector<16x16xf32>, vector<16x256xf32>, vector<16x256xf32> -> vector<16x256xf32>
    %242 = arith.addf %233, %241 : vector<16x256xf32>
    %c240_i32_133 = arith.constant 240 : i32
    %243 = tpu.dynamic_rotate %185 by %c240_i32_133 dim 1 : vector<16x256xf32>, i32 -> vector<16x256xf32>
    %c7_134 = arith.constant 7 : index
    %c0_135 = arith.constant 0 : index
    %c0_136 = arith.constant 0 : index
    %244 = vector.load %arg2[%c7_134, %c0_135, %c0_136] : memref<9x1x256xf32, #tpu.memory_space<vmem>>, vector<1x1x256xf32>
    %245 = vector.shape_cast %244 : vector<1x1x256xf32> to vector<1x256xf32>
    %246 = vector.broadcast %245 : vector<1x256xf32> to vector<16x256xf32>
    %247 = arith.mulf %243, %246 : vector<16x256xf32>
    %c7_137 = arith.constant 7 : index
    %c0_138 = arith.constant 0 : index
    %c0_139 = arith.constant 0 : index
    %248 = vector.load %arg7[%c7_137, %c0_138, %c0_139] : memref<9x16x16xf32, #tpu.memory_space<vmem>>, vector<1x16x16xf32>
    %249 = vector.shape_cast %248 : vector<1x16x16xf32> to vector<16x16xf32>
    %cst_140 = arith.constant dense<0.000000e+00> : vector<16x256xf32>
    %250 = tpu.matmul %249, %247, %cst_140 {dimension_numbers = #tpu.dot_dimension_numbers<[1], [0], [0], [1], [0, 0, 1, 1], [], []>} : vector<16x16xf32>, vector<16x256xf32>, vector<16x256xf32> -> vector<16x256xf32>
    %251 = arith.addf %242, %250 : vector<16x256xf32>
    %c239_i32_141 = arith.constant 239 : i32
    %252 = tpu.dynamic_rotate %185 by %c239_i32_141 dim 1 : vector<16x256xf32>, i32 -> vector<16x256xf32>
    %c8_142 = arith.constant 8 : index
    %c0_143 = arith.constant 0 : index
    %c0_144 = arith.constant 0 : index
    %253 = vector.load %arg2[%c8_142, %c0_143, %c0_144] : memref<9x1x256xf32, #tpu.memory_space<vmem>>, vector<1x1x256xf32>
    %254 = vector.shape_cast %253 : vector<1x1x256xf32> to vector<1x256xf32>
    %255 = vector.broadcast %254 : vector<1x256xf32> to vector<16x256xf32>
    %256 = arith.mulf %252, %255 : vector<16x256xf32>
    %c8_145 = arith.constant 8 : index
    %c0_146 = arith.constant 0 : index
    %c0_147 = arith.constant 0 : index
    %257 = vector.load %arg7[%c8_145, %c0_146, %c0_147] : memref<9x16x16xf32, #tpu.memory_space<vmem>>, vector<1x16x16xf32>
    %258 = vector.shape_cast %257 : vector<1x16x16xf32> to vector<16x16xf32>
    %cst_148 = arith.constant dense<0.000000e+00> : vector<16x256xf32>
    %259 = tpu.matmul %258, %256, %cst_148 {dimension_numbers = #tpu.dot_dimension_numbers<[1], [0], [0], [1], [0, 0, 1, 1], [], []>} : vector<16x16xf32>, vector<16x256xf32>, vector<16x256xf32> -> vector<16x256xf32>
    %260 = arith.addf %251, %259 : vector<16x256xf32>
    %c0_149 = arith.constant 0 : index
    %c0_150 = arith.constant 0 : index
    %261 = vector.load %arg8[%c0_149, %c0_150] : memref<16x1xf32, #tpu.memory_space<vmem>>, vector<16x1xf32>
    %262 = vector.broadcast %261 : vector<16x1xf32> to vector<16x256xf32>
    %263 = arith.addf %260, %262 : vector<16x256xf32>
    %c0_151 = arith.constant 0 : index
    %c0_152 = arith.constant 0 : index
    %264 = vector.load %arg9[%c0_151, %c0_152] : memref<16x1xf32, #tpu.memory_space<vmem>>, vector<16x1xf32>
    %c0_153 = arith.constant 0 : index
    %c0_154 = arith.constant 0 : index
    %265 = vector.load %arg10[%c0_153, %c0_154] : memref<16x1xf32, #tpu.memory_space<vmem>>, vector<16x1xf32>
    %cst_155 = arith.constant dense<0.000000e+00> : vector<16xf32>
    %266 = vector.multi_reduction <add>, %263, %cst_155 [1] : vector<16x256xf32> to vector<16xf32>
    %267 = vector.shape_cast %266 : vector<16xf32> to vector<16x1xf32>
    %268 = vector.extract_strided_slice %267 {offsets = [0, 0], sizes = [2, 1], strides = [1, 1]} : vector<16x1xf32> to vector<2x1xf32>
    %cst_156 = arith.constant dense<0.000000e+00> : vector<1xf32>
    %269 = vector.multi_reduction <add>, %268, %cst_156 [0] : vector<2x1xf32> to vector<1xf32>
    %270 = vector.shape_cast %269 : vector<1xf32> to vector<1x1xf32>
    %271 = vector.shape_cast %270 : vector<1x1xf32> to vector<1x1xf32>
    %272 = vector.broadcast %271 : vector<1x1xf32> to vector<2x1xf32>
    %273 = vector.extract_strided_slice %267 {offsets = [2, 0], sizes = [2, 1], strides = [1, 1]} : vector<16x1xf32> to vector<2x1xf32>
    %cst_157 = arith.constant dense<0.000000e+00> : vector<1xf32>
    %274 = vector.multi_reduction <add>, %273, %cst_157 [0] : vector<2x1xf32> to vector<1xf32>
    %275 = vector.shape_cast %274 : vector<1xf32> to vector<1x1xf32>
    %276 = vector.shape_cast %275 : vector<1x1xf32> to vector<1x1xf32>
    %277 = vector.broadcast %276 : vector<1x1xf32> to vector<2x1xf32>
    %278 = vector.extract_strided_slice %267 {offsets = [4, 0], sizes = [2, 1], strides = [1, 1]} : vector<16x1xf32> to vector<2x1xf32>
    %cst_158 = arith.constant dense<0.000000e+00> : vector<1xf32>
    %279 = vector.multi_reduction <add>, %278, %cst_158 [0] : vector<2x1xf32> to vector<1xf32>
    %280 = vector.shape_cast %279 : vector<1xf32> to vector<1x1xf32>
    %281 = vector.shape_cast %280 : vector<1x1xf32> to vector<1x1xf32>
    %282 = vector.broadcast %281 : vector<1x1xf32> to vector<2x1xf32>
    %283 = vector.extract_strided_slice %267 {offsets = [6, 0], sizes = [2, 1], strides = [1, 1]} : vector<16x1xf32> to vector<2x1xf32>
    %cst_159 = arith.constant dense<0.000000e+00> : vector<1xf32>
    %284 = vector.multi_reduction <add>, %283, %cst_159 [0] : vector<2x1xf32> to vector<1xf32>
    %285 = vector.shape_cast %284 : vector<1xf32> to vector<1x1xf32>
    %286 = vector.shape_cast %285 : vector<1x1xf32> to vector<1x1xf32>
    %287 = vector.broadcast %286 : vector<1x1xf32> to vector<2x1xf32>
    %288 = vector.extract_strided_slice %267 {offsets = [8, 0], sizes = [2, 1], strides = [1, 1]} : vector<16x1xf32> to vector<2x1xf32>
    %cst_160 = arith.constant dense<0.000000e+00> : vector<1xf32>
    %289 = vector.multi_reduction <add>, %288, %cst_160 [0] : vector<2x1xf32> to vector<1xf32>
    %290 = vector.shape_cast %289 : vector<1xf32> to vector<1x1xf32>
    %291 = vector.shape_cast %290 : vector<1x1xf32> to vector<1x1xf32>
    %292 = vector.broadcast %291 : vector<1x1xf32> to vector<2x1xf32>
    %293 = vector.extract_strided_slice %267 {offsets = [10, 0], sizes = [2, 1], strides = [1, 1]} : vector<16x1xf32> to vector<2x1xf32>
    %cst_161 = arith.constant dense<0.000000e+00> : vector<1xf32>
    %294 = vector.multi_reduction <add>, %293, %cst_161 [0] : vector<2x1xf32> to vector<1xf32>
    %295 = vector.shape_cast %294 : vector<1xf32> to vector<1x1xf32>
    %296 = vector.shape_cast %295 : vector<1x1xf32> to vector<1x1xf32>
    %297 = vector.broadcast %296 : vector<1x1xf32> to vector<2x1xf32>
    %298 = vector.extract_strided_slice %267 {offsets = [12, 0], sizes = [2, 1], strides = [1, 1]} : vector<16x1xf32> to vector<2x1xf32>
    %cst_162 = arith.constant dense<0.000000e+00> : vector<1xf32>
    %299 = vector.multi_reduction <add>, %298, %cst_162 [0] : vector<2x1xf32> to vector<1xf32>
    %300 = vector.shape_cast %299 : vector<1xf32> to vector<1x1xf32>
    %301 = vector.shape_cast %300 : vector<1x1xf32> to vector<1x1xf32>
    %302 = vector.broadcast %301 : vector<1x1xf32> to vector<2x1xf32>
    %303 = vector.extract_strided_slice %267 {offsets = [14, 0], sizes = [2, 1], strides = [1, 1]} : vector<16x1xf32> to vector<2x1xf32>
    %cst_163 = arith.constant dense<0.000000e+00> : vector<1xf32>
    %304 = vector.multi_reduction <add>, %303, %cst_163 [0] : vector<2x1xf32> to vector<1xf32>
    %305 = vector.shape_cast %304 : vector<1xf32> to vector<1x1xf32>
    %306 = vector.shape_cast %305 : vector<1x1xf32> to vector<1x1xf32>
    %307 = vector.broadcast %306 : vector<1x1xf32> to vector<2x1xf32>
    %308 = tpu.concatenate %272, %277, %282, %287, %292, %297, %302, %307 in 0 : vector<2x1xf32>, vector<2x1xf32>, vector<2x1xf32>, vector<2x1xf32>, vector<2x1xf32>, vector<2x1xf32>, vector<2x1xf32>, vector<2x1xf32> -> vector<16x1xf32>
    %cst_164 = arith.constant 0.001953125 : f32
    %309 = vector.broadcast %cst_164 : f32 to vector<16x1xf32>
    %310 = arith.mulf %308, %309 : vector<16x1xf32>
    %311 = vector.broadcast %310 : vector<16x1xf32> to vector<16x256xf32>
    %312 = arith.subf %263, %311 : vector<16x256xf32>
    %313 = arith.mulf %312, %312 : vector<16x256xf32>
    %cst_165 = arith.constant dense<0.000000e+00> : vector<16xf32>
    %314 = vector.multi_reduction <add>, %313, %cst_165 [1] : vector<16x256xf32> to vector<16xf32>
    %315 = vector.shape_cast %314 : vector<16xf32> to vector<16x1xf32>
    %316 = vector.extract_strided_slice %315 {offsets = [0, 0], sizes = [2, 1], strides = [1, 1]} : vector<16x1xf32> to vector<2x1xf32>
    %cst_166 = arith.constant dense<0.000000e+00> : vector<1xf32>
    %317 = vector.multi_reduction <add>, %316, %cst_166 [0] : vector<2x1xf32> to vector<1xf32>
    %318 = vector.shape_cast %317 : vector<1xf32> to vector<1x1xf32>
    %319 = vector.shape_cast %318 : vector<1x1xf32> to vector<1x1xf32>
    %320 = vector.broadcast %319 : vector<1x1xf32> to vector<2x1xf32>
    %321 = vector.extract_strided_slice %315 {offsets = [2, 0], sizes = [2, 1], strides = [1, 1]} : vector<16x1xf32> to vector<2x1xf32>
    %cst_167 = arith.constant dense<0.000000e+00> : vector<1xf32>
    %322 = vector.multi_reduction <add>, %321, %cst_167 [0] : vector<2x1xf32> to vector<1xf32>
    %323 = vector.shape_cast %322 : vector<1xf32> to vector<1x1xf32>
    %324 = vector.shape_cast %323 : vector<1x1xf32> to vector<1x1xf32>
    %325 = vector.broadcast %324 : vector<1x1xf32> to vector<2x1xf32>
    %326 = vector.extract_strided_slice %315 {offsets = [4, 0], sizes = [2, 1], strides = [1, 1]} : vector<16x1xf32> to vector<2x1xf32>
    %cst_168 = arith.constant dense<0.000000e+00> : vector<1xf32>
    %327 = vector.multi_reduction <add>, %326, %cst_168 [0] : vector<2x1xf32> to vector<1xf32>
    %328 = vector.shape_cast %327 : vector<1xf32> to vector<1x1xf32>
    %329 = vector.shape_cast %328 : vector<1x1xf32> to vector<1x1xf32>
    %330 = vector.broadcast %329 : vector<1x1xf32> to vector<2x1xf32>
    %331 = vector.extract_strided_slice %315 {offsets = [6, 0], sizes = [2, 1], strides = [1, 1]} : vector<16x1xf32> to vector<2x1xf32>
    %cst_169 = arith.constant dense<0.000000e+00> : vector<1xf32>
    %332 = vector.multi_reduction <add>, %331, %cst_169 [0] : vector<2x1xf32> to vector<1xf32>
    %333 = vector.shape_cast %332 : vector<1xf32> to vector<1x1xf32>
    %334 = vector.shape_cast %333 : vector<1x1xf32> to vector<1x1xf32>
    %335 = vector.broadcast %334 : vector<1x1xf32> to vector<2x1xf32>
    %336 = vector.extract_strided_slice %315 {offsets = [8, 0], sizes = [2, 1], strides = [1, 1]} : vector<16x1xf32> to vector<2x1xf32>
    %cst_170 = arith.constant dense<0.000000e+00> : vector<1xf32>
    %337 = vector.multi_reduction <add>, %336, %cst_170 [0] : vector<2x1xf32> to vector<1xf32>
    %338 = vector.shape_cast %337 : vector<1xf32> to vector<1x1xf32>
    %339 = vector.shape_cast %338 : vector<1x1xf32> to vector<1x1xf32>
    %340 = vector.broadcast %339 : vector<1x1xf32> to vector<2x1xf32>
    %341 = vector.extract_strided_slice %315 {offsets = [10, 0], sizes = [2, 1], strides = [1, 1]} : vector<16x1xf32> to vector<2x1xf32>
    %cst_171 = arith.constant dense<0.000000e+00> : vector<1xf32>
    %342 = vector.multi_reduction <add>, %341, %cst_171 [0] : vector<2x1xf32> to vector<1xf32>
    %343 = vector.shape_cast %342 : vector<1xf32> to vector<1x1xf32>
    %344 = vector.shape_cast %343 : vector<1x1xf32> to vector<1x1xf32>
    %345 = vector.broadcast %344 : vector<1x1xf32> to vector<2x1xf32>
    %346 = vector.extract_strided_slice %315 {offsets = [12, 0], sizes = [2, 1], strides = [1, 1]} : vector<16x1xf32> to vector<2x1xf32>
    %cst_172 = arith.constant dense<0.000000e+00> : vector<1xf32>
    %347 = vector.multi_reduction <add>, %346, %cst_172 [0] : vector<2x1xf32> to vector<1xf32>
    %348 = vector.shape_cast %347 : vector<1xf32> to vector<1x1xf32>
    %349 = vector.shape_cast %348 : vector<1x1xf32> to vector<1x1xf32>
    %350 = vector.broadcast %349 : vector<1x1xf32> to vector<2x1xf32>
    %351 = vector.extract_strided_slice %315 {offsets = [14, 0], sizes = [2, 1], strides = [1, 1]} : vector<16x1xf32> to vector<2x1xf32>
    %cst_173 = arith.constant dense<0.000000e+00> : vector<1xf32>
    %352 = vector.multi_reduction <add>, %351, %cst_173 [0] : vector<2x1xf32> to vector<1xf32>
    %353 = vector.shape_cast %352 : vector<1xf32> to vector<1x1xf32>
    %354 = vector.shape_cast %353 : vector<1x1xf32> to vector<1x1xf32>
    %355 = vector.broadcast %354 : vector<1x1xf32> to vector<2x1xf32>
    %356 = tpu.concatenate %320, %325, %330, %335, %340, %345, %350, %355 in 0 : vector<2x1xf32>, vector<2x1xf32>, vector<2x1xf32>, vector<2x1xf32>, vector<2x1xf32>, vector<2x1xf32>, vector<2x1xf32>, vector<2x1xf32> -> vector<16x1xf32>
    %cst_174 = arith.constant 0.001953125 : f32
    %357 = vector.broadcast %cst_174 : f32 to vector<16x1xf32>
    %358 = arith.mulf %356, %357 : vector<16x1xf32>
    %cst_175 = arith.constant 9.99999974E-6 : f32
    %359 = vector.broadcast %cst_175 : f32 to vector<16x1xf32>
    %360 = arith.addf %358, %359 : vector<16x1xf32>
    %361 = math.rsqrt %360 : vector<16x1xf32>
    %362 = vector.broadcast %361 : vector<16x1xf32> to vector<16x256xf32>
    %363 = arith.mulf %312, %362 : vector<16x256xf32>
    %364 = vector.broadcast %264 : vector<16x1xf32> to vector<16x256xf32>
    %365 = arith.mulf %363, %364 : vector<16x256xf32>
    %366 = vector.broadcast %265 : vector<16x1xf32> to vector<16x256xf32>
    %367 = arith.addf %365, %366 : vector<16x256xf32>
    %cst_176 = arith.constant 0.000000e+00 : f32
    %368 = vector.broadcast %cst_176 : f32 to vector<16x256xf32>
    %369 = arith.maximumf %367, %368 : vector<16x256xf32>
    %c0_177 = arith.constant 0 : index
    %c0_178 = arith.constant 0 : index
    %c0_179 = arith.constant 0 : index
    %370 = vector.load %arg11[%c0_177, %c0_178, %c0_179] : memref<1x16x256xf32, #tpu.memory_space<vmem>>, vector<1x16x256xf32>
    %371 = vector.shape_cast %370 : vector<1x16x256xf32> to vector<16x256xf32>
    %372 = vector.shape_cast %369 : vector<16x256xf32> to vector<1x16x256xf32>
    tpu.vector_store %arg11[%c0_177, %c0_178, %c0_179], %372 {strides = array<i32>} : memref<1x16x256xf32, #tpu.memory_space<vmem>>, vector<1x16x256xf32>,
    return
  }
  func.func @transform_0(%arg0: i32) -> (i32, i32, i32) {
    %c0_i32 = arith.constant 0 : i32
    %c0_i32_0 = arith.constant 0 : i32
    %c0_i32_1 = arith.constant 0 : i32
    return %arg0, %c0_i32, %c0_i32_0 : i32, i32, i32
  }
  func.func @transform_1(%arg0: i32) -> (i32, i32, i32) {
    %c0_i32 = arith.constant 0 : i32
    %c0_i32_0 = arith.constant 0 : i32
    %c0_i32_1 = arith.constant 0 : i32
    %c0_i32_2 = arith.constant 0 : i32
    return %c0_i32, %c0_i32_0, %c0_i32_1 : i32, i32, i32
  }
  func.func @transform_2(%arg0: i32) -> (i32, i32, i32) {
    %c0_i32 = arith.constant 0 : i32
    %c0_i32_0 = arith.constant 0 : i32
    %c0_i32_1 = arith.constant 0 : i32
    %c0_i32_2 = arith.constant 0 : i32
    return %c0_i32, %c0_i32_0, %c0_i32_1 : i32, i32, i32
  }
  func.func @transform_3(%arg0: i32) -> (i32, i32) {
    %c0_i32 = arith.constant 0 : i32
    %c0_i32_0 = arith.constant 0 : i32
    %c0_i32_1 = arith.constant 0 : i32
    return %c0_i32, %c0_i32_0 : i32, i32
  }
  func.func @transform_4(%arg0: i32) -> (i32, i32) {
    %c0_i32 = arith.constant 0 : i32
    %c0_i32_0 = arith.constant 0 : i32
    %c0_i32_1 = arith.constant 0 : i32
    return %c0_i32, %c0_i32_0 : i32, i32
  }
  func.func @transform_5(%arg0: i32) -> (i32, i32) {
    %c0_i32 = arith.constant 0 : i32
    %c0_i32_0 = arith.constant 0 : i32
    %c0_i32_1 = arith.constant 0 : i32
    return %c0_i32, %c0_i32_0 : i32, i32
  }
  func.func @transform_6(%arg0: i32) -> (i32, i32, i32) {
    %c0_i32 = arith.constant 0 : i32
    %c0_i32_0 = arith.constant 0 : i32
    %c0_i32_1 = arith.constant 0 : i32
    %c0_i32_2 = arith.constant 0 : i32
    return %c0_i32, %c0_i32_0, %c0_i32_1 : i32, i32, i32
  }
  func.func @transform_7(%arg0: i32) -> (i32, i32) {
    %c0_i32 = arith.constant 0 : i32
    %c0_i32_0 = arith.constant 0 : i32
    %c0_i32_1 = arith.constant 0 : i32
    return %c0_i32, %c0_i32_0 : i32, i32
  }
  func.func @transform_8(%arg0: i32) -> (i32, i32) {
    %c0_i32 = arith.constant 0 : i32
    %c0_i32_0 = arith.constant 0 : i32
    %c0_i32_1 = arith.constant 0 : i32
    return %c0_i32, %c0_i32_0 : i32, i32
  }
  func.func @transform_9(%arg0: i32) -> (i32, i32) {
    %c0_i32 = arith.constant 0 : i32
    %c0_i32_0 = arith.constant 0 : i32
    %c0_i32_1 = arith.constant 0 : i32
    return %c0_i32, %c0_i32_0 : i32, i32
  }
  func.func @transform_10(%arg0: i32) -> (i32, i32, i32) {
    %c0_i32 = arith.constant 0 : i32
    %c0_i32_0 = arith.constant 0 : i32
    %c0_i32_1 = arith.constant 0 : i32
    return %arg0, %c0_i32, %c0_i32_0 : i32, i32, i32
  }
}

</mosaic_0001>

<llo_original>
// kernel: tpu_custom_call.1
$region0: #{tpu_custom_call.1}
  #allocation0 [shape = 'u32[]', space=smem, size = 0x4, offset = 0x4, fixed_abs, tag = 'smem constant byte address 0x4 - core index']
  #allocation1 [shape = 'u32[144,128]{1,0:T(1,128)}', space=vmem, size = 0x12000, scoped, tag = 'internal scratch']
  %s0 = inlined_call_operand.vmem [shape: f32[2,4,256], index: 0, kind: input, shape index: {}]
  %s1 = inlined_call_operand.vmem [shape: f32[9,1,256], index: 1, kind: input, shape index: {}]
  %s2 = inlined_call_operand.vmem [shape: f32[9,16,4], index: 2, kind: input, shape index: {}]
  %s3 = inlined_call_operand.vmem [shape: f32[16,1], index: 3, kind: input, shape index: {}]
  %s4 = inlined_call_operand.vmem [shape: f32[16,1], index: 4, kind: input, shape index: {}]
  %s5 = inlined_call_operand.vmem [shape: f32[16,1], index: 5, kind: input, shape index: {}]
  %s6 = inlined_call_operand.vmem [shape: f32[9,16,16], index: 6, kind: input, shape index: {}]
  %s7 = inlined_call_operand.vmem [shape: f32[16,1], index: 7, kind: input, shape index: {}]
  %s8 = inlined_call_operand.vmem [shape: f32[16,1], index: 8, kind: input, shape index: {}]
  %s9 = inlined_call_operand.vmem [shape: f32[16,1], index: 9, kind: input, shape index: {}]
  %s10 = inlined_call_operand.hbm [shape: f32[2,16,256], index: 10, kind: output, shape index: {}]
  %s11 = sld [smem:[#allocation0]]
  $region73: #{tpu_custom_call.1} parent=0
    _
  %s13 = ssub.s32 1, %s11
  %s14 = scalar_select 0, %s13, %s11
  $region1: #{tpu_custom_call.1} parent=0
    #allocation2 [shape = 'u8[32768]{0}', space=vmem, size = 0x8000, scoped, tag = 'output window, operand 0']
    #allocation3 [shape = 's32[2]{0}', space=sflag, size = 0x8, scoped, tag = 'scoped memory for tpu_custom_call.1']
    %15 = vsyncpa [#allocation3], 0
    %s16 = scalar_lea.sflag [#allocation3], 1
    %17 = vsyncpa %s16, 0
    loop: start=0, step=1, limit=4
    $region2: #{tpu_custom_call.1} parent=1 // loop_pre_header
      _
    $region3: #{tpu_custom_call.1} parent=1 // loop_header
      %s19 = sphi 0, %s23
      %p20 = scmp.ge.s32.totalorder %s19, 4
      %s29 = sphi 0, %s31
      %s32 = sphi 0, %s29
      %s33 = sphi 0, %s32
      %s49 = sphi 0, %s33
      %s53 = sphi 0, %s53
      %s55 = sphi 0, %s53
      %s56 = sphi 0, %s55
      %s70 = sphi 0, %s56
      %s74 = sphi 0, %s74
      %s76 = sphi 0, %s74
      %s77 = sphi 0, %s76
      %s91 = sphi 0, %s77
      %s95 = sphi 0, %s95
      %s97 = sphi 0, %s95
      %s98 = sphi 0, %s97
      %s112 = sphi 0, %s98
      %s116 = sphi 0, %s116
      %s118 = sphi 0, %s116
      %s119 = sphi 0, %s118
      %s133 = sphi 0, %s119
      %s137 = sphi 0, %s137
      %s139 = sphi 0, %s137
      %s140 = sphi 0, %s139
      %s154 = sphi 0, %s140
      %s158 = sphi 0, %s158
      %s160 = sphi 0, %s158
      %s161 = sphi 0, %s160
      %s175 = sphi 0, %s161
      %s179 = sphi 0, %s179
      %s181 = sphi 0, %s179
      %s182 = sphi 0, %s181
      %s196 = sphi 0, %s182
      %s200 = sphi 0, %s200
      %s202 = sphi 0, %s200
      %s203 = sphi 0, %s202
      %s217 = sphi 0, %s203
      %s221 = sphi 0, %s221
      %s223 = sphi 0, %s221
      %s224 = sphi 0, %s223
      %s238 = sphi 0, %s224
      %s244 = sphi 0, %s246
      %s247 = sphi 0, %s244
      %s248 = sphi 0, %s247
      %s264 = sphi 0, %s248
    $region4: #{tpu_custom_call.1} parent=1 // loop_header_branch
      %22 = sbr.rel (%p20) target = $region8
    $region5: #{tpu_custom_call.1} parent=1 // loop_body
      %s24 = ssub.s32 %s19, 1
      %s25 = ssub.s32 %s19, 2
      %s26 = sadd.s32 %s19, 1
      %s27 = ssub.s32 %s19, %s26
      %p28 = scmp.eq.s32.totalorder %s27, 0
      %s30 = sadd.s32 %s29, 1
      %s31 = scalar_select %p28, %s29, %s30
      %p34 = pneg %p28
      %p35 = scmp.eq.s32.totalorder %s19, 1
      %p36 = por %p34, %p35
      %p37 = scmp.ne.s32.totalorder %s29, %s32
      %p38 = scmp.eq.s32.totalorder %s19, 0
      %p39 = por %p37, %p38
      %p40 = scmp.ne.s32.totalorder %s29, %s32
      %p41 = scmp.eq.s32.totalorder %s24, 1
      %p42 = por %p40, %p41
      %p43 = scmp.ne.s32.totalorder %s32, %s33
      %p44 = scmp.eq.s32.totalorder %s24, 0
      %p45 = por %p43, %p44
      %p46 = scmp.ne.s32.totalorder %s32, %s33
      %p47 = scmp.eq.s32.totalorder %s25, 1
      %p48 = por %p46, %p47
      %p50 = scmp.ne.s32.totalorder %s33, %s49
      %p51 = scmp.eq.s32.totalorder %s25, 0
      %p52 = por %p50, %p51
      %s54 = sadd.s32 %s53, 1
      %p57 = scmp.eq.s32.totalorder %s19, 1
      %p58 = scmp.ne.s32.totalorder %s53, %s55
      %p59 = scmp.eq.s32.totalorder %s19, 0
      %p60 = por %p58, %p59
      %p61 = scmp.ne.s32.totalorder %s53, %s55
      %p62 = scmp.eq.s32.totalorder %s24, 1
      %p63 = por %p61, %p62
      %p64 = scmp.ne.s32.totalorder %s55, %s56
      %p65 = scmp.eq.s32.totalorder %s24, 0
      %p66 = por %p64, %p65
      %p67 = scmp.ne.s32.totalorder %s55, %s56
      %p68 = scmp.eq.s32.totalorder %s25, 1
      %p69 = por %p67, %p68
      %p71 = scmp.ne.s32.totalorder %s56, %s70
      %p72 = scmp.eq.s32.totalorder %s25, 0
      %p73 = por %p71, %p72
      %s75 = sadd.s32 %s74, 1
      %p78 = scmp.eq.s32.totalorder %s19, 1
      %p79 = scmp.ne.s32.totalorder %s74, %s76
      %p80 = scmp.eq.s32.totalorder %s19, 0
      %p81 = por %p79, %p80
      %p82 = scmp.ne.s32.totalorder %s74, %s76
      %p83 = scmp.eq.s32.totalorder %s24, 1
      %p84 = por %p82, %p83
      %p85 = scmp.ne.s32.totalorder %s76, %s77
      %p86 = scmp.eq.s32.totalorder %s24, 0
      %p87 = por %p85, %p86
      %p88 = scmp.ne.s32.totalorder %s76, %s77
      %p89 = scmp.eq.s32.totalorder %s25, 1
      %p90 = por %p88, %p89
      %p92 = scmp.ne.s32.totalorder %s77, %s91
      %p93 = scmp.eq.s32.totalorder %s25, 0
      %p94 = por %p92, %p93
      %s96 = sadd.s32 %s95, 1
      %p99 = scmp.eq.s32.totalorder %s19, 1
      %p100 = scmp.ne.s32.totalorder %s95, %s97
      %p101 = scmp.eq.s32.totalorder %s19, 0
      %p102 = por %p100, %p101
      %p103 = scmp.ne.s32.totalorder %s95, %s97
      %p104 = scmp.eq.s32.totalorder %s24, 1
      %p105 = por %p103, %p104
      %p106 = scmp.ne.s32.totalorder %s97, %s98
      %p107 = scmp.eq.s32.totalorder %s24, 0
      %p108 = por %p106, %p107
      %p109 = scmp.ne.s32.totalorder %s97, %s98
      %p110 = scmp.eq.s32.totalorder %s25, 1
      %p111 = por %p109, %p110
      %p113 = scmp.ne.s32.totalorder %s98, %s112
      %p114 = scmp.eq.s32.totalorder %s25, 0
      %p115 = por %p113, %p114
      %s117 = sadd.s32 %s116, 1
      %p120 = scmp.eq.s32.totalorder %s19, 1
      %p121 = scmp.ne.s32.totalorder %s116, %s118
      %p122 = scmp.eq.s32.totalorder %s19, 0
      %p123 = por %p121, %p122
      %p124 = scmp.ne.s32.totalorder %s116, %s118
      %p125 = scmp.eq.s32.totalorder %s24, 1
      %p126 = por %p124, %p125
      %p127 = scmp.ne.s32.totalorder %s118, %s119
      %p128 = scmp.eq.s32.totalorder %s24, 0
      %p129 = por %p127, %p128
      %p130 = scmp.ne.s32.totalorder %s118, %s119
      %p131 = scmp.eq.s32.totalorder %s25, 1
      %p132 = por %p130, %p131
      %p134 = scmp.ne.s32.totalorder %s119, %s133
      %p135 = scmp.eq.s32.totalorder %s25, 0
      %p136 = por %p134, %p135
      %s138 = sadd.s32 %s137, 1
      %p141 = scmp.eq.s32.totalorder %s19, 1
      %p142 = scmp.ne.s32.totalorder %s137, %s139
      %p143 = scmp.eq.s32.totalorder %s19, 0
      %p144 = por %p142, %p143
      %p145 = scmp.ne.s32.totalorder %s137, %s139
      %p146 = scmp.eq.s32.totalorder %s24, 1
      %p147 = por %p145, %p146
      %p148 = scmp.ne.s32.totalorder %s139, %s140
      %p149 = scmp.eq.s32.totalorder %s24, 0
      %p150 = por %p148, %p149
      %p151 = scmp.ne.s32.totalorder %s139, %s140
      %p152 = scmp.eq.s32.totalorder %s25, 1
      %p153 = por %p151, %p152
      %p155 = scmp.ne.s32.totalorder %s140, %s154
      %p156 = scmp.eq.s32.totalorder %s25, 0
      %p157 = por %p155, %p156
      %s159 = sadd.s32 %s158, 1
      %p162 = scmp.eq.s32.totalorder %s19, 1
      %p163 = scmp.ne.s32.totalorder %s158, %s160
      %p164 = scmp.eq.s32.totalorder %s19, 0
      %p165 = por %p163, %p164
      %p166 = scmp.ne.s32.totalorder %s158, %s160
      %p167 = scmp.eq.s32.totalorder %s24, 1
      %p168 = por %p166, %p167
      %p169 = scmp.ne.s32.totalorder %s160, %s161
      %p170 = scmp.eq.s32.totalorder %s24, 0
      %p171 = por %p169, %p170
      %p172 = scmp.ne.s32.totalorder %s160, %s161
      %p173 = scmp.eq.s32.totalorder %s25, 1
      %p174 = por %p172, %p173
      %p176 = scmp.ne.s32.totalorder %s161, %s175
      %p177 = scmp.eq.s32.totalorder %s25, 0
      %p178 = por %p176, %p177
      %s180 = sadd.s32 %s179, 1
      %p183 = scmp.eq.s32.totalorder %s19, 1
      %p184 = scmp.ne.s32.totalorder %s179, %s181
      %p185 = scmp.eq.s32.totalorder %s19, 0
      %p186 = por %p184, %p185
      %p187 = scmp.ne.s32.totalorder %s179, %s181
      %p188 = scmp.eq.s32.totalorder %s24, 1
      %p189 = por %p187, %p188
      %p190 = scmp.ne.s32.totalorder %s181, %s182
      %p191 = scmp.eq.s32.totalorder %s24, 0
      %p192 = por %p190, %p191
      %p193 = scmp.ne.s32.totalorder %s181, %s182
      %p194 = scmp.eq.s32.totalorder %s25, 1
      %p195 = por %p193, %p194
      %p197 = scmp.ne.s32.totalorder %s182, %s196
      %p198 = scmp.eq.s32.totalorder %s25, 0
      %p199 = por %p197, %p198
      %s201 = sadd.s32 %s200, 1
      %p204 = scmp.eq.s32.totalorder %s19, 1
      %p205 = scmp.ne.s32.totalorder %s200, %s202
      %p206 = scmp.eq.s32.totalorder %s19, 0
      %p207 = por %p205, %p206
      %p208 = scmp.ne.s32.totalorder %s200, %s202
      %p209 = scmp.eq.s32.totalorder %s24, 1
      %p210 = por %p208, %p209
      %p211 = scmp.ne.s32.totalorder %s202, %s203
      %p212 = scmp.eq.s32.totalorder %s24, 0
      %p213 = por %p211, %p212
      %p214 = scmp.ne.s32.totalorder %s202, %s203
      %p215 = scmp.eq.s32.totalorder %s25, 1
      %p216 = por %p214, %p215
      %p218 = scmp.ne.s32.totalorder %s203, %s217
      %p219 = scmp.eq.s32.totalorder %s25, 0
      %p220 = por %p218, %p219
      %s222 = sadd.s32 %s221, 1
      %p225 = scmp.eq.s32.totalorder %s19, 1
      %p226 = scmp.ne.s32.totalorder %s221, %s223
      %p227 = scmp.eq.s32.totalorder %s19, 0
      %p228 = por %p226, %p227
      %p229 = scmp.ne.s32.totalorder %s221, %s223
      %p230 = scmp.eq.s32.totalorder %s24, 1
      %p231 = por %p229, %p230
      %p232 = scmp.ne.s32.totalorder %s223, %s224
      %p233 = scmp.eq.s32.totalorder %s24, 0
      %p234 = por %p232, %p233
      %p235 = scmp.ne.s32.totalorder %s223, %s224
      %p236 = scmp.eq.s32.totalorder %s25, 1
      %p237 = por %p235, %p236
      %p239 = scmp.ne.s32.totalorder %s224, %s238
      %p240 = scmp.eq.s32.totalorder %s25, 0
      %p241 = por %p239, %p240
      %s242 = ssub.s32 %s19, %s26
      %p243 = scmp.eq.s32.totalorder %s242, 0
      %s245 = sadd.s32 %s244, 1
      %s246 = scalar_select %p243, %s244, %s245
      %p249 = pneg %p243
      %p250 = scmp.eq.s32.totalorder %s19, 1
      %p251 = por %p249, %p250
      %p252 = scmp.ne.s32.totalorder %s244, %s247
      %p253 = scmp.eq.s32.totalorder %s19, 0
      %p254 = por %p252, %p253
      %p255 = scmp.ne.s32.totalorder %s244, %s247
      %p256 = scmp.eq.s32.totalorder %s24, 1
      %p257 = por %p255, %p256
      %p258 = scmp.ne.s32.totalorder %s247, %s248
      %p259 = scmp.eq.s32.totalorder %s24, 0
      %p260 = por %p258, %p259
      %p261 = scmp.ne.s32.totalorder %s247, %s248
      %p262 = scmp.eq.s32.totalorder %s25, 1
      %p263 = por %p261, %p262
      %p265 = scmp.ne.s32.totalorder %s248, %s264
      %p266 = scmp.eq.s32.totalorder %s25, 0
      %p267 = por %p265, %p266
      %p268 = scmp.le.s32.totalorder 1, %s19
      %p269 = scmp.lt.s32.totalorder %s19, 3
      %p270 = pnand %p268, %p269
      %p271 = pneg %p270
      // Predicated region
      $region9: #{tpu_custom_call.1} parent=5 // pred_check
        _
      $region10: #{tpu_custom_call.1} parent=5 // pred_check_branch
        %273 = sbr.rel (%p270) target = $region12
      $region11: #{tpu_custom_call.1} parent=5 // pred_region
        %s274 = ssub.s32 %s19, 1
        // Predicated region
        $region13: #{tpu_custom_call.1} parent=11 // pred_check
          %p275 = pneg %p66
        $region14: #{tpu_custom_call.1} parent=11 // pred_check_branch
          %277 = sbr.rel (%p275) target = $region16
        $region15: #{tpu_custom_call.1} parent=11 // pred_region
          _
        $region16: #{tpu_custom_call.1} parent=11 // pred_fallthru
          _
        // Predicated region
        $region17: #{tpu_custom_call.1} parent=11 // pred_check
          %p278 = pneg %p87
        $region18: #{tpu_custom_call.1} parent=11 // pred_check_branch
          %280 = sbr.rel (%p278) target = $region20
        $region19: #{tpu_custom_call.1} parent=11 // pred_region
          _
        $region20: #{tpu_custom_call.1} parent=11 // pred_fallthru
          _
        // Predicated region
        $region21: #{tpu_custom_call.1} parent=11 // pred_check
          %p281 = pneg %p108
        $region22: #{tpu_custom_call.1} parent=11 // pred_check_branch
          %283 = sbr.rel (%p281) target = $region24
        $region23: #{tpu_custom_call.1} parent=11 // pred_region
          _
        $region24: #{tpu_custom_call.1} parent=11 // pred_fallthru
          _
        // Predicated region
        $region25: #{tpu_custom_call.1} parent=11 // pred_check
          %p284 = pneg %p129
        $region26: #{tpu_custom_call.1} parent=11 // pred_check_branch
          %286 = sbr.rel (%p284) target = $region28
        $region27: #{tpu_custom_call.1} parent=11 // pred_region
          _
        $region28: #{tpu_custom_call.1} parent=11 // pred_fallthru
          _
        // Predicated region
        $region29: #{tpu_custom_call.1} parent=11 // pred_check
          %p287 = pneg %p150
        $region30: #{tpu_custom_call.1} parent=11 // pred_check_branch
          %289 = sbr.rel (%p287) target = $region32
        $region31: #{tpu_custom_call.1} parent=11 // pred_region
          _
        $region32: #{tpu_custom_call.1} parent=11 // pred_fallthru
          _
        // Predicated region
        $region33: #{tpu_custom_call.1} parent=11 // pred_check
          %p290 = pneg %p171
        $region34: #{tpu_custom_call.1} parent=11 // pred_check_branch
          %292 = sbr.rel (%p290) target = $region36
        $region35: #{tpu_custom_call.1} parent=11 // pred_region
          _
        $region36: #{tpu_custom_call.1} parent=11 // pred_fallthru
          _
        // Predicated region
        $region37: #{tpu_custom_call.1} parent=11 // pred_check
          %p293 = pneg %p192
        $region38: #{tpu_custom_call.1} parent=11 // pred_check_branch
          %295 = sbr.rel (%p293) target = $region40
        $region39: #{tpu_custom_call.1} parent=11 // pred_region
          _
        $region40: #{tpu_custom_call.1} parent=11 // pred_fallthru
          _
        // Predicated region
        $region41: #{tpu_custom_call.1} parent=11 // pred_check
          %p296 = pneg %p213
        $region42: #{tpu_custom_call.1} parent=11 // pred_check_branch
          %298 = sbr.rel (%p296) target = $region44
        $region43: #{tpu_custom_call.1} parent=11 // pred_region
          _
        $region44: #{tpu_custom_call.1} parent=11 // pred_fallthru
          _
        // Predicated region
        $region45: #{tpu_custom_call.1} parent=11 // pred_check
          %p299 = pneg %p234
        $region46: #{tpu_custom_call.1} parent=11 // pred_check_branch
          %301 = sbr.rel (%p299) target = $region48
        $region47: #{tpu_custom_call.1} parent=11 // pred_region
          _
        $region48: #{tpu_custom_call.1} parent=11 // pred_fallthru
          _
      $region12: #{tpu_custom_call.1} parent=5 // pred_fallthru
        _
      %p302 = scmp.lt.s32.totalorder %s19, 2
      // Predicated region
      $region49: #{tpu_custom_call.1} parent=5 // pred_check
        %p303 = pneg %p302
      $region50: #{tpu_custom_call.1} parent=5 // pred_check_branch
        %305 = sbr.rel (%p303) target = $region52
      $region51: #{tpu_custom_call.1} parent=5 // pred_region
        // Predicated region
        $region53: #{tpu_custom_call.1} parent=51 // pred_check
          %p306 = pneg %p39
        $region54: #{tpu_custom_call.1} parent=51 // pred_check_branch
          %308 = sbr.rel (%p306) target = $region56
        $region55: #{tpu_custom_call.1} parent=51 // pred_region
          %p309 = scmp.lt.s32.totalorder %s19, 1
          %s310 = scalar_select %p309, %s19, 1
          %s311 = smul.addr %s310, 2
          %s312 = smul.addr %s311, 4
          %s313 = scalar_lea.vmem %s0, %s312
        $region56: #{tpu_custom_call.1} parent=51 // pred_fallthru
          _
      $region52: #{tpu_custom_call.1} parent=5 // pred_fallthru
        _
      %p314 = scmp.le.s32.totalorder 1, %s19
      %p315 = scmp.lt.s32.totalorder %s19, 3
      %p316 = pnand %p314, %p315
      %p317 = pneg %p316
      // Predicated region
      $region57: #{tpu_custom_call.1} parent=5 // pred_check
        _
      $region58: #{tpu_custom_call.1} parent=5 // pred_check_branch
        %319 = sbr.rel (%p316) target = $region60
      $region59: #{tpu_custom_call.1} parent=5 // pred_region
        %s320 = ssub.s32 %s19, 1
        %p321 = scmp.lt.s32.totalorder %s24, 1
        %s322 = scalar_select %p321, %s24, 1
        %s323 = smul.addr %s322, 2
        %s324 = smul.addr %s323, 4
        %s325 = scalar_lea.vmem %s0, %s324
        %p326 = pneg %p45
        %p327 = pneg %p42
        %p328 = pneg %p66
        %p329 = pneg %p63
        %p330 = pneg %p87
        %p331 = pneg %p84
        %p332 = pneg %p108
        %p333 = pneg %p105
        %p334 = pneg %p129
        %p335 = pneg %p126
        %p336 = pneg %p150
        %p337 = pneg %p147
        %p338 = pneg %p171
        %p339 = pneg %p168
        %p340 = pneg %p192
        %p341 = pneg %p189
        %p342 = pneg %p213
        %p343 = pneg %p210
        %p344 = pneg %p234
        %p345 = pneg %p231
        %p346 = pneg %p260
        %p347 = pneg %p257
        %s348 = sand.u32 %s247, 1
        %s349 = scalar_lea.sflag [#allocation3], %s348
        %s350 = sand.u32 %s247, 1
        %s351 = smul.addr %s350, 32
        %s352 = scalar_lea.vmem [#allocation2], %s351
        %p353 = scmp.lt.s32.totalorder %s24, 1
        %s354 = scalar_select %p353, %s24, 1
        %s355 = smul.addr %s354, 2
        %s356 = smul.addr %s355, 4
        %s357 = scalar_lea.vmem %s0, %s356
        %v358 = vld [vmem:[%s357] sm:$0xff]
        %v360 = vcombine.high %v358, %v358
        %362 = vrot.lane.b32.xlu0 %v358, 17
        %v363 = vpop.permute.xlu0 %362
        %364 = vrot.lane.b32.xlu0 %v360, 17
        %v365 = vpop.permute.xlu0 %364
        %v366 = vlaneseq
        %v367 = vand.u32 %v366, 127
        %vm368 = vcmp.lt.s32.totalorder %v367, 17
        %v369 = vsel %vm368, %v363, %v365
        %v370 = vsel %vm368, %v365, %v363
        %v371 = vld [vmem:[%s1] sm:$0x3]
        %v373 = vlaneseq
        %v374 = vshrl.u32 %v373, 7
        %v375 = vsub.s32 0, %v374
        %v376 = vrot.slane %v371, %v375
        %v377 = vlaneseq
        %v378 = vshrl.u32 %v377, 7
        %v379 = vsub.s32 1, %v378
        %v380 = vrot.slane %v371, %v379
        %v383 = vmul.f32 %v370, %v376
        %v384 = vmul.f32 %v369, %v380
        %v385 = vld [vmem:[%s2] sm:$0xff]
        %v386 = vld [vmem:[%s2 + $0x8] sm:$0xff]
        %387 = vrot.lane.b32.xlu0 %v358, 16
        %v388 = vpop.permute.xlu0 %387
        %389 = vrot.lane.b32.xlu0 %v360, 16
        %v390 = vpop.permute.xlu0 %389
        %vm391 = vcmp.lt.s32.totalorder %v367, 16
        %v392 = vsel %vm391, %v388, %v390
        %v393 = vsel %vm391, %v390, %v388
        %s394 = scalar_lea.vmem %s1, 2
        %v395 = vld [vmem:[%s394] sm:$0x3]
        %v397 = vlaneseq
        %v398 = vshrl.u32 %v397, 7
        %v399 = vsub.s32 0, %v398
        %v400 = vrot.slane %v395, %v399
        %v401 = vlaneseq
        %v402 = vshrl.u32 %v401, 7
        %v403 = vsub.s32 1, %v402
        %v404 = vrot.slane %v395, %v403
        %v407 = vmul.f32 %v393, %v400
        %v408 = vmul.f32 %v392, %v404
        %s409 = scalar_lea.vmem %s2, 16
        %v410 = vld [vmem:[%s409] sm:$0xff]
        %v411 = vld [vmem:[%s409 + $0x8] sm:$0xff]
        %vm412 = vcmask 31744
        %v414 = vsel %vm412, %v410, 0
        %v417 = vsel %vm412, %v411, 0
        %vm419 = vcmask 1043456
        %v421 = vsel %vm419, %v407, 0
        %v424 = vsel %vm419, %v408, 0
        %426 = vmatprep.subr.mxu0 %v424
        %427 = vmatpush1.msra.mxu0 %v421
        %428 = vmatprep.subr.mxu0 0.0
        %429 = vmatpush1.msra.mxu0 0.0
        %430 = vmatprep.subr.mxu0 0.0
        %431 = vmatpush1.msra.mxu0 0.0
        %432 = vmatprep.subr.mxu0 0.0
        %433 = vmatpush1.msra.mxu0 0.0
        %434 = vmatprep.subr.mxu0 0.0
        %435 = vmatpush1.msra.mxu0 0.0
        %436 = vmatprep.subr.mxu0 0.0
        %437 = vmatpush1.msra.mxu0 0.0
        %438 = vmatprep.subr.mxu0 0.0
        %439 = vmatpush1.msra.mxu0 0.0
        %440 = vmatprep.subr.mxu0 0.0
        %441 = vmatpush1.msra.mxu0 0.0
        %442 = vmatprep.subr.mxu0 0.0
        %443 = vmatpush1.msra.mxu0 0.0
        %444 = vmatprep.subr.mxu0 0.0
        %445 = vmatpush1.msra.mxu0 0.0
        %446 = vmatprep.subr.mxu0 0.0
        %447 = vmatpush1.msra.mxu0 0.0
        %448 = vmatprep.subr.mxu0 0.0
        %449 = vmatpush1.msra.mxu0 0.0
        %450 = vmatprep.subr.mxu0 0.0
        %451 = vmatpush1.msra.mxu0 0.0
        %452 = vmatprep.subr.mxu0 0.0
        %453 = vmatpush1.msra.mxu0 0.0
        %454 = vmatprep.subr.mxu0 0.0
        %455 = vmatpush1.msra.mxu0 0.0
        %456 = vmatprep.subr.mxu0 0.0
        %457 = vmatpush1.msra.mxu0 0.0
        %458 = vmatprep.subr.mxu0 0.0
        %459 = vmatpush1.msra.mxu0 0.0
        %460 = vmatprep.subr.mxu0 0.0
        %461 = vmatpush1.msra.mxu0 0.0
        %462 = vmatprep.subr.mxu0 0.0
        %463 = vmatpush1.msra.mxu0 0.0
        %464 = vmatprep.subr.mxu0 0.0
        %465 = vmatpush1.msra.mxu0 0.0
        %466 = vmatprep.subr.mxu0 0.0
        %467 = vmatpush1.msra.mxu0 0.0
        %468 = vmatprep.subr.mxu0 0.0
        %469 = vmatpush1.msra.mxu0 0.0
        %470 = vmatprep.subr.mxu0 0.0
        %471 = vmatpush1.msra.mxu0 0.0
        %472 = vmatprep.subr.mxu0 0.0
        %473 = vmatpush1.msra.mxu0 0.0
        %474 = vmatprep.subr.mxu0 0.0
        %475 = vmatpush1.msra.mxu0 0.0
        %476 = vmatprep.subr.mxu0 0.0
        %477 = vmatpush1.msra.mxu0 0.0
        %478 = vmatprep.subr.mxu0 0.0
        %479 = vmatpush1.msra.mxu0 0.0
        %480 = vmatprep.subr.mxu0 0.0
        %481 = vmatpush1.msra.mxu0 0.0
        %482 = vmatprep.subr.mxu0 0.0
        %483 = vmatpush1.msra.mxu0 0.0
        %484 = vmatprep.subr.mxu0 0.0
        %485 = vmatpush1.msra.mxu0 0.0
        %486 = vmatprep.subr.mxu0 0.0
        %487 = vmatpush1.msra.mxu0 0.0
        %488 = vmatprep.subr.mxu0 0.0
        %489 = vmatpush1.msra.mxu0 0.0
        %490 = vmatprep.mubr.f32.mxu0 0.0
        %491 = vmatmul.mubr.f32.gmra.mrb[0].mxu0 %v414
        %v492 = vpop.f32.mrb[0].mxu0
        %v493 = vadd.f32 0.0, %v492
        %v494 = vpop.f32.mrb[0].mxu0
        %v495 = vadd.f32 0.0, %v494
        %496 = vmatprep.mubr.f32.mxu0 0.0
        %497 = vmatmul.mubr.f32.gmra.mrb[0].mxu0 %v417
        %v498 = vpop.f32.mrb[0].mxu0
        %v499 = vadd.f32 0.0, %v498
        %v500 = vpop.f32.mrb[0].mxu0
        %v501 = vadd.f32 0.0, %v500
        %502 = vdwg.mxu0
        %v504 = vsel %vm412, %v385, 0
        %v507 = vsel %vm412, %v386, 0
        %v510 = vsel %vm419, %v383, 0
        %v513 = vsel %vm419, %v384, 0
        %515 = vmatprep.subr.mxu0 %v513
        %516 = vmatpush1.msra.mxu0 %v510
        %517 = vmatprep.subr.mxu0 0.0
        %518 = vmatpush1.msra.mxu0 0.0
        %519 = vmatprep.subr.mxu0 0.0
        %520 = vmatpush1.msra.mxu0 0.0
        %521 = vmatprep.subr.mxu0 0.0
        %522 = vmatpush1.msra.mxu0 0.0
        %523 = vmatprep.subr.mxu0 0.0
        %524 = vmatpush1.msra.mxu0 0.0
        %525 = vmatprep.subr.mxu0 0.0
        %526 = vmatpush1.msra.mxu0 0.0
        %527 = vmatprep.subr.mxu0 0.0
        %528 = vmatpush1.msra.mxu0 0.0
        %529 = vmatprep.subr.mxu0 0.0
        %530 = vmatpush1.msra.mxu0 0.0
        %531 = vmatprep.subr.mxu0 0.0
        %532 = vmatpush1.msra.mxu0 0.0
        %533 = vmatprep.subr.mxu0 0.0
        %534 = vmatpush1.msra.mxu0 0.0
        %535 = vmatprep.subr.mxu0 0.0
        %536 = vmatpush1.msra.mxu0 0.0
        %537 = vmatprep.subr.mxu0 0.0
        %538 = vmatpush1.msra.mxu0 0.0
        %539 = vmatprep.subr.mxu0 0.0
        %540 = vmatpush1.msra.mxu0 0.0
        %541 = vmatprep.subr.mxu0 0.0
        %542 = vmatpush1.msra.mxu0 0.0
        %543 = vmatprep.subr.mxu0 0.0
        %544 = vmatpush1.msra.mxu0 0.0
        %545 = vmatprep.subr.mxu0 0.0
        %546 = vmatpush1.msra.mxu0 0.0
        %547 = vmatprep.subr.mxu0 0.0
        %548 = vmatpush1.msra.mxu0 0.0
        %549 = vmatprep.subr.mxu0 0.0
        %550 = vmatpush1.msra.mxu0 0.0
        %551 = vmatprep.subr.mxu0 0.0
        %552 = vmatpush1.msra.mxu0 0.0
        %553 = vmatprep.subr.mxu0 0.0
        %554 = vmatpush1.msra.mxu0 0.0
        %555 = vmatprep.subr.mxu0 0.0
        %556 = vmatpush1.msra.mxu0 0.0
        %557 = vmatprep.subr.mxu0 0.0
        %558 = vmatpush1.msra.mxu0 0.0
        %559 = vmatprep.subr.mxu0 0.0
        %560 = vmatpush1.msra.mxu0 0.0
        %561 = vmatprep.subr.mxu0 0.0
        %562 = vmatpush1.msra.mxu0 0.0
        %563 = vmatprep.subr.mxu0 0.0
        %564 = vmatpush1.msra.mxu0 0.0
        %565 = vmatprep.subr.mxu0 0.0
        %566 = vmatpush1.msra.mxu0 0.0
        %567 = vmatprep.subr.mxu0 0.0
        %568 = vmatpush1.msra.mxu0 0.0
        %569 = vmatprep.subr.mxu0 0.0
        %570 = vmatpush1.msra.mxu0 0.0
        %571 = vmatprep.subr.mxu0 0.0
        %572 = vmatpush1.msra.mxu0 0.0
        %573 = vmatprep.subr.mxu0 0.0
        %574 = vmatpush1.msra.mxu0 0.0
        %575 = vmatprep.subr.mxu0 0.0
        %576 = vmatpush1.msra.mxu0 0.0
        %577 = vmatprep.subr.mxu0 0.0
        %578 = vmatpush1.msra.mxu0 0.0
        %579 = vmatprep.mubr.f32.mxu0 0.0
        %580 = vmatmul.mubr.f32.gmra.mrb[0].mxu0 %v504
        %v581 = vpop.f32.mrb[0].mxu0
        %v582 = vadd.f32 %v493, %v581
        %v583 = vpop.f32.mrb[0].mxu0
        %v584 = vadd.f32 %v495, %v583
        %585 = vmatprep.mubr.f32.mxu0 0.0
        %586 = vmatmul.mubr.f32.gmra.mrb[0].mxu0 %v507
        %v587 = vpop.f32.mrb[0].mxu0
        %v588 = vadd.f32 %v499, %v587
        %v589 = vpop.f32.mrb[0].mxu0
        %v590 = vadd.f32 %v501, %v589
        %591 = vdwg.mxu0
        %592 = vrot.lane.b32.xlu0 %v358, 15
        %v593 = vpop.permute.xlu0 %592
        %594 = vrot.lane.b32.xlu0 %v360, 15
        %v595 = vpop.permute.xlu0 %594
        %vm596 = vcmp.lt.s32.totalorder %v367, 15
        %v597 = vsel %vm596, %v593, %v595
        %v598 = vsel %vm596, %v595, %v593
        %s599 = scalar_lea.vmem %s1, 4
        %v600 = vld [vmem:[%s599] sm:$0x3]
        %v602 = vlaneseq
        %v603 = vshrl.u32 %v602, 7
        %v604 = vsub.s32 0, %v603
        %v605 = vrot.slane %v600, %v604
        %v606 = vlaneseq
        %v607 = vshrl.u32 %v606, 7
        %v608 = vsub.s32 1, %v607
        %v609 = vrot.slane %v600, %v608
        %v612 = vmul.f32 %v598, %v605
        %v613 = vmul.f32 %v597, %v609
        %s614 = scalar_lea.vmem %s2, 32
        %v615 = vld [vmem:[%s614] sm:$0xff]
        %v616 = vld [vmem:[%s614 + $0x8] sm:$0xff]
        %v618 = vsel %vm412, %v615, 0
        %v621 = vsel %vm412, %v616, 0
        %v624 = vsel %vm419, %v612, 0
        %v627 = vsel %vm419, %v613, 0
        %629 = vmatprep.subr.mxu0 %v627
        %630 = vmatpush1.msra.mxu0 %v624
        %631 = vmatprep.subr.mxu0 0.0
        %632 = vmatpush1.msra.mxu0 0.0
        %633 = vmatprep.subr.mxu0 0.0
        %634 = vmatpush1.msra.mxu0 0.0
        %635 = vmatprep.subr.mxu0 0.0
        %636 = vmatpush1.msra.mxu0 0.0
        %637 = vmatprep.subr.mxu0 0.0
        %638 = vmatpush1.msra.mxu0 0.0
        %639 = vmatprep.subr.mxu0 0.0
        %640 = vmatpush1.msra.mxu0 0.0
        %641 = vmatprep.subr.mxu0 0.0
        %642 = vmatpush1.msra.mxu0 0.0
        %643 = vmatprep.subr.mxu0 0.0
        %644 = vmatpush1.msra.mxu0 0.0
        %645 = vmatprep.subr.mxu0 0.0
        %646 = vmatpush1.msra.mxu0 0.0
        %647 = vmatprep.subr.mxu0 0.0
        %648 = vmatpush1.msra.mxu0 0.0
        %649 = vmatprep.subr.mxu0 0.0
        %650 = vmatpush1.msra.mxu0 0.0
        %651 = vmatprep.subr.mxu0 0.0
        %652 = vmatpush1.msra.mxu0 0.0
        %653 = vmatprep.subr.mxu0 0.0
        %654 = vmatpush1.msra.mxu0 0.0
        %655 = vmatprep.subr.mxu0 0.0
        %656 = vmatpush1.msra.mxu0 0.0
        %657 = vmatprep.subr.mxu0 0.0
        %658 = vmatpush1.msra.mxu0 0.0
        %659 = vmatprep.subr.mxu0 0.0
        %660 = vmatpush1.msra.mxu0 0.0
        %661 = vmatprep.subr.mxu0 0.0
        %662 = vmatpush1.msra.mxu0 0.0
        %663 = vmatprep.subr.mxu0 0.0
        %664 = vmatpush1.msra.mxu0 0.0
        %665 = vmatprep.subr.mxu0 0.0
        %666 = vmatpush1.msra.mxu0 0.0
        %667 = vmatprep.subr.mxu0 0.0
        %668 = vmatpush1.msra.mxu0 0.0
        %669 = vmatprep.subr.mxu0 0.0
        %670 = vmatpush1.msra.mxu0 0.0
        %671 = vmatprep.subr.mxu0 0.0
        %672 = vmatpush1.msra.mxu0 0.0
        %673 = vmatprep.subr.mxu0 0.0
        %674 = vmatpush1.msra.mxu0 0.0
        %675 = vmatprep.subr.mxu0 0.0
        %676 = vmatpush1.msra.mxu0 0.0
        %677 = vmatprep.subr.mxu0 0.0
        %678 = vmatpush1.msra.mxu0 0.0
        %679 = vmatprep.subr.mxu0 0.0
        %680 = vmatpush1.msra.mxu0 0.0
        %681 = vmatprep.subr.mxu0 0.0
        %682 = vmatpush1.msra.mxu0 0.0
        %683 = vmatprep.subr.mxu0 0.0
        %684 = vmatpush1.msra.mxu0 0.0
        %685 = vmatprep.subr.mxu0 0.0
        %686 = vmatpush1.msra.mxu0 0.0
        %687 = vmatprep.subr.mxu0 0.0
        %688 = vmatpush1.msra.mxu0 0.0
        %689 = vmatprep.subr.mxu0 0.0
        %690 = vmatpush1.msra.mxu0 0.0
        %691 = vmatprep.subr.mxu0 0.0
        %692 = vmatpush1.msra.mxu0 0.0
        %693 = vmatprep.mubr.f32.mxu0 0.0
        %694 = vmatmul.mubr.f32.gmra.mrb[0].mxu0 %v618
        %v695 = vpop.f32.mrb[0].mxu0
        %v696 = vadd.f32 0.0, %v695
        %v697 = vpop.f32.mrb[0].mxu0
        %v698 = vadd.f32 0.0, %v697
        %699 = vmatprep.mubr.f32.mxu0 0.0
        %700 = vmatmul.mubr.f32.gmra.mrb[0].mxu0 %v621
        %v701 = vpop.f32.mrb[0].mxu0
        %v702 = vadd.f32 0.0, %v701
        %v703 = vpop.f32.mrb[0].mxu0
        %v704 = vadd.f32 0.0, %v703
        %705 = vdwg.mxu0
        %v706 = vadd.f32 %v582, %v696
        %v707 = vadd.f32 %v584, %v698
        %v708 = vadd.f32 %v588, %v702
        %v709 = vadd.f32 %v590, %v704
        %710 = vrot.lane.b32.xlu0 %v358, 1
        %v711 = vpop.permute.xlu0 %710
        %712 = vrot.lane.b32.xlu0 %v360, 1
        %v713 = vpop.permute.xlu0 %712
        %vm714 = vcmp.lt.s32.totalorder %v367, 1
        %v715 = vsel %vm714, %v711, %v713
        %v716 = vsel %vm714, %v713, %v711
        %s717 = scalar_lea.vmem %s1, 6
        %v718 = vld [vmem:[%s717] sm:$0x3]
        %v720 = vlaneseq
        %v721 = vshrl.u32 %v720, 7
        %v722 = vsub.s32 0, %v721
        %v723 = vrot.slane %v718, %v722
        %v724 = vlaneseq
        %v725 = vshrl.u32 %v724, 7
        %v726 = vsub.s32 1, %v725
        %v727 = vrot.slane %v718, %v726
        %v730 = vmul.f32 %v716, %v723
        %v731 = vmul.f32 %v715, %v727
        %s732 = scalar_lea.vmem %s2, 48
        %v733 = vld [vmem:[%s732] sm:$0xff]
        %v734 = vld [vmem:[%s732 + $0x8] sm:$0xff]
        %v736 = vsel %vm412, %v733, 0
        %v739 = vsel %vm412, %v734, 0
        %v742 = vsel %vm419, %v730, 0
        %v745 = vsel %vm419, %v731, 0
        %747 = vmatprep.subr.mxu0 %v745
        %748 = vmatpush1.msra.mxu0 %v742
        %749 = vmatprep.subr.mxu0 0.0
        %750 = vmatpush1.msra.mxu0 0.0
        %751 = vmatprep.subr.mxu0 0.0
        %752 = vmatpush1.msra.mxu0 0.0
        %753 = vmatprep.subr.mxu0 0.0
        %754 = vmatpush1.msra.mxu0 0.0
        %755 = vmatprep.subr.mxu0 0.0
        %756 = vmatpush1.msra.mxu0 0.0
        %757 = vmatprep.subr.mxu0 0.0
        %758 = vmatpush1.msra.mxu0 0.0
        %759 = vmatprep.subr.mxu0 0.0
        %760 = vmatpush1.msra.mxu0 0.0
        %761 = vmatprep.subr.mxu0 0.0
        %762 = vmatpush1.msra.mxu0 0.0
        %763 = vmatprep.subr.mxu0 0.0
        %764 = vmatpush1.msra.mxu0 0.0
        %765 = vmatprep.subr.mxu0 0.0
        %766 = vmatpush1.msra.mxu0 0.0
        %767 = vmatprep.subr.mxu0 0.0
        %768 = vmatpush1.msra.mxu0 0.0
        %769 = vmatprep.subr.mxu0 0.0
        %770 = vmatpush1.msra.mxu0 0.0
        %771 = vmatprep.subr.mxu0 0.0
        %772 = vmatpush1.msra.mxu0 0.0
        %773 = vmatprep.subr.mxu0 0.0
        %774 = vmatpush1.msra.mxu0 0.0
        %775 = vmatprep.subr.mxu0 0.0
        %776 = vmatpush1.msra.mxu0 0.0
        %777 = vmatprep.subr.mxu0 0.0
        %778 = vmatpush1.msra.mxu0 0.0
        %779 = vmatprep.subr.mxu0 0.0
        %780 = vmatpush1.msra.mxu0 0.0
        %781 = vmatprep.subr.mxu0 0.0
        %782 = vmatpush1.msra.mxu0 0.0
        %783 = vmatprep.subr.mxu0 0.0
        %784 = vmatpush1.msra.mxu0 0.0
        %785 = vmatprep.subr.mxu0 0.0
        %786 = vmatpush1.msra.mxu0 0.0
        %787 = vmatprep.subr.mxu0 0.0
        %788 = vmatpush1.msra.mxu0 0.0
        %789 = vmatprep.subr.mxu0 0.0
        %790 = vmatpush1.msra.mxu0 0.0
        %791 = vmatprep.subr.mxu0 0.0
        %792 = vmatpush1.msra.mxu0 0.0
        %793 = vmatprep.subr.mxu0 0.0
        %794 = vmatpush1.msra.mxu0 0.0
        %795 = vmatprep.subr.mxu0 0.0
        %796 = vmatpush1.msra.mxu0 0.0
        %797 = vmatprep.subr.mxu0 0.0
        %798 = vmatpush1.msra.mxu0 0.0
        %799 = vmatprep.subr.mxu0 0.0
        %800 = vmatpush1.msra.mxu0 0.0
        %801 = vmatprep.subr.mxu0 0.0
        %802 = vmatpush1.msra.mxu0 0.0
        %803 = vmatprep.subr.mxu0 0.0
        %804 = vmatpush1.msra.mxu0 0.0
        %805 = vmatprep.subr.mxu0 0.0
        %806 = vmatpush1.msra.mxu0 0.0
        %807 = vmatprep.subr.mxu0 0.0
        %808 = vmatpush1.msra.mxu0 0.0
        %809 = vmatprep.subr.mxu0 0.0
        %810 = vmatpush1.msra.mxu0 0.0
        %811 = vmatprep.mubr.f32.mxu0 0.0
        %812 = vmatmul.mubr.f32.gmra.mrb[0].mxu0 %v736
        %v813 = vpop.f32.mrb[0].mxu0
        %v814 = vadd.f32 0.0, %v813
        %v815 = vpop.f32.mrb[0].mxu0
        %v816 = vadd.f32 0.0, %v815
        %817 = vmatprep.mubr.f32.mxu0 0.0
        %818 = vmatmul.mubr.f32.gmra.mrb[0].mxu0 %v739
        %v819 = vpop.f32.mrb[0].mxu0
        %v820 = vadd.f32 0.0, %v819
        %v821 = vpop.f32.mrb[0].mxu0
        %v822 = vadd.f32 0.0, %v821
        %823 = vdwg.mxu0
        %v824 = vadd.f32 %v706, %v814
        %v825 = vadd.f32 %v707, %v816
        %v826 = vadd.f32 %v708, %v820
        %v827 = vadd.f32 %v709, %v822
        %s828 = scalar_lea.vmem %s2, 64
        %v829 = vld [vmem:[%s828] sm:$0xff]
        %v830 = vld [vmem:[%s828 + $0x8] sm:$0xff]
        %v832 = vsel %vm412, %v829, 0
        %v835 = vsel %vm412, %v830, 0
        %v837 = vsel %vm419, %v358, 0
        %v839 = vsel %vm419, %v360, 0
        %841 = vmatprep.subr.mxu0 %v839
        %842 = vmatpush1.msra.mxu0 %v837
        %843 = vmatprep.subr.mxu0 0.0
        %844 = vmatpush1.msra.mxu0 0.0
        %845 = vmatprep.subr.mxu0 0.0
        %846 = vmatpush1.msra.mxu0 0.0
        %847 = vmatprep.subr.mxu0 0.0
        %848 = vmatpush1.msra.mxu0 0.0
        %849 = vmatprep.subr.mxu0 0.0
        %850 = vmatpush1.msra.mxu0 0.0
        %851 = vmatprep.subr.mxu0 0.0
        %852 = vmatpush1.msra.mxu0 0.0
        %853 = vmatprep.subr.mxu0 0.0
        %854 = vmatpush1.msra.mxu0 0.0
        %855 = vmatprep.subr.mxu0 0.0
        %856 = vmatpush1.msra.mxu0 0.0
        %857 = vmatprep.subr.mxu0 0.0
        %858 = vmatpush1.msra.mxu0 0.0
        %859 = vmatprep.subr.mxu0 0.0
        %860 = vmatpush1.msra.mxu0 0.0
        %861 = vmatprep.subr.mxu0 0.0
        %862 = vmatpush1.msra.mxu0 0.0
        %863 = vmatprep.subr.mxu0 0.0
        %864 = vmatpush1.msra.mxu0 0.0
        %865 = vmatprep.subr.mxu0 0.0
        %866 = vmatpush1.msra.mxu0 0.0
        %867 = vmatprep.subr.mxu0 0.0
        %868 = vmatpush1.msra.mxu0 0.0
        %869 = vmatprep.subr.mxu0 0.0
        %870 = vmatpush1.msra.mxu0 0.0
        %871 = vmatprep.subr.mxu0 0.0
        %872 = vmatpush1.msra.mxu0 0.0
        %873 = vmatprep.subr.mxu0 0.0
        %874 = vmatpush1.msra.mxu0 0.0
        %875 = vmatprep.subr.mxu0 0.0
        %876 = vmatpush1.msra.mxu0 0.0
        %877 = vmatprep.subr.mxu0 0.0
        %878 = vmatpush1.msra.mxu0 0.0
        %879 = vmatprep.subr.mxu0 0.0
        %880 = vmatpush1.msra.mxu0 0.0
        %881 = vmatprep.subr.mxu0 0.0
        %882 = vmatpush1.msra.mxu0 0.0
        %883 = vmatprep.subr.mxu0 0.0
        %884 = vmatpush1.msra.mxu0 0.0
        %885 = vmatprep.subr.mxu0 0.0
        %886 = vmatpush1.msra.mxu0 0.0
        %887 = vmatprep.subr.mxu0 0.0
        %888 = vmatpush1.msra.mxu0 0.0
        %889 = vmatprep.subr.mxu0 0.0
        %890 = vmatpush1.msra.mxu0 0.0
        %891 = vmatprep.subr.mxu0 0.0
        %892 = vmatpush1.msra.mxu0 0.0
        %893 = vmatprep.subr.mxu0 0.0
        %894 = vmatpush1.msra.mxu0 0.0
        %895 = vmatprep.subr.mxu0 0.0
        %896 = vmatpush1.msra.mxu0 0.0
        %897 = vmatprep.subr.mxu0 0.0
        %898 = vmatpush1.msra.mxu0 0.0
        %899 = vmatprep.subr.mxu0 0.0
        %900 = vmatpush1.msra.mxu0 0.0
        %901 = vmatprep.subr.mxu0 0.0
        %902 = vmatpush1.msra.mxu0 0.0
        %903 = vmatprep.subr.mxu0 0.0
        %904 = vmatpush1.msra.mxu0 0.0
        %905 = vmatprep.mubr.f32.mxu0 0.0
        %906 = vmatmul.mubr.f32.gmra.mrb[0].mxu0 %v832
        %v907 = vpop.f32.mrb[0].mxu0
        %v908 = vadd.f32 0.0, %v907
        %v909 = vpop.f32.mrb[0].mxu0
        %v910 = vadd.f32 0.0, %v909
        %911 = vmatprep.mubr.f32.mxu0 0.0
        %912 = vmatmul.mubr.f32.gmra.mrb[0].mxu0 %v835
        %v913 = vpop.f32.mrb[0].mxu0
        %v914 = vadd.f32 0.0, %v913
        %v915 = vpop.f32.mrb[0].mxu0
        %v916 = vadd.f32 0.0, %v915
        %917 = vdwg.mxu0
        %v918 = vadd.f32 %v824, %v908
        %v919 = vadd.f32 %v825, %v910
        %v920 = vadd.f32 %v826, %v914
        %v921 = vadd.f32 %v827, %v916
        %922 = vrot.lane.b32.xlu0 %v358, 127
        %v923 = vpop.permute.xlu0 %922
        %924 = vrot.lane.b32.xlu0 %v360, 127
        %v925 = vpop.permute.xlu0 %924
        %vm926 = vcmp.lt.s32.totalorder %v367, 127
        %v927 = vsel %vm926, %v923, %v925
        %v928 = vsel %vm926, %v925, %v923
        %s929 = scalar_lea.vmem %s1, 10
        %v930 = vld [vmem:[%s929] sm:$0x3]
        %v932 = vlaneseq
        %v933 = vshrl.u32 %v932, 7
        %v934 = vsub.s32 0, %v933
        %v935 = vrot.slane %v930, %v934
        %v936 = vlaneseq
        %v937 = vshrl.u32 %v936, 7
        %v938 = vsub.s32 1, %v937
        %v939 = vrot.slane %v930, %v938
        %v942 = vmul.f32 %v927, %v935
        %v943 = vmul.f32 %v928, %v939
        %s944 = scalar_lea.vmem %s2, 80
        %v945 = vld [vmem:[%s944] sm:$0xff]
        %v946 = vld [vmem:[%s944 + $0x8] sm:$0xff]
        %v948 = vsel %vm412, %v945, 0
        %v951 = vsel %vm412, %v946, 0
        %v954 = vsel %vm419, %v942, 0
        %v957 = vsel %vm419, %v943, 0
        %959 = vmatprep.subr.mxu0 %v957
        %960 = vmatpush1.msra.mxu0 %v954
        %961 = vmatprep.subr.mxu0 0.0
        %962 = vmatpush1.msra.mxu0 0.0
        %963 = vmatprep.subr.mxu0 0.0
        %964 = vmatpush1.msra.mxu0 0.0
        %965 = vmatprep.subr.mxu0 0.0
        %966 = vmatpush1.msra.mxu0 0.0
        %967 = vmatprep.subr.mxu0 0.0
        %968 = vmatpush1.msra.mxu0 0.0
        %969 = vmatprep.subr.mxu0 0.0
        %970 = vmatpush1.msra.mxu0 0.0
        %971 = vmatprep.subr.mxu0 0.0
        %972 = vmatpush1.msra.mxu0 0.0
        %973 = vmatprep.subr.mxu0 0.0
        %974 = vmatpush1.msra.mxu0 0.0
        %975 = vmatprep.subr.mxu0 0.0
        %976 = vmatpush1.msra.mxu0 0.0
        %977 = vmatprep.subr.mxu0 0.0
        %978 = vmatpush1.msra.mxu0 0.0
        %979 = vmatprep.subr.mxu0 0.0
        %980 = vmatpush1.msra.mxu0 0.0
        %981 = vmatprep.subr.mxu0 0.0
        %982 = vmatpush1.msra.mxu0 0.0
        %983 = vmatprep.subr.mxu0 0.0
        %984 = vmatpush1.msra.mxu0 0.0
        %985 = vmatprep.subr.mxu0 0.0
        %986 = vmatpush1.msra.mxu0 0.0
        %987 = vmatprep.subr.mxu0 0.0
        %988 = vmatpush1.msra.mxu0 0.0
        %989 = vmatprep.subr.mxu0 0.0
        %990 = vmatpush1.msra.mxu0 0.0
        %991 = vmatprep.subr.mxu0 0.0
        %992 = vmatpush1.msra.mxu0 0.0
        %993 = vmatprep.subr.mxu0 0.0
        %994 = vmatpush1.msra.mxu0 0.0
        %995 = vmatprep.subr.mxu0 0.0
        %996 = vmatpush1.msra.mxu0 0.0
        %997 = vmatprep.subr.mxu0 0.0
        %998 = vmatpush1.msra.mxu0 0.0
        %999 = vmatprep.subr.mxu0 0.0
        %1000 = vmatpush1.msra.mxu0 0.0
        %1001 = vmatprep.subr.mxu0 0.0
        %1002 = vmatpush1.msra.mxu0 0.0
        %1003 = vmatprep.subr.mxu0 0.0
        %1004 = vmatpush1.msra.mxu0 0.0
        %1005 = vmatprep.subr.mxu0 0.0
        %1006 = vmatpush1.msra.mxu0 0.0
        %1007 = vmatprep.subr.mxu0 0.0
        %1008 = vmatpush1.msra.mxu0 0.0
        %1009 = vmatprep.subr.mxu0 0.0
        %1010 = vmatpush1.msra.mxu0 0.0
        %1011 = vmatprep.subr.mxu0 0.0
        %1012 = vmatpush1.msra.mxu0 0.0
        %1013 = vmatprep.subr.mxu0 0.0
        %1014 = vmatpush1.msra.mxu0 0.0
        %1015 = vmatprep.subr.mxu0 0.0
        %1016 = vmatpush1.msra.mxu0 0.0
        %1017 = vmatprep.subr.mxu0 0.0
        %1018 = vmatpush1.msra.mxu0 0.0
        %1019 = vmatprep.subr.mxu0 0.0
        %1020 = vmatpush1.msra.mxu0 0.0
        %1021 = vmatprep.subr.mxu0 0.0
        %1022 = vmatpush1.msra.mxu0 0.0
        %1023 = vmatprep.mubr.f32.mxu0 0.0
        %1024 = vmatmul.mubr.f32.gmra.mrb[0].mxu0 %v948
        %v1025 = vpop.f32.mrb[0].mxu0
        %v1026 = vadd.f32 0.0, %v1025
        %v1027 = vpop.f32.mrb[0].mxu0
        %v1028 = vadd.f32 0.0, %v1027
        %1029 = vmatprep.mubr.f32.mxu0 0.0
        %1030 = vmatmul.mubr.f32.gmra.mrb[0].mxu0 %v951
        %v1031 = vpop.f32.mrb[0].mxu0
        %v1032 = vadd.f32 0.0, %v1031
        %v1033 = vpop.f32.mrb[0].mxu0
        %v1034 = vadd.f32 0.0, %v1033
        %1035 = vdwg.mxu0
        %v1036 = vadd.f32 %v918, %v1026
        %v1037 = vadd.f32 %v919, %v1028
        %v1038 = vadd.f32 %v920, %v1032
        %v1039 = vadd.f32 %v921, %v1034
        %1040 = vrot.lane.b32.xlu0 %v358, 113
        %v1041 = vpop.permute.xlu0 %1040
        %1042 = vrot.lane.b32.xlu0 %v360, 113
        %v1043 = vpop.permute.xlu0 %1042
        %vm1044 = vcmp.lt.s32.totalorder %v367, 113
        %v1045 = vsel %vm1044, %v1041, %v1043
        %v1046 = vsel %vm1044, %v1043, %v1041
        %s1047 = scalar_lea.vmem %s1, 12
        %v1048 = vld [vmem:[%s1047] sm:$0x3]
        %v1050 = vlaneseq
        %v1051 = vshrl.u32 %v1050, 7
        %v1052 = vsub.s32 0, %v1051
        %v1053 = vrot.slane %v1048, %v1052
        %v1054 = vlaneseq
        %v1055 = vshrl.u32 %v1054, 7
        %v1056 = vsub.s32 1, %v1055
        %v1057 = vrot.slane %v1048, %v1056
        %v1060 = vmul.f32 %v1045, %v1053
        %v1061 = vmul.f32 %v1046, %v1057
        %s1062 = scalar_lea.vmem %s2, 96
        %v1063 = vld [vmem:[%s1062] sm:$0xff]
        %v1064 = vld [vmem:[%s1062 + $0x8] sm:$0xff]
        %v1066 = vsel %vm412, %v1063, 0
        %v1069 = vsel %vm412, %v1064, 0
        %v1072 = vsel %vm419, %v1060, 0
        %v1075 = vsel %vm419, %v1061, 0
        %1077 = vmatprep.subr.mxu0 %v1075
        %1078 = vmatpush1.msra.mxu0 %v1072
        %1079 = vmatprep.subr.mxu0 0.0
        %1080 = vmatpush1.msra.mxu0 0.0
        %1081 = vmatprep.subr.mxu0 0.0
        %1082 = vmatpush1.msra.mxu0 0.0
        %1083 = vmatprep.subr.mxu0 0.0
        %1084 = vmatpush1.msra.mxu0 0.0
        %1085 = vmatprep.subr.mxu0 0.0
        %1086 = vmatpush1.msra.mxu0 0.0
        %1087 = vmatprep.subr.mxu0 0.0
        %1088 = vmatpush1.msra.mxu0 0.0
        %1089 = vmatprep.subr.mxu0 0.0
        %1090 = vmatpush1.msra.mxu0 0.0
        %1091 = vmatprep.subr.mxu0 0.0
        %1092 = vmatpush1.msra.mxu0 0.0
        %1093 = vmatprep.subr.mxu0 0.0
        %1094 = vmatpush1.msra.mxu0 0.0
        %1095 = vmatprep.subr.mxu0 0.0
        %1096 = vmatpush1.msra.mxu0 0.0
        %1097 = vmatprep.subr.mxu0 0.0
        %1098 = vmatpush1.msra.mxu0 0.0
        %1099 = vmatprep.subr.mxu0 0.0
        %1100 = vmatpush1.msra.mxu0 0.0
        %1101 = vmatprep.subr.mxu0 0.0
        %1102 = vmatpush1.msra.mxu0 0.0
        %1103 = vmatprep.subr.mxu0 0.0
        %1104 = vmatpush1.msra.mxu0 0.0
        %1105 = vmatprep.subr.mxu0 0.0
        %1106 = vmatpush1.msra.mxu0 0.0
        %1107 = vmatprep.subr.mxu0 0.0
        %1108 = vmatpush1.msra.mxu0 0.0
        %1109 = vmatprep.subr.mxu0 0.0
        %1110 = vmatpush1.msra.mxu0 0.0
        %1111 = vmatprep.subr.mxu0 0.0
        %1112 = vmatpush1.msra.mxu0 0.0
        %1113 = vmatprep.subr.mxu0 0.0
        %1114 = vmatpush1.msra.mxu0 0.0
        %1115 = vmatprep.subr.mxu0 0.0
        %1116 = vmatpush1.msra.mxu0 0.0
        %1117 = vmatprep.subr.mxu0 0.0
        %1118 = vmatpush1.msra.mxu0 0.0
        %1119 = vmatprep.subr.mxu0 0.0
        %1120 = vmatpush1.msra.mxu0 0.0
        %1121 = vmatprep.subr.mxu0 0.0
        %1122 = vmatpush1.msra.mxu0 0.0
        %1123 = vmatprep.subr.mxu0 0.0
        %1124 = vmatpush1.msra.mxu0 0.0
        %1125 = vmatprep.subr.mxu0 0.0
        %1126 = vmatpush1.msra.mxu0 0.0
        %1127 = vmatprep.subr.mxu0 0.0
        %1128 = vmatpush1.msra.mxu0 0.0
        %1129 = vmatprep.subr.mxu0 0.0
        %1130 = vmatpush1.msra.mxu0 0.0
        %1131 = vmatprep.subr.mxu0 0.0
        %1132 = vmatpush1.msra.mxu0 0.0
        %1133 = vmatprep.subr.mxu0 0.0
        %1134 = vmatpush1.msra.mxu0 0.0
        %1135 = vmatprep.subr.mxu0 0.0
        %1136 = vmatpush1.msra.mxu0 0.0
        %1137 = vmatprep.subr.mxu0 0.0
        %1138 = vmatpush1.msra.mxu0 0.0
        %1139 = vmatprep.subr.mxu0 0.0
        %1140 = vmatpush1.msra.mxu0 0.0
        %1141 = vmatprep.mubr.f32.mxu0 0.0
        %1142 = vmatmul.mubr.f32.gmra.mrb[0].mxu0 %v1066
        %v1143 = vpop.f32.mrb[0].mxu0
        %v1144 = vadd.f32 0.0, %v1143
        %v1145 = vpop.f32.mrb[0].mxu0
        %v1146 = vadd.f32 0.0, %v1145
        %1147 = vmatprep.mubr.f32.mxu0 0.0
        %1148 = vmatmul.mubr.f32.gmra.mrb[0].mxu0 %v1069
        %v1149 = vpop.f32.mrb[0].mxu0
        %v1150 = vadd.f32 0.0, %v1149
        %v1151 = vpop.f32.mrb[0].mxu0
        %v1152 = vadd.f32 0.0, %v1151
        %1153 = vdwg.mxu0
        %v1154 = vadd.f32 %v1036, %v1144
        %v1155 = vadd.f32 %v1037, %v1146
        %v1156 = vadd.f32 %v1038, %v1150
        %v1157 = vadd.f32 %v1039, %v1152
        %1158 = vrot.lane.b32.xlu0 %v358, 112
        %v1159 = vpop.permute.xlu0 %1158
        %1160 = vrot.lane.b32.xlu0 %v360, 112
        %v1161 = vpop.permute.xlu0 %1160
        %vm1162 = vcmp.lt.s32.totalorder %v367, 112
        %v1163 = vsel %vm1162, %v1159, %v1161
        %v1164 = vsel %vm1162, %v1161, %v1159
        %s1165 = scalar_lea.vmem %s1, 14
        %v1166 = vld [vmem:[%s1165] sm:$0x3]
        %v1168 = vlaneseq
        %v1169 = vshrl.u32 %v1168, 7
        %v1170 = vsub.s32 0, %v1169
        %v1171 = vrot.slane %v1166, %v1170
        %v1172 = vlaneseq
        %v1173 = vshrl.u32 %v1172, 7
        %v1174 = vsub.s32 1, %v1173
        %v1175 = vrot.slane %v1166, %v1174
        %v1178 = vmul.f32 %v1163, %v1171
        %v1179 = vmul.f32 %v1164, %v1175
        %s1180 = scalar_lea.vmem %s2, 112
        %v1181 = vld [vmem:[%s1180] sm:$0xff]
        %v1182 = vld [vmem:[%s1180 + $0x8] sm:$0xff]
        %v1184 = vsel %vm412, %v1181, 0
        %v1187 = vsel %vm412, %v1182, 0
        %v1190 = vsel %vm419, %v1178, 0
        %v1193 = vsel %vm419, %v1179, 0
        %1195 = vmatprep.subr.mxu0 %v1193
        %1196 = vmatpush1.msra.mxu0 %v1190
        %1197 = vmatprep.subr.mxu0 0.0
        %1198 = vmatpush1.msra.mxu0 0.0
        %1199 = vmatprep.subr.mxu0 0.0
        %1200 = vmatpush1.msra.mxu0 0.0
        %1201 = vmatprep.subr.mxu0 0.0
        %1202 = vmatpush1.msra.mxu0 0.0
        %1203 = vmatprep.subr.mxu0 0.0
        %1204 = vmatpush1.msra.mxu0 0.0
        %1205 = vmatprep.subr.mxu0 0.0
        %1206 = vmatpush1.msra.mxu0 0.0
        %1207 = vmatprep.subr.mxu0 0.0
        %1208 = vmatpush1.msra.mxu0 0.0
        %1209 = vmatprep.subr.mxu0 0.0
        %1210 = vmatpush1.msra.mxu0 0.0
        %1211 = vmatprep.subr.mxu0 0.0
        %1212 = vmatpush1.msra.mxu0 0.0
        %1213 = vmatprep.subr.mxu0 0.0
        %1214 = vmatpush1.msra.mxu0 0.0
        %1215 = vmatprep.subr.mxu0 0.0
        %1216 = vmatpush1.msra.mxu0 0.0
        %1217 = vmatprep.subr.mxu0 0.0
        %1218 = vmatpush1.msra.mxu0 0.0
        %1219 = vmatprep.subr.mxu0 0.0
        %1220 = vmatpush1.msra.mxu0 0.0
        %1221 = vmatprep.subr.mxu0 0.0
        %1222 = vmatpush1.msra.mxu0 0.0
        %1223 = vmatprep.subr.mxu0 0.0
        %1224 = vmatpush1.msra.mxu0 0.0
        %1225 = vmatprep.subr.mxu0 0.0
        %1226 = vmatpush1.msra.mxu0 0.0
        %1227 = vmatprep.subr.mxu0 0.0
        %1228 = vmatpush1.msra.mxu0 0.0
        %1229 = vmatprep.subr.mxu0 0.0
        %1230 = vmatpush1.msra.mxu0 0.0
        %1231 = vmatprep.subr.mxu0 0.0
        %1232 = vmatpush1.msra.mxu0 0.0
        %1233 = vmatprep.subr.mxu0 0.0
        %1234 = vmatpush1.msra.mxu0 0.0
        %1235 = vmatprep.subr.mxu0 0.0
        %1236 = vmatpush1.msra.mxu0 0.0
        %1237 = vmatprep.subr.mxu0 0.0
        %1238 = vmatpush1.msra.mxu0 0.0
        %1239 = vmatprep.subr.mxu0 0.0
        %1240 = vmatpush1.msra.mxu0 0.0
        %1241 = vmatprep.subr.mxu0 0.0
        %1242 = vmatpush1.msra.mxu0 0.0
        %1243 = vmatprep.subr.mxu0 0.0
        %1244 = vmatpush1.msra.mxu0 0.0
        %1245 = vmatprep.subr.mxu0 0.0
        %1246 = vmatpush1.msra.mxu0 0.0
        %1247 = vmatprep.subr.mxu0 0.0
        %1248 = vmatpush1.msra.mxu0 0.0
        %1249 = vmatprep.subr.mxu0 0.0
        %1250 = vmatpush1.msra.mxu0 0.0
        %1251 = vmatprep.subr.mxu0 0.0
        %1252 = vmatpush1.msra.mxu0 0.0
        %1253 = vmatprep.subr.mxu0 0.0
        %1254 = vmatpush1.msra.mxu0 0.0
        %1255 = vmatprep.subr.mxu0 0.0
        %1256 = vmatpush1.msra.mxu0 0.0
        %1257 = vmatprep.subr.mxu0 0.0
        %1258 = vmatpush1.msra.mxu0 0.0
        %1259 = vmatprep.mubr.f32.mxu0 0.0
        %1260 = vmatmul.mubr.f32.gmra.mrb[0].mxu0 %v1184
        %v1261 = vpop.f32.mrb[0].mxu0
        %v1262 = vadd.f32 0.0, %v1261
        %v1263 = vpop.f32.mrb[0].mxu0
        %v1264 = vadd.f32 0.0, %v1263
        %1265 = vmatprep.mubr.f32.mxu0 0.0
        %1266 = vmatmul.mubr.f32.gmra.mrb[0].mxu0 %v1187
        %v1267 = vpop.f32.mrb[0].mxu0
        %v1268 = vadd.f32 0.0, %v1267
        %v1269 = vpop.f32.mrb[0].mxu0
        %v1270 = vadd.f32 0.0, %v1269
        %1271 = vdwg.mxu0
        %v1272 = vadd.f32 %v1154, %v1262
        %v1273 = vadd.f32 %v1155, %v1264
        %v1274 = vadd.f32 %v1156, %v1268
        %v1275 = vadd.f32 %v1157, %v1270
        %1276 = vrot.lane.b32.xlu0 %v358, 111
        %v1277 = vpop.permute.xlu0 %1276
        %1278 = vrot.lane.b32.xlu0 %v360, 111
        %v1279 = vpop.permute.xlu0 %1278
        %vm1280 = vcmp.lt.s32.totalorder %v367, 111
        %v1281 = vsel %vm1280, %v1277, %v1279
        %v1282 = vsel %vm1280, %v1279, %v1277
        %s1283 = scalar_lea.vmem %s1, 16
        %v1284 = vld [vmem:[%s1283] sm:$0x3]
        %v1286 = vlaneseq
        %v1287 = vshrl.u32 %v1286, 7
        %v1288 = vsub.s32 0, %v1287
        %v1289 = vrot.slane %v1284, %v1288
        %v1290 = vlaneseq
        %v1291 = vshrl.u32 %v1290, 7
        %v1292 = vsub.s32 1, %v1291
        %v1293 = vrot.slane %v1284, %v1292
        %v1296 = vmul.f32 %v1281, %v1289
        %v1297 = vmul.f32 %v1282, %v1293
        %s1298 = scalar_lea.vmem %s2, 128
        %v1299 = vld [vmem:[%s1298] sm:$0xff]
        %v1300 = vld [vmem:[%s1298 + $0x8] sm:$0xff]
        %v1302 = vsel %vm412, %v1299, 0
        %v1305 = vsel %vm412, %v1300, 0
        %v1308 = vsel %vm419, %v1296, 0
        %v1311 = vsel %vm419, %v1297, 0
        %1313 = vmatprep.subr.mxu0 %v1311
        %1314 = vmatpush1.msra.mxu0 %v1308
        %1315 = vmatprep.subr.mxu0 0.0
        %1316 = vmatpush1.msra.mxu0 0.0
        %1317 = vmatprep.subr.mxu0 0.0
        %1318 = vmatpush1.msra.mxu0 0.0
        %1319 = vmatprep.subr.mxu0 0.0
        %1320 = vmatpush1.msra.mxu0 0.0
        %1321 = vmatprep.subr.mxu0 0.0
        %1322 = vmatpush1.msra.mxu0 0.0
        %1323 = vmatprep.subr.mxu0 0.0
        %1324 = vmatpush1.msra.mxu0 0.0
        %1325 = vmatprep.subr.mxu0 0.0
        %1326 = vmatpush1.msra.mxu0 0.0
        %1327 = vmatprep.subr.mxu0 0.0
        %1328 = vmatpush1.msra.mxu0 0.0
        %1329 = vmatprep.subr.mxu0 0.0
        %1330 = vmatpush1.msra.mxu0 0.0
        %1331 = vmatprep.subr.mxu0 0.0
        %1332 = vmatpush1.msra.mxu0 0.0
        %1333 = vmatprep.subr.mxu0 0.0
        %1334 = vmatpush1.msra.mxu0 0.0
        %1335 = vmatprep.subr.mxu0 0.0
        %1336 = vmatpush1.msra.mxu0 0.0
        %1337 = vmatprep.subr.mxu0 0.0
        %1338 = vmatpush1.msra.mxu0 0.0
        %1339 = vmatprep.subr.mxu0 0.0
        %1340 = vmatpush1.msra.mxu0 0.0
        %1341 = vmatprep.subr.mxu0 0.0
        %1342 = vmatpush1.msra.mxu0 0.0
        %1343 = vmatprep.subr.mxu0 0.0
        %1344 = vmatpush1.msra.mxu0 0.0
        %1345 = vmatprep.subr.mxu0 0.0
        %1346 = vmatpush1.msra.mxu0 0.0
        %1347 = vmatprep.subr.mxu0 0.0
        %1348 = vmatpush1.msra.mxu0 0.0
        %1349 = vmatprep.subr.mxu0 0.0
        %1350 = vmatpush1.msra.mxu0 0.0
        %1351 = vmatprep.subr.mxu0 0.0
        %1352 = vmatpush1.msra.mxu0 0.0
        %1353 = vmatprep.subr.mxu0 0.0
        %1354 = vmatpush1.msra.mxu0 0.0
        %1355 = vmatprep.subr.mxu0 0.0
        %1356 = vmatpush1.msra.mxu0 0.0
        %1357 = vmatprep.subr.mxu0 0.0
        %1358 = vmatpush1.msra.mxu0 0.0
        %1359 = vmatprep.subr.mxu0 0.0
        %1360 = vmatpush1.msra.mxu0 0.0
        %1361 = vmatprep.subr.mxu0 0.0
        %1362 = vmatpush1.msra.mxu0 0.0
        %1363 = vmatprep.subr.mxu0 0.0
        %1364 = vmatpush1.msra.mxu0 0.0
        %1365 = vmatprep.subr.mxu0 0.0
        %1366 = vmatpush1.msra.mxu0 0.0
        %1367 = vmatprep.subr.mxu0 0.0
        %1368 = vmatpush1.msra.mxu0 0.0
        %1369 = vmatprep.subr.mxu0 0.0
        %1370 = vmatpush1.msra.mxu0 0.0
        %1371 = vmatprep.subr.mxu0 0.0
        %1372 = vmatpush1.msra.mxu0 0.0
        %1373 = vmatprep.subr.mxu0 0.0
        %1374 = vmatpush1.msra.mxu0 0.0
        %1375 = vmatprep.subr.mxu0 0.0
        %1376 = vmatpush1.msra.mxu0 0.0
        %1377 = vmatprep.mubr.f32.mxu0 0.0
        %1378 = vmatmul.mubr.f32.gmra.mrb[0].mxu0 %v1302
        %v1379 = vpop.f32.mrb[0].mxu0
        %v1380 = vadd.f32 0.0, %v1379
        %v1381 = vpop.f32.mrb[0].mxu0
        %v1382 = vadd.f32 0.0, %v1381
        %1383 = vmatprep.mubr.f32.mxu0 0.0
        %1384 = vmatmul.mubr.f32.gmra.mrb[0].mxu0 %v1305
        %v1385 = vpop.f32.mrb[0].mxu0
        %v1386 = vadd.f32 0.0, %v1385
        %v1387 = vpop.f32.mrb[0].mxu0
        %v1388 = vadd.f32 0.0, %v1387
        %1389 = vdwg.mxu0
        %v1390 = vadd.f32 %v1272, %v1380
        %v1391 = vadd.f32 %v1273, %v1382
        %v1392 = vadd.f32 %v1274, %v1386
        %v1393 = vadd.f32 %v1275, %v1388
        %v1394 = vld [vmem:[%s3] sm:$0xff]
        %v1395 = vld [vmem:[%s3 + $0x8] sm:$0xff]
        %1397 = vset.pattern.permute.xlu0 0
        %1398 = vperm.xlu0 %1397, %v1394
        %v1399 = vpop.permute.xlu0 %1398
        %1402 = vset.pattern.permute.xlu0 0
        %1403 = vperm.xlu0 %1402, %v1395
        %v1404 = vpop.permute.xlu0 %1403
        %v1406 = vadd.f32 %v1390, %v1399
        %v1407 = vadd.f32 %v1391, %v1399
        %v1408 = vadd.f32 %v1392, %v1404
        %v1409 = vadd.f32 %v1393, %v1404
        %v1410 = vld [vmem:[%s4] sm:$0xff]
        %v1411 = vld [vmem:[%s4 + $0x8] sm:$0xff]
        %v1412 = vld [vmem:[%s5] sm:$0xff]
        %v1413 = vld [vmem:[%s5 + $0x8] sm:$0xff]
        %v1414 = vadd.f32 %v1406, %v1407
        %1415 = vadd.xlane.f32.xlu0 %v1414
        %v1416 = vpop.xlane.xlu0 %1415
        %v1417 = vadd.f32 %v1408, %v1409
        %1418 = vadd.xlane.f32.xlu0 %v1417
        %v1419 = vpop.xlane.xlu0 %1418
        %vm1420 = vcmask 1041408
        %v1421 = vsel %vm1420, %v1416, 0.0
        %v1422 = vrot.slane %v1421, 4
        %v1423 = vadd.f32 %v1421, %v1422
        %v1424 = vrot.slane %v1423, 2
        %v1425 = vadd.f32 %v1423, %v1424
        %v1426 = vrot.slane %v1425, 1
        %v1427 = vadd.f32 %v1425, %v1426
        %v1429 = vrot.slane %v1416, 2
        %v1431 = vsel %vm1420, %v1429, 0.0
        %v1432 = vrot.slane %v1431, 4
        %v1433 = vadd.f32 %v1431, %v1432
        %v1434 = vrot.slane %v1433, 2
        %v1435 = vadd.f32 %v1433, %v1434
        %v1436 = vrot.slane %v1435, 1
        %v1437 = vadd.f32 %v1435, %v1436
        %v1438 = vrot.slane %v1416, 4
        %v1440 = vsel %vm1420, %v1438, 0.0
        %v1441 = vrot.slane %v1440, 4
        %v1442 = vadd.f32 %v1440, %v1441
        %v1443 = vrot.slane %v1442, 2
        %v1444 = vadd.f32 %v1442, %v1443
        %v1445 = vrot.slane %v1444, 1
        %v1446 = vadd.f32 %v1444, %v1445
        %v1447 = vrot.slane %v1416, 6
        %v1449 = vsel %vm1420, %v1447, 0.0
        %v1450 = vrot.slane %v1449, 4
        %v1451 = vadd.f32 %v1449, %v1450
        %v1452 = vrot.slane %v1451, 2
        %v1453 = vadd.f32 %v1451, %v1452
        %v1454 = vrot.slane %v1453, 1
        %v1455 = vadd.f32 %v1453, %v1454
        %v1456 = vsel %vm1420, %v1419, 0.0
        %v1457 = vrot.slane %v1456, 4
        %v1458 = vadd.f32 %v1456, %v1457
        %v1459 = vrot.slane %v1458, 2
        %v1460 = vadd.f32 %v1458, %v1459
        %v1461 = vrot.slane %v1460, 1
        %v1462 = vadd.f32 %v1460, %v1461
        %v1464 = vrot.slane %v1419, 2
        %v1466 = vsel %vm1420, %v1464, 0.0
        %v1467 = vrot.slane %v1466, 4
        %v1468 = vadd.f32 %v1466, %v1467
        %v1469 = vrot.slane %v1468, 2
        %v1470 = vadd.f32 %v1468, %v1469
        %v1471 = vrot.slane %v1470, 1
        %v1472 = vadd.f32 %v1470, %v1471
        %v1473 = vrot.slane %v1419, 4
        %v1475 = vsel %vm1420, %v1473, 0.0
        %v1476 = vrot.slane %v1475, 4
        %v1477 = vadd.f32 %v1475, %v1476
        %v1478 = vrot.slane %v1477, 2
        %v1479 = vadd.f32 %v1477, %v1478
        %v1480 = vrot.slane %v1479, 1
        %v1481 = vadd.f32 %v1479, %v1480
        %v1482 = vrot.slane %v1419, 6
        %v1484 = vsel %vm1420, %v1482, 0.0
        %v1485 = vrot.slane %v1484, 4
        %v1486 = vadd.f32 %v1484, %v1485
        %v1487 = vrot.slane %v1486, 2
        %v1488 = vadd.f32 %v1486, %v1487
        %v1489 = vrot.slane %v1488, 1
        %v1490 = vadd.f32 %v1488, %v1489
        %v1491 = vsel %vm1420, %v1427, %v1437
        %v1492 = vsel %vm419, %v1491, %v1446
        %vm1493 = vcmask 1045504
        %v1494 = vsel %vm1493, %v1492, %v1455
        %v1495 = vsel %vm1420, %v1462, %v1472
        %v1496 = vsel %vm419, %v1495, %v1481
        %v1497 = vsel %vm1493, %v1496, %v1490
        %v1498 = vmul.f32 %v1494, 0.001953125
        %v1499 = vmul.f32 %v1497, 0.001953125
        %1501 = vset.pattern.permute.xlu0 0
        %1502 = vperm.xlu0 %1501, %v1498
        %v1503 = vpop.permute.xlu0 %1502
        %1506 = vset.pattern.permute.xlu0 0
        %1507 = vperm.xlu0 %1506, %v1499
        %v1508 = vpop.permute.xlu0 %1507
        %v1510 = vsub.f32 %v1406, %v1503
        %v1511 = vsub.f32 %v1407, %v1503
        %v1512 = vsub.f32 %v1408, %v1508
        %v1513 = vsub.f32 %v1409, %v1508
        %v1514 = vmul.f32 %v1510, %v1510
        %v1515 = vmul.f32 %v1511, %v1511
        %v1516 = vmul.f32 %v1512, %v1512
        %v1517 = vmul.f32 %v1513, %v1513
        %v1518 = vadd.f32 %v1514, %v1515
        %1519 = vadd.xlane.f32.xlu0 %v1518
        %v1520 = vpop.xlane.xlu0 %1519
        %v1521 = vadd.f32 %v1516, %v1517
        %1522 = vadd.xlane.f32.xlu0 %v1521
        %v1523 = vpop.xlane.xlu0 %1522
        %v1524 = vsel %vm1420, %v1520, 0.0
        %v1525 = vrot.slane %v1524, 4
        %v1526 = vadd.f32 %v1524, %v1525
        %v1527 = vrot.slane %v1526, 2
        %v1528 = vadd.f32 %v1526, %v1527
        %v1529 = vrot.slane %v1528, 1
        %v1530 = vadd.f32 %v1528, %v1529
        %v1532 = vrot.slane %v1520, 2
        %v1534 = vsel %vm1420, %v1532, 0.0
        %v1535 = vrot.slane %v1534, 4
        %v1536 = vadd.f32 %v1534, %v1535
        %v1537 = vrot.slane %v1536, 2
        %v1538 = vadd.f32 %v1536, %v1537
        %v1539 = vrot.slane %v1538, 1
        %v1540 = vadd.f32 %v1538, %v1539
        %v1541 = vrot.slane %v1520, 4
        %v1543 = vsel %vm1420, %v1541, 0.0
        %v1544 = vrot.slane %v1543, 4
        %v1545 = vadd.f32 %v1543, %v1544
        %v1546 = vrot.slane %v1545, 2
        %v1547 = vadd.f32 %v1545, %v1546
        %v1548 = vrot.slane %v1547, 1
        %v1549 = vadd.f32 %v1547, %v1548
        %v1550 = vrot.slane %v1520, 6
        %v1552 = vsel %vm1420, %v1550, 0.0
        %v1553 = vrot.slane %v1552, 4
        %v1554 = vadd.f32 %v1552, %v1553
        %v1555 = vrot.slane %v1554, 2
        %v1556 = vadd.f32 %v1554, %v1555
        %v1557 = vrot.slane %v1556, 1
        %v1558 = vadd.f32 %v1556, %v1557
        %v1559 = vsel %vm1420, %v1523, 0.0
        %v1560 = vrot.slane %v1559, 4
        %v1561 = vadd.f32 %v1559, %v1560
        %v1562 = vrot.slane %v1561, 2
        %v1563 = vadd.f32 %v1561, %v1562
        %v1564 = vrot.slane %v1563, 1
        %v1565 = vadd.f32 %v1563, %v1564
        %v1567 = vrot.slane %v1523, 2
        %v1569 = vsel %vm1420, %v1567, 0.0
        %v1570 = vrot.slane %v1569, 4
        %v1571 = vadd.f32 %v1569, %v1570
        %v1572 = vrot.slane %v1571, 2
        %v1573 = vadd.f32 %v1571, %v1572
        %v1574 = vrot.slane %v1573, 1
        %v1575 = vadd.f32 %v1573, %v1574
        %v1576 = vrot.slane %v1523, 4
        %v1578 = vsel %vm1420, %v1576, 0.0
        %v1579 = vrot.slane %v1578, 4
        %v1580 = vadd.f32 %v1578, %v1579
        %v1581 = vrot.slane %v1580, 2
        %v1582 = vadd.f32 %v1580, %v1581
        %v1583 = vrot.slane %v1582, 1
        %v1584 = vadd.f32 %v1582, %v1583
        %v1585 = vrot.slane %v1523, 6
        %v1587 = vsel %vm1420, %v1585, 0.0
        %v1588 = vrot.slane %v1587, 4
        %v1589 = vadd.f32 %v1587, %v1588
        %v1590 = vrot.slane %v1589, 2
        %v1591 = vadd.f32 %v1589, %v1590
        %v1592 = vrot.slane %v1591, 1
        %v1593 = vadd.f32 %v1591, %v1592
        %v1594 = vsel %vm1420, %v1530, %v1540
        %v1595 = vsel %vm419, %v1594, %v1549
        %v1596 = vsel %vm1493, %v1595, %v1558
        %v1597 = vsel %vm1420, %v1565, %v1575
        %v1598 = vsel %vm419, %v1597, %v1584
        %v1599 = vsel %vm1493, %v1598, %v1593
        %v1600 = vmul.f32 %v1596, 0.001953125
        %v1601 = vmul.f32 %v1599, 0.001953125
        %v1602 = vadd.f32 %v1600, 1e-05
        %v1603 = vadd.f32 %v1601, 1e-05
        %v1604 = vrsqrt.pop %v1602
        %v1605 = vrsqrt.pop %v1603
        %1607 = vset.pattern.permute.xlu0 0
        %1608 = vperm.xlu0 %1607, %v1604
        %v1609 = vpop.permute.xlu0 %1608
        %1612 = vset.pattern.permute.xlu0 0
        %1613 = vperm.xlu0 %1612, %v1605
        %v1614 = vpop.permute.xlu0 %1613
        %v1616 = vmul.f32 %v1510, %v1609
        %v1617 = vmul.f32 %v1511, %v1609
        %v1618 = vmul.f32 %v1512, %v1614
        %v1619 = vmul.f32 %v1513, %v1614
        %1621 = vset.pattern.permute.xlu0 0
        %1622 = vperm.xlu0 %1621, %v1410
        %v1623 = vpop.permute.xlu0 %1622
        %1626 = vset.pattern.permute.xlu0 0
        %1627 = vperm.xlu0 %1626, %v1411
        %v1628 = vpop.permute.xlu0 %1627
        %v1630 = vmul.f32 %v1616, %v1623
        %v1631 = vmul.f32 %v1617, %v1623
        %v1632 = vmul.f32 %v1618, %v1628
        %v1633 = vmul.f32 %v1619, %v1628
        %1635 = vset.pattern.permute.xlu0 0
        %1636 = vperm.xlu0 %1635, %v1412
        %v1637 = vpop.permute.xlu0 %1636
        %1640 = vset.pattern.permute.xlu0 0
        %1641 = vperm.xlu0 %1640, %v1413
        %v1642 = vpop.permute.xlu0 %1641
        %v1644 = vadd.f32 %v1630, %v1637
        %v1645 = vadd.f32 %v1631, %v1637
        %v1646 = vadd.f32 %v1632, %v1642
        %v1647 = vadd.f32 %v1633, %v1642
        %v1648 = vmax.f32 %v1644, 0.0
        %v1649 = vmax.f32 %v1645, 0.0
        %v1650 = vmax.f32 %v1646, 0.0
        %v1651 = vmax.f32 %v1647, 0.0
        %1652 = vrot.lane.b32.xlu0 %v1648, 17
        %v1653 = vpop.permute.xlu0 %1652
        %1654 = vrot.lane.b32.xlu0 %v1650, 17
        %v1655 = vpop.permute.xlu0 %1654
        %1656 = vrot.lane.b32.xlu0 %v1649, 17
        %v1657 = vpop.permute.xlu0 %1656
        %1658 = vrot.lane.b32.xlu0 %v1651, 17
        %v1659 = vpop.permute.xlu0 %1658
        %v1660 = vsel %vm368, %v1653, %v1657
        %v1661 = vsel %vm368, %v1655, %v1659
        %v1662 = vsel %vm368, %v1657, %v1653
        %v1663 = vsel %vm368, %v1659, %v1655
        %v1664 = vmul.f32 %v1662, %v376
        %v1665 = vmul.f32 %v1660, %v380
        %v1666 = vmul.f32 %v1663, %v376
        %v1667 = vmul.f32 %v1661, %v380
        %v1668 = vld [vmem:[%s6] sm:$0xff]
        %v1669 = vld [vmem:[%s6 + $0x8] sm:$0xff]
        %1670 = vrot.lane.b32.xlu0 %v1648, 16
        %v1671 = vpop.permute.xlu0 %1670
        %1672 = vrot.lane.b32.xlu0 %v1650, 16
        %v1673 = vpop.permute.xlu0 %1672
        %1674 = vrot.lane.b32.xlu0 %v1649, 16
        %v1675 = vpop.permute.xlu0 %1674
        %1676 = vrot.lane.b32.xlu0 %v1651, 16
        %v1677 = vpop.permute.xlu0 %1676
        %v1678 = vsel %vm391, %v1671, %v1675
        %v1679 = vsel %vm391, %v1673, %v1677
        %v1680 = vsel %vm391, %v1675, %v1671
        %v1681 = vsel %vm391, %v1677, %v1673
        %v1682 = vmul.f32 %v1680, %v400
        %v1683 = vmul.f32 %v1678, %v404
        %v1684 = vmul.f32 %v1681, %v400
        %v1685 = vmul.f32 %v1679, %v404
        %s1686 = scalar_lea.vmem %s6, 16
        %v1687 = vld [vmem:[%s1686] sm:$0xff]
        %v1688 = vld [vmem:[%s1686 + $0x8] sm:$0xff]
        %vm1689 = vcmask 130048
        %v1691 = vsel %vm1689, %v1687, 0
        %v1694 = vsel %vm1689, %v1688, 0
        %1696 = vmatprep.subr.mxu0 %v1683
        %1697 = vmatpush1.msra.mxu0 %v1682
        %1698 = vmatprep.subr.mxu0 %v1685
        %1699 = vmatpush1.msra.mxu0 %v1684
        %1700 = vmatprep.subr.mxu0 0.0
        %1701 = vmatpush1.msra.mxu0 0.0
        %1702 = vmatprep.subr.mxu0 0.0
        %1703 = vmatpush1.msra.mxu0 0.0
        %1704 = vmatprep.subr.mxu0 0.0
        %1705 = vmatpush1.msra.mxu0 0.0
        %1706 = vmatprep.subr.mxu0 0.0
        %1707 = vmatpush1.msra.mxu0 0.0
        %1708 = vmatprep.subr.mxu0 0.0
        %1709 = vmatpush1.msra.mxu0 0.0
        %1710 = vmatprep.subr.mxu0 0.0
        %1711 = vmatpush1.msra.mxu0 0.0
        %1712 = vmatprep.subr.mxu0 0.0
        %1713 = vmatpush1.msra.mxu0 0.0
        %1714 = vmatprep.subr.mxu0 0.0
        %1715 = vmatpush1.msra.mxu0 0.0
        %1716 = vmatprep.subr.mxu0 0.0
        %1717 = vmatpush1.msra.mxu0 0.0
        %1718 = vmatprep.subr.mxu0 0.0
        %1719 = vmatpush1.msra.mxu0 0.0
        %1720 = vmatprep.subr.mxu0 0.0
        %1721 = vmatpush1.msra.mxu0 0.0
        %1722 = vmatprep.subr.mxu0 0.0
        %1723 = vmatpush1.msra.mxu0 0.0
        %1724 = vmatprep.subr.mxu0 0.0
        %1725 = vmatpush1.msra.mxu0 0.0
        %1726 = vmatprep.subr.mxu0 0.0
        %1727 = vmatpush1.msra.mxu0 0.0
        %1728 = vmatprep.subr.mxu0 0.0
        %1729 = vmatpush1.msra.mxu0 0.0
        %1730 = vmatprep.subr.mxu0 0.0
        %1731 = vmatpush1.msra.mxu0 0.0
        %1732 = vmatprep.subr.mxu0 0.0
        %1733 = vmatpush1.msra.mxu0 0.0
        %1734 = vmatprep.subr.mxu0 0.0
        %1735 = vmatpush1.msra.mxu0 0.0
        %1736 = vmatprep.subr.mxu0 0.0
        %1737 = vmatpush1.msra.mxu0 0.0
        %1738 = vmatprep.subr.mxu0 0.0
        %1739 = vmatpush1.msra.mxu0 0.0
        %1740 = vmatprep.subr.mxu0 0.0
        %1741 = vmatpush1.msra.mxu0 0.0
        %1742 = vmatprep.subr.mxu0 0.0
        %1743 = vmatpush1.msra.mxu0 0.0
        %1744 = vmatprep.subr.mxu0 0.0
        %1745 = vmatpush1.msra.mxu0 0.0
        %1746 = vmatprep.subr.mxu0 0.0
        %1747 = vmatpush1.msra.mxu0 0.0
        %1748 = vmatprep.subr.mxu0 0.0
        %1749 = vmatpush1.msra.mxu0 0.0
        %1750 = vmatprep.subr.mxu0 0.0
        %1751 = vmatpush1.msra.mxu0 0.0
        %1752 = vmatprep.subr.mxu0 0.0
        %1753 = vmatpush1.msra.mxu0 0.0
        %1754 = vmatprep.subr.mxu0 0.0
        %1755 = vmatpush1.msra.mxu0 0.0
        %1756 = vmatprep.subr.mxu0 0.0
        %1757 = vmatpush1.msra.mxu0 0.0
        %1758 = vmatprep.subr.mxu0 0.0
        %1759 = vmatpush1.msra.mxu0 0.0
        %1760 = vmatprep.mubr.f32.mxu0 0.0
        %1761 = vmatmul.mubr.f32.gmra.mrb[0].mxu0 %v1691
        %v1762 = vpop.f32.mrb[0].mxu0
        %v1763 = vadd.f32 0.0, %v1762
        %v1764 = vpop.f32.mrb[0].mxu0
        %v1765 = vadd.f32 0.0, %v1764
        %1766 = vmatprep.mubr.f32.mxu0 0.0
        %1767 = vmatmul.mubr.f32.gmra.mrb[0].mxu0 %v1694
        %v1768 = vpop.f32.mrb[0].mxu0
        %v1769 = vadd.f32 0.0, %v1768
        %v1770 = vpop.f32.mrb[0].mxu0
        %v1771 = vadd.f32 0.0, %v1770
        %1772 = vdwg.mxu0
        %v1774 = vsel %vm1689, %v1668, 0
        %v1777 = vsel %vm1689, %v1669, 0
        %1779 = vmatprep.subr.mxu0 %v1665
        %1780 = vmatpush1.msra.mxu0 %v1664
        %1781 = vmatprep.subr.mxu0 %v1667
        %1782 = vmatpush1.msra.mxu0 %v1666
        %1783 = vmatprep.subr.mxu0 0.0
        %1784 = vmatpush1.msra.mxu0 0.0
        %1785 = vmatprep.subr.mxu0 0.0
        %1786 = vmatpush1.msra.mxu0 0.0
        %1787 = vmatprep.subr.mxu0 0.0
        %1788 = vmatpush1.msra.mxu0 0.0
        %1789 = vmatprep.subr.mxu0 0.0
        %1790 = vmatpush1.msra.mxu0 0.0
        %1791 = vmatprep.subr.mxu0 0.0
        %1792 = vmatpush1.msra.mxu0 0.0
        %1793 = vmatprep.subr.mxu0 0.0
        %1794 = vmatpush1.msra.mxu0 0.0
        %1795 = vmatprep.subr.mxu0 0.0
        %1796 = vmatpush1.msra.mxu0 0.0
        %1797 = vmatprep.subr.mxu0 0.0
        %1798 = vmatpush1.msra.mxu0 0.0
        %1799 = vmatprep.subr.mxu0 0.0
        %1800 = vmatpush1.msra.mxu0 0.0
        %1801 = vmatprep.subr.mxu0 0.0
        %1802 = vmatpush1.msra.mxu0 0.0
        %1803 = vmatprep.subr.mxu0 0.0
        %1804 = vmatpush1.msra.mxu0 0.0
        %1805 = vmatprep.subr.mxu0 0.0
        %1806 = vmatpush1.msra.mxu0 0.0
        %1807 = vmatprep.subr.mxu0 0.0
        %1808 = vmatpush1.msra.mxu0 0.0
        %1809 = vmatprep.subr.mxu0 0.0
        %1810 = vmatpush1.msra.mxu0 0.0
        %1811 = vmatprep.subr.mxu0 0.0
        %1812 = vmatpush1.msra.mxu0 0.0
        %1813 = vmatprep.subr.mxu0 0.0
        %1814 = vmatpush1.msra.mxu0 0.0
        %1815 = vmatprep.subr.mxu0 0.0
        %1816 = vmatpush1.msra.mxu0 0.0
        %1817 = vmatprep.subr.mxu0 0.0
        %1818 = vmatpush1.msra.mxu0 0.0
        %1819 = vmatprep.subr.mxu0 0.0
        %1820 = vmatpush1.msra.mxu0 0.0
        %1821 = vmatprep.subr.mxu0 0.0
        %1822 = vmatpush1.msra.mxu0 0.0
        %1823 = vmatprep.subr.mxu0 0.0
        %1824 = vmatpush1.msra.mxu0 0.0
        %1825 = vmatprep.subr.mxu0 0.0
        %1826 = vmatpush1.msra.mxu0 0.0
        %1827 = vmatprep.subr.mxu0 0.0
        %1828 = vmatpush1.msra.mxu0 0.0
        %1829 = vmatprep.subr.mxu0 0.0
        %1830 = vmatpush1.msra.mxu0 0.0
        %1831 = vmatprep.subr.mxu0 0.0
        %1832 = vmatpush1.msra.mxu0 0.0
        %1833 = vmatprep.subr.mxu0 0.0
        %1834 = vmatpush1.msra.mxu0 0.0
        %1835 = vmatprep.subr.mxu0 0.0
        %1836 = vmatpush1.msra.mxu0 0.0
        %1837 = vmatprep.subr.mxu0 0.0
        %1838 = vmatpush1.msra.mxu0 0.0
        %1839 = vmatprep.subr.mxu0 0.0
        %1840 = vmatpush1.msra.mxu0 0.0
        %1841 = vmatprep.subr.mxu0 0.0
        %1842 = vmatpush1.msra.mxu0 0.0
        %1843 = vmatprep.mubr.f32.mxu0 0.0
        %1844 = vmatmul.mubr.f32.gmra.mrb[0].mxu0 %v1774
        %v1845 = vpop.f32.mrb[0].mxu0
        %v1846 = vadd.f32 %v1763, %v1845
        %v1847 = vpop.f32.mrb[0].mxu0
        %v1848 = vadd.f32 %v1765, %v1847
        %1849 = vmatprep.mubr.f32.mxu0 0.0
        %1850 = vmatmul.mubr.f32.gmra.mrb[0].mxu0 %v1777
        %v1851 = vpop.f32.mrb[0].mxu0
        %v1852 = vadd.f32 %v1769, %v1851
        %v1853 = vpop.f32.mrb[0].mxu0
        %v1854 = vadd.f32 %v1771, %v1853
        %1855 = vdwg.mxu0
        %1856 = vrot.lane.b32.xlu0 %v1648, 15
        %v1857 = vpop.permute.xlu0 %1856
        %1858 = vrot.lane.b32.xlu0 %v1650, 15
        %v1859 = vpop.permute.xlu0 %1858
        %1860 = vrot.lane.b32.xlu0 %v1649, 15
        %v1861 = vpop.permute.xlu0 %1860
        %1862 = vrot.lane.b32.xlu0 %v1651, 15
        %v1863 = vpop.permute.xlu0 %1862
        %v1864 = vsel %vm596, %v1857, %v1861
        %v1865 = vsel %vm596, %v1859, %v1863
        %v1866 = vsel %vm596, %v1861, %v1857
        %v1867 = vsel %vm596, %v1863, %v1859
        %v1868 = vmul.f32 %v1866, %v605
        %v1869 = vmul.f32 %v1864, %v609
        %v1870 = vmul.f32 %v1867, %v605
        %v1871 = vmul.f32 %v1865, %v609
        %s1872 = scalar_lea.vmem %s6, 32
        %v1873 = vld [vmem:[%s1872] sm:$0xff]
        %v1874 = vld [vmem:[%s1872 + $0x8] sm:$0xff]
        %v1876 = vsel %vm1689, %v1873, 0
        %v1879 = vsel %vm1689, %v1874, 0
        %1881 = vmatprep.subr.mxu0 %v1869
        %1882 = vmatpush1.msra.mxu0 %v1868
        %1883 = vmatprep.subr.mxu0 %v1871
        %1884 = vmatpush1.msra.mxu0 %v1870
        %1885 = vmatprep.subr.mxu0 0.0
        %1886 = vmatpush1.msra.mxu0 0.0
        %1887 = vmatprep.subr.mxu0 0.0
        %1888 = vmatpush1.msra.mxu0 0.0
        %1889 = vmatprep.subr.mxu0 0.0
        %1890 = vmatpush1.msra.mxu0 0.0
        %1891 = vmatprep.subr.mxu0 0.0
        %1892 = vmatpush1.msra.mxu0 0.0
        %1893 = vmatprep.subr.mxu0 0.0
        %1894 = vmatpush1.msra.mxu0 0.0
        %1895 = vmatprep.subr.mxu0 0.0
        %1896 = vmatpush1.msra.mxu0 0.0
        %1897 = vmatprep.subr.mxu0 0.0
        %1898 = vmatpush1.msra.mxu0 0.0
        %1899 = vmatprep.subr.mxu0 0.0
        %1900 = vmatpush1.msra.mxu0 0.0
        %1901 = vmatprep.subr.mxu0 0.0
        %1902 = vmatpush1.msra.mxu0 0.0
        %1903 = vmatprep.subr.mxu0 0.0
        %1904 = vmatpush1.msra.mxu0 0.0
        %1905 = vmatprep.subr.mxu0 0.0
        %1906 = vmatpush1.msra.mxu0 0.0
        %1907 = vmatprep.subr.mxu0 0.0
        %1908 = vmatpush1.msra.mxu0 0.0
        %1909 = vmatprep.subr.mxu0 0.0
        %1910 = vmatpush1.msra.mxu0 0.0
        %1911 = vmatprep.subr.mxu0 0.0
        %1912 = vmatpush1.msra.mxu0 0.0
        %1913 = vmatprep.subr.mxu0 0.0
        %1914 = vmatpush1.msra.mxu0 0.0
        %1915 = vmatprep.subr.mxu0 0.0
        %1916 = vmatpush1.msra.mxu0 0.0
        %1917 = vmatprep.subr.mxu0 0.0
        %1918 = vmatpush1.msra.mxu0 0.0
        %1919 = vmatprep.subr.mxu0 0.0
        %1920 = vmatpush1.msra.mxu0 0.0
        %1921 = vmatprep.subr.mxu0 0.0
        %1922 = vmatpush1.msra.mxu0 0.0
        %1923 = vmatprep.subr.mxu0 0.0
        %1924 = vmatpush1.msra.mxu0 0.0
        %1925 = vmatprep.subr.mxu0 0.0
        %1926 = vmatpush1.msra.mxu0 0.0
        %1927 = vmatprep.subr.mxu0 0.0
        %1928 = vmatpush1.msra.mxu0 0.0
        %1929 = vmatprep.subr.mxu0 0.0
        %1930 = vmatpush1.msra.mxu0 0.0
        %1931 = vmatprep.subr.mxu0 0.0
        %1932 = vmatpush1.msra.mxu0 0.0
        %1933 = vmatprep.subr.mxu0 0.0
        %1934 = vmatpush1.msra.mxu0 0.0
        %1935 = vmatprep.subr.mxu0 0.0
        %1936 = vmatpush1.msra.mxu0 0.0
        %1937 = vmatprep.subr.mxu0 0.0
        %1938 = vmatpush1.msra.mxu0 0.0
        %1939 = vmatprep.subr.mxu0 0.0
        %1940 = vmatpush1.msra.mxu0 0.0
        %1941 = vmatprep.subr.mxu0 0.0
        %1942 = vmatpush1.msra.mxu0 0.0
        %1943 = vmatprep.subr.mxu0 0.0
        %1944 = vmatpush1.msra.mxu0 0.0
        %1945 = vmatprep.mubr.f32.mxu0 0.0
        %1946 = vmatmul.mubr.f32.gmra.mrb[0].mxu0 %v1876
        %v1947 = vpop.f32.mrb[0].mxu0
        %v1948 = vadd.f32 0.0, %v1947
        %v1949 = vpop.f32.mrb[0].mxu0
        %v1950 = vadd.f32 0.0, %v1949
        %1951 = vmatprep.mubr.f32.mxu0 0.0
        %1952 = vmatmul.mubr.f32.gmra.mrb[0].mxu0 %v1879
        %v1953 = vpop.f32.mrb[0].mxu0
        %v1954 = vadd.f32 0.0, %v1953
        %v1955 = vpop.f32.mrb[0].mxu0
        %v1956 = vadd.f32 0.0, %v1955
        %1957 = vdwg.mxu0
        %v1958 = vadd.f32 %v1846, %v1948
        %v1959 = vadd.f32 %v1848, %v1950
        %v1960 = vadd.f32 %v1852, %v1954
        %v1961 = vadd.f32 %v1854, %v1956
        %1962 = vrot.lane.b32.xlu0 %v1648, 1
        %v1963 = vpop.permute.xlu0 %1962
        %1964 = vrot.lane.b32.xlu0 %v1650, 1
        %v1965 = vpop.permute.xlu0 %1964
        %1966 = vrot.lane.b32.xlu0 %v1649, 1
        %v1967 = vpop.permute.xlu0 %1966
        %1968 = vrot.lane.b32.xlu0 %v1651, 1
        %v1969 = vpop.permute.xlu0 %1968
        %v1970 = vsel %vm714, %v1963, %v1967
        %v1971 = vsel %vm714, %v1965, %v1969
        %v1972 = vsel %vm714, %v1967, %v1963
        %v1973 = vsel %vm714, %v1969, %v1965
        %v1974 = vmul.f32 %v1972, %v723
        %v1975 = vmul.f32 %v1970, %v727
        %v1976 = vmul.f32 %v1973, %v723
        %v1977 = vmul.f32 %v1971, %v727
        %s1978 = scalar_lea.vmem %s6, 48
        %v1979 = vld [vmem:[%s1978] sm:$0xff]
        %v1980 = vld [vmem:[%s1978 + $0x8] sm:$0xff]
        %v1982 = vsel %vm1689, %v1979, 0
        %v1985 = vsel %vm1689, %v1980, 0
        %1987 = vmatprep.subr.mxu0 %v1975
        %1988 = vmatpush1.msra.mxu0 %v1974
        %1989 = vmatprep.subr.mxu0 %v1977
        %1990 = vmatpush1.msra.mxu0 %v1976
        %1991 = vmatprep.subr.mxu0 0.0
        %1992 = vmatpush1.msra.mxu0 0.0
        %1993 = vmatprep.subr.mxu0 0.0
        %1994 = vmatpush1.msra.mxu0 0.0
        %1995 = vmatprep.subr.mxu0 0.0
        %1996 = vmatpush1.msra.mxu0 0.0
        %1997 = vmatprep.subr.mxu0 0.0
        %1998 = vmatpush1.msra.mxu0 0.0
        %1999 = vmatprep.subr.mxu0 0.0
        %2000 = vmatpush1.msra.mxu0 0.0
        %2001 = vmatprep.subr.mxu0 0.0
        %2002 = vmatpush1.msra.mxu0 0.0
        %2003 = vmatprep.subr.mxu0 0.0
        %2004 = vmatpush1.msra.mxu0 0.0
        %2005 = vmatprep.subr.mxu0 0.0
        %2006 = vmatpush1.msra.mxu0 0.0
        %2007 = vmatprep.subr.mxu0 0.0
        %2008 = vmatpush1.msra.mxu0 0.0
        %2009 = vmatprep.subr.mxu0 0.0
        %2010 = vmatpush1.msra.mxu0 0.0
        %2011 = vmatprep.subr.mxu0 0.0
        %2012 = vmatpush1.msra.mxu0 0.0
        %2013 = vmatprep.subr.mxu0 0.0
        %2014 = vmatpush1.msra.mxu0 0.0
        %2015 = vmatprep.subr.mxu0 0.0
        %2016 = vmatpush1.msra.mxu0 0.0
        %2017 = vmatprep.subr.mxu0 0.0
        %2018 = vmatpush1.msra.mxu0 0.0
        %2019 = vmatprep.subr.mxu0 0.0
        %2020 = vmatpush1.msra.mxu0 0.0
        %2021 = vmatprep.subr.mxu0 0.0
        %2022 = vmatpush1.msra.mxu0 0.0
        %2023 = vmatprep.subr.mxu0 0.0
        %2024 = vmatpush1.msra.mxu0 0.0
        %2025 = vmatprep.subr.mxu0 0.0
        %2026 = vmatpush1.msra.mxu0 0.0
        %2027 = vmatprep.subr.mxu0 0.0
        %2028 = vmatpush1.msra.mxu0 0.0
        %2029 = vmatprep.subr.mxu0 0.0
        %2030 = vmatpush1.msra.mxu0 0.0
        %2031 = vmatprep.subr.mxu0 0.0
        %2032 = vmatpush1.msra.mxu0 0.0
        %2033 = vmatprep.subr.mxu0 0.0
        %2034 = vmatpush1.msra.mxu0 0.0
        %2035 = vmatprep.subr.mxu0 0.0
        %2036 = vmatpush1.msra.mxu0 0.0
        %2037 = vmatprep.subr.mxu0 0.0
        %2038 = vmatpush1.msra.mxu0 0.0
        %2039 = vmatprep.subr.mxu0 0.0
        %2040 = vmatpush1.msra.mxu0 0.0
        %2041 = vmatprep.subr.mxu0 0.0
        %2042 = vmatpush1.msra.mxu0 0.0
        %2043 = vmatprep.subr.mxu0 0.0
        %2044 = vmatpush1.msra.mxu0 0.0
        %2045 = vmatprep.subr.mxu0 0.0
        %2046 = vmatpush1.msra.mxu0 0.0
        %2047 = vmatprep.subr.mxu0 0.0
        %2048 = vmatpush1.msra.mxu0 0.0
        %2049 = vmatprep.subr.mxu0 0.0
        %2050 = vmatpush1.msra.mxu0 0.0
        %2051 = vmatprep.mubr.f32.mxu0 0.0
        %2052 = vmatmul.mubr.f32.gmra.mrb[0].mxu0 %v1982
        %v2053 = vpop.f32.mrb[0].mxu0
        %v2054 = vadd.f32 0.0, %v2053
        %v2055 = vpop.f32.mrb[0].mxu0
        %v2056 = vadd.f32 0.0, %v2055
        %2057 = vmatprep.mubr.f32.mxu0 0.0
        %2058 = vmatmul.mubr.f32.gmra.mrb[0].mxu0 %v1985
        %v2059 = vpop.f32.mrb[0].mxu0
        %v2060 = vadd.f32 0.0, %v2059
        %v2061 = vpop.f32.mrb[0].mxu0
        %v2062 = vadd.f32 0.0, %v2061
        %2063 = vdwg.mxu0
        %v2064 = vadd.f32 %v1958, %v2054
        %v2065 = vadd.f32 %v1959, %v2056
        %v2066 = vadd.f32 %v1960, %v2060
        %v2067 = vadd.f32 %v1961, %v2062
        %s2068 = scalar_lea.vmem %s6, 64
        %v2069 = vld [vmem:[%s2068] sm:$0xff]
        %v2070 = vld [vmem:[%s2068 + $0x8] sm:$0xff]
        %v2072 = vsel %vm1689, %v2069, 0
        %v2075 = vsel %vm1689, %v2070, 0
        %2077 = vmatprep.subr.mxu0 %v1649
        %2078 = vmatpush1.msra.mxu0 %v1648
        %2079 = vmatprep.subr.mxu0 %v1651
        %2080 = vmatpush1.msra.mxu0 %v1650
        %2081 = vmatprep.subr.mxu0 0.0
        %2082 = vmatpush1.msra.mxu0 0.0
        %2083 = vmatprep.subr.mxu0 0.0
        %2084 = vmatpush1.msra.mxu0 0.0
        %2085 = vmatprep.subr.mxu0 0.0
        %2086 = vmatpush1.msra.mxu0 0.0
        %2087 = vmatprep.subr.mxu0 0.0
        %2088 = vmatpush1.msra.mxu0 0.0
        %2089 = vmatprep.subr.mxu0 0.0
        %2090 = vmatpush1.msra.mxu0 0.0
        %2091 = vmatprep.subr.mxu0 0.0
        %2092 = vmatpush1.msra.mxu0 0.0
        %2093 = vmatprep.subr.mxu0 0.0
        %2094 = vmatpush1.msra.mxu0 0.0
        %2095 = vmatprep.subr.mxu0 0.0
        %2096 = vmatpush1.msra.mxu0 0.0
        %2097 = vmatprep.subr.mxu0 0.0
        %2098 = vmatpush1.msra.mxu0 0.0
        %2099 = vmatprep.subr.mxu0 0.0
        %2100 = vmatpush1.msra.mxu0 0.0
        %2101 = vmatprep.subr.mxu0 0.0
        %2102 = vmatpush1.msra.mxu0 0.0
        %2103 = vmatprep.subr.mxu0 0.0
        %2104 = vmatpush1.msra.mxu0 0.0
        %2105 = vmatprep.subr.mxu0 0.0
        %2106 = vmatpush1.msra.mxu0 0.0
        %2107 = vmatprep.subr.mxu0 0.0
        %2108 = vmatpush1.msra.mxu0 0.0
        %2109 = vmatprep.subr.mxu0 0.0
        %2110 = vmatpush1.msra.mxu0 0.0
        %2111 = vmatprep.subr.mxu0 0.0
        %2112 = vmatpush1.msra.mxu0 0.0
        %2113 = vmatprep.subr.mxu0 0.0
        %2114 = vmatpush1.msra.mxu0 0.0
        %2115 = vmatprep.subr.mxu0 0.0
        %2116 = vmatpush1.msra.mxu0 0.0
        %2117 = vmatprep.subr.mxu0 0.0
        %2118 = vmatpush1.msra.mxu0 0.0
        %2119 = vmatprep.subr.mxu0 0.0
        %2120 = vmatpush1.msra.mxu0 0.0
        %2121 = vmatprep.subr.mxu0 0.0
        %2122 = vmatpush1.msra.mxu0 0.0
        %2123 = vmatprep.subr.mxu0 0.0
        %2124 = vmatpush1.msra.mxu0 0.0
        %2125 = vmatprep.subr.mxu0 0.0
        %2126 = vmatpush1.msra.mxu0 0.0
        %2127 = vmatprep.subr.mxu0 0.0
        %2128 = vmatpush1.msra.mxu0 0.0
        %2129 = vmatprep.subr.mxu0 0.0
        %2130 = vmatpush1.msra.mxu0 0.0
        %2131 = vmatprep.subr.mxu0 0.0
        %2132 = vmatpush1.msra.mxu0 0.0
        %2133 = vmatprep.subr.mxu0 0.0
        %2134 = vmatpush1.msra.mxu0 0.0
        %2135 = vmatprep.subr.mxu0 0.0
        %2136 = vmatpush1.msra.mxu0 0.0
        %2137 = vmatprep.subr.mxu0 0.0
        %2138 = vmatpush1.msra.mxu0 0.0
        %2139 = vmatprep.subr.mxu0 0.0
        %2140 = vmatpush1.msra.mxu0 0.0
        %2141 = vmatprep.mubr.f32.mxu0 0.0
        %2142 = vmatmul.mubr.f32.gmra.mrb[0].mxu0 %v2072
        %v2143 = vpop.f32.mrb[0].mxu0
        %v2144 = vadd.f32 0.0, %v2143
        %v2145 = vpop.f32.mrb[0].mxu0
        %v2146 = vadd.f32 0.0, %v2145
        %2147 = vmatprep.mubr.f32.mxu0 0.0
        %2148 = vmatmul.mubr.f32.gmra.mrb[0].mxu0 %v2075
        %v2149 = vpop.f32.mrb[0].mxu0
        %v2150 = vadd.f32 0.0, %v2149
        %v2151 = vpop.f32.mrb[0].mxu0
        %v2152 = vadd.f32 0.0, %v2151
        %2153 = vdwg.mxu0
        %v2154 = vadd.f32 %v2064, %v2144
        %v2155 = vadd.f32 %v2065, %v2146
        %v2156 = vadd.f32 %v2066, %v2150
        %v2157 = vadd.f32 %v2067, %v2152
        %2158 = vrot.lane.b32.xlu0 %v1648, 127
        %v2159 = vpop.permute.xlu0 %2158
        %2160 = vrot.lane.b32.xlu0 %v1650, 127
        %v2161 = vpop.permute.xlu0 %2160
        %2162 = vrot.lane.b32.xlu0 %v1649, 127
        %v2163 = vpop.permute.xlu0 %2162
        %2164 = vrot.lane.b32.xlu0 %v1651, 127
        %v2165 = vpop.permute.xlu0 %2164
        %v2166 = vsel %vm926, %v2159, %v2163
        %v2167 = vsel %vm926, %v2161, %v2165
        %v2168 = vsel %vm926, %v2163, %v2159
        %v2169 = vsel %vm926, %v2165, %v2161
        %v2170 = vmul.f32 %v2166, %v935
        %v2171 = vmul.f32 %v2168, %v939
        %v2172 = vmul.f32 %v2167, %v935
        %v2173 = vmul.f32 %v2169, %v939
        %s2174 = scalar_lea.vmem %s6, 80
        %v2175 = vld [vmem:[%s2174] sm:$0xff]
        %v2176 = vld [vmem:[%s2174 + $0x8] sm:$0xff]
        %v2178 = vsel %vm1689, %v2175, 0
        %v2181 = vsel %vm1689, %v2176, 0
        %2183 = vmatprep.subr.mxu0 %v2171
        %2184 = vmatpush1.msra.mxu0 %v2170
        %2185 = vmatprep.subr.mxu0 %v2173
        %2186 = vmatpush1.msra.mxu0 %v2172
        %2187 = vmatprep.subr.mxu0 0.0
        %2188 = vmatpush1.msra.mxu0 0.0
        %2189 = vmatprep.subr.mxu0 0.0
        %2190 = vmatpush1.msra.mxu0 0.0
        %2191 = vmatprep.subr.mxu0 0.0
        %2192 = vmatpush1.msra.mxu0 0.0
        %2193 = vmatprep.subr.mxu0 0.0
        %2194 = vmatpush1.msra.mxu0 0.0
        %2195 = vmatprep.subr.mxu0 0.0
        %2196 = vmatpush1.msra.mxu0 0.0
        %2197 = vmatprep.subr.mxu0 0.0
        %2198 = vmatpush1.msra.mxu0 0.0
        %2199 = vmatprep.subr.mxu0 0.0
        %2200 = vmatpush1.msra.mxu0 0.0
        %2201 = vmatprep.subr.mxu0 0.0
        %2202 = vmatpush1.msra.mxu0 0.0
        %2203 = vmatprep.subr.mxu0 0.0
        %2204 = vmatpush1.msra.mxu0 0.0
        %2205 = vmatprep.subr.mxu0 0.0
        %2206 = vmatpush1.msra.mxu0 0.0
        %2207 = vmatprep.subr.mxu0 0.0
        %2208 = vmatpush1.msra.mxu0 0.0
        %2209 = vmatprep.subr.mxu0 0.0
        %2210 = vmatpush1.msra.mxu0 0.0
        %2211 = vmatprep.subr.mxu0 0.0
        %2212 = vmatpush1.msra.mxu0 0.0
        %2213 = vmatprep.subr.mxu0 0.0
        %2214 = vmatpush1.msra.mxu0 0.0
        %2215 = vmatprep.subr.mxu0 0.0
        %2216 = vmatpush1.msra.mxu0 0.0
        %2217 = vmatprep.subr.mxu0 0.0
        %2218 = vmatpush1.msra.mxu0 0.0
        %2219 = vmatprep.subr.mxu0 0.0
        %2220 = vmatpush1.msra.mxu0 0.0
        %2221 = vmatprep.subr.mxu0 0.0
        %2222 = vmatpush1.msra.mxu0 0.0
        %2223 = vmatprep.subr.mxu0 0.0
        %2224 = vmatpush1.msra.mxu0 0.0
        %2225 = vmatprep.subr.mxu0 0.0
        %2226 = vmatpush1.msra.mxu0 0.0
        %2227 = vmatprep.subr.mxu0 0.0
        %2228 = vmatpush1.msra.mxu0 0.0
        %2229 = vmatprep.subr.mxu0 0.0
        %2230 = vmatpush1.msra.mxu0 0.0
        %2231 = vmatprep.subr.mxu0 0.0
        %2232 = vmatpush1.msra.mxu0 0.0
        %2233 = vmatprep.subr.mxu0 0.0
        %2234 = vmatpush1.msra.mxu0 0.0
        %2235 = vmatprep.subr.mxu0 0.0
        %2236 = vmatpush1.msra.mxu0 0.0
        %2237 = vmatprep.subr.mxu0 0.0
        %2238 = vmatpush1.msra.mxu0 0.0
        %2239 = vmatprep.subr.mxu0 0.0
        %2240 = vmatpush1.msra.mxu0 0.0
        %2241 = vmatprep.subr.mxu0 0.0
        %2242 = vmatpush1.msra.mxu0 0.0
        %2243 = vmatprep.subr.mxu0 0.0
        %2244 = vmatpush1.msra.mxu0 0.0
        %2245 = vmatprep.subr.mxu0 0.0
        %2246 = vmatpush1.msra.mxu0 0.0
        %2247 = vmatprep.mubr.f32.mxu0 0.0
        %2248 = vmatmul.mubr.f32.gmra.mrb[0].mxu0 %v2178
        %v2249 = vpop.f32.mrb[0].mxu0
        %v2250 = vadd.f32 0.0, %v2249
        %v2251 = vpop.f32.mrb[0].mxu0
        %v2252 = vadd.f32 0.0, %v2251
        %2253 = vmatprep.mubr.f32.mxu0 0.0
        %2254 = vmatmul.mubr.f32.gmra.mrb[0].mxu0 %v2181
        %v2255 = vpop.f32.mrb[0].mxu0
        %v2256 = vadd.f32 0.0, %v2255
        %v2257 = vpop.f32.mrb[0].mxu0
        %v2258 = vadd.f32 0.0, %v2257
        %2259 = vdwg.mxu0
        %v2260 = vadd.f32 %v2154, %v2250
        %v2261 = vadd.f32 %v2155, %v2252
        %v2262 = vadd.f32 %v2156, %v2256
        %v2263 = vadd.f32 %v2157, %v2258
        %2264 = vrot.lane.b32.xlu0 %v1648, 113
        %v2265 = vpop.permute.xlu0 %2264
        %2266 = vrot.lane.b32.xlu0 %v1650, 113
        %v2267 = vpop.permute.xlu0 %2266
        %2268 = vrot.lane.b32.xlu0 %v1649, 113
        %v2269 = vpop.permute.xlu0 %2268
        %2270 = vrot.lane.b32.xlu0 %v1651, 113
        %v2271 = vpop.permute.xlu0 %2270
        %v2272 = vsel %vm1044, %v2265, %v2269
        %v2273 = vsel %vm1044, %v2267, %v2271
        %v2274 = vsel %vm1044, %v2269, %v2265
        %v2275 = vsel %vm1044, %v2271, %v2267
        %v2276 = vmul.f32 %v2272, %v1053
        %v2277 = vmul.f32 %v2274, %v1057
        %v2278 = vmul.f32 %v2273, %v1053
        %v2279 = vmul.f32 %v2275, %v1057
        %s2280 = scalar_lea.vmem %s6, 96
        %v2281 = vld [vmem:[%s2280] sm:$0xff]
        %v2282 = vld [vmem:[%s2280 + $0x8] sm:$0xff]
        %v2284 = vsel %vm1689, %v2281, 0
        %v2287 = vsel %vm1689, %v2282, 0
        %2289 = vmatprep.subr.mxu0 %v2277
        %2290 = vmatpush1.msra.mxu0 %v2276
        %2291 = vmatprep.subr.mxu0 %v2279
        %2292 = vmatpush1.msra.mxu0 %v2278
        %2293 = vmatprep.subr.mxu0 0.0
        %2294 = vmatpush1.msra.mxu0 0.0
        %2295 = vmatprep.subr.mxu0 0.0
        %2296 = vmatpush1.msra.mxu0 0.0
        %2297 = vmatprep.subr.mxu0 0.0
        %2298 = vmatpush1.msra.mxu0 0.0
        %2299 = vmatprep.subr.mxu0 0.0
        %2300 = vmatpush1.msra.mxu0 0.0
        %2301 = vmatprep.subr.mxu0 0.0
        %2302 = vmatpush1.msra.mxu0 0.0
        %2303 = vmatprep.subr.mxu0 0.0
        %2304 = vmatpush1.msra.mxu0 0.0
        %2305 = vmatprep.subr.mxu0 0.0
        %2306 = vmatpush1.msra.mxu0 0.0
        %2307 = vmatprep.subr.mxu0 0.0
        %2308 = vmatpush1.msra.mxu0 0.0
        %2309 = vmatprep.subr.mxu0 0.0
        %2310 = vmatpush1.msra.mxu0 0.0
        %2311 = vmatprep.subr.mxu0 0.0
        %2312 = vmatpush1.msra.mxu0 0.0
        %2313 = vmatprep.subr.mxu0 0.0
        %2314 = vmatpush1.msra.mxu0 0.0
        %2315 = vmatprep.subr.mxu0 0.0
        %2316 = vmatpush1.msra.mxu0 0.0
        %2317 = vmatprep.subr.mxu0 0.0
        %2318 = vmatpush1.msra.mxu0 0.0
        %2319 = vmatprep.subr.mxu0 0.0
        %2320 = vmatpush1.msra.mxu0 0.0
        %2321 = vmatprep.subr.mxu0 0.0
        %2322 = vmatpush1.msra.mxu0 0.0
        %2323 = vmatprep.subr.mxu0 0.0
        %2324 = vmatpush1.msra.mxu0 0.0
        %2325 = vmatprep.subr.mxu0 0.0
        %2326 = vmatpush1.msra.mxu0 0.0
        %2327 = vmatprep.subr.mxu0 0.0
        %2328 = vmatpush1.msra.mxu0 0.0
        %2329 = vmatprep.subr.mxu0 0.0
        %2330 = vmatpush1.msra.mxu0 0.0
        %2331 = vmatprep.subr.mxu0 0.0
        %2332 = vmatpush1.msra.mxu0 0.0
        %2333 = vmatprep.subr.mxu0 0.0
        %2334 = vmatpush1.msra.mxu0 0.0
        %2335 = vmatprep.subr.mxu0 0.0
        %2336 = vmatpush1.msra.mxu0 0.0
        %2337 = vmatprep.subr.mxu0 0.0
        %2338 = vmatpush1.msra.mxu0 0.0
        %2339 = vmatprep.subr.mxu0 0.0
        %2340 = vmatpush1.msra.mxu0 0.0
        %2341 = vmatprep.subr.mxu0 0.0
        %2342 = vmatpush1.msra.mxu0 0.0
        %2343 = vmatprep.subr.mxu0 0.0
        %2344 = vmatpush1.msra.mxu0 0.0
        %2345 = vmatprep.subr.mxu0 0.0
        %2346 = vmatpush1.msra.mxu0 0.0
        %2347 = vmatprep.subr.mxu0 0.0
        %2348 = vmatpush1.msra.mxu0 0.0
        %2349 = vmatprep.subr.mxu0 0.0
        %2350 = vmatpush1.msra.mxu0 0.0
        %2351 = vmatprep.subr.mxu0 0.0
        %2352 = vmatpush1.msra.mxu0 0.0
        %2353 = vmatprep.mubr.f32.mxu0 0.0
        %2354 = vmatmul.mubr.f32.gmra.mrb[0].mxu0 %v2284
        %v2355 = vpop.f32.mrb[0].mxu0
        %v2356 = vadd.f32 0.0, %v2355
        %v2357 = vpop.f32.mrb[0].mxu0
        %v2358 = vadd.f32 0.0, %v2357
        %2359 = vmatprep.mubr.f32.mxu0 0.0
        %2360 = vmatmul.mubr.f32.gmra.mrb[0].mxu0 %v2287
        %v2361 = vpop.f32.mrb[0].mxu0
        %v2362 = vadd.f32 0.0, %v2361
        %v2363 = vpop.f32.mrb[0].mxu0
        %v2364 = vadd.f32 0.0, %v2363
        %2365 = vdwg.mxu0
        %v2366 = vadd.f32 %v2260, %v2356
        %v2367 = vadd.f32 %v2261, %v2358
        %v2368 = vadd.f32 %v2262, %v2362
        %v2369 = vadd.f32 %v2263, %v2364
        %2370 = vrot.lane.b32.xlu0 %v1648, 112
        %v2371 = vpop.permute.xlu0 %2370
        %2372 = vrot.lane.b32.xlu0 %v1650, 112
        %v2373 = vpop.permute.xlu0 %2372
        %2374 = vrot.lane.b32.xlu0 %v1649, 112
        %v2375 = vpop.permute.xlu0 %2374
        %2376 = vrot.lane.b32.xlu0 %v1651, 112
        %v2377 = vpop.permute.xlu0 %2376
        %v2378 = vsel %vm1162, %v2371, %v2375
        %v2379 = vsel %vm1162, %v2373, %v2377
        %v2380 = vsel %vm1162, %v2375, %v2371
        %v2381 = vsel %vm1162, %v2377, %v2373
        %v2382 = vmul.f32 %v2378, %v1171
        %v2383 = vmul.f32 %v2380, %v1175
        %v2384 = vmul.f32 %v2379, %v1171
        %v2385 = vmul.f32 %v2381, %v1175
        %s2386 = scalar_lea.vmem %s6, 112
        %v2387 = vld [vmem:[%s2386] sm:$0xff]
        %v2388 = vld [vmem:[%s2386 + $0x8] sm:$0xff]
        %v2390 = vsel %vm1689, %v2387, 0
        %v2393 = vsel %vm1689, %v2388, 0
        %2395 = vmatprep.subr.mxu0 %v2383
        %2396 = vmatpush1.msra.mxu0 %v2382
        %2397 = vmatprep.subr.mxu0 %v2385
        %2398 = vmatpush1.msra.mxu0 %v2384
        %2399 = vmatprep.subr.mxu0 0.0
        %2400 = vmatpush1.msra.mxu0 0.0
        %2401 = vmatprep.subr.mxu0 0.0
        %2402 = vmatpush1.msra.mxu0 0.0
        %2403 = vmatprep.subr.mxu0 0.0
        %2404 = vmatpush1.msra.mxu0 0.0
        %2405 = vmatprep.subr.mxu0 0.0
        %2406 = vmatpush1.msra.mxu0 0.0
        %2407 = vmatprep.subr.mxu0 0.0
        %2408 = vmatpush1.msra.mxu0 0.0
        %2409 = vmatprep.subr.mxu0 0.0
        %2410 = vmatpush1.msra.mxu0 0.0
        %2411 = vmatprep.subr.mxu0 0.0
        %2412 = vmatpush1.msra.mxu0 0.0
        %2413 = vmatprep.subr.mxu0 0.0
        %2414 = vmatpush1.msra.mxu0 0.0
        %2415 = vmatprep.subr.mxu0 0.0
        %2416 = vmatpush1.msra.mxu0 0.0
        %2417 = vmatprep.subr.mxu0 0.0
        %2418 = vmatpush1.msra.mxu0 0.0
        %2419 = vmatprep.subr.mxu0 0.0
        %2420 = vmatpush1.msra.mxu0 0.0
        %2421 = vmatprep.subr.mxu0 0.0
        %2422 = vmatpush1.msra.mxu0 0.0
        %2423 = vmatprep.subr.mxu0 0.0
        %2424 = vmatpush1.msra.mxu0 0.0
        %2425 = vmatprep.subr.mxu0 0.0
        %2426 = vmatpush1.msra.mxu0 0.0
        %2427 = vmatprep.subr.mxu0 0.0
        %2428 = vmatpush1.msra.mxu0 0.0
        %2429 = vmatprep.subr.mxu0 0.0
        %2430 = vmatpush1.msra.mxu0 0.0
        %2431 = vmatprep.subr.mxu0 0.0
        %2432 = vmatpush1.msra.mxu0 0.0
        %2433 = vmatprep.subr.mxu0 0.0
        %2434 = vmatpush1.msra.mxu0 0.0
        %2435 = vmatprep.subr.mxu0 0.0
        %2436 = vmatpush1.msra.mxu0 0.0
        %2437 = vmatprep.subr.mxu0 0.0
        %2438 = vmatpush1.msra.mxu0 0.0
        %2439 = vmatprep.subr.mxu0 0.0
        %2440 = vmatpush1.msra.mxu0 0.0
        %2441 = vmatprep.subr.mxu0 0.0
        %2442 = vmatpush1.msra.mxu0 0.0
        %2443 = vmatprep.subr.mxu0 0.0
        %2444 = vmatpush1.msra.mxu0 0.0
        %2445 = vmatprep.subr.mxu0 0.0
        %2446 = vmatpush1.msra.mxu0 0.0
        %2447 = vmatprep.subr.mxu0 0.0
        %2448 = vmatpush1.msra.mxu0 0.0
        %2449 = vmatprep.subr.mxu0 0.0
        %2450 = vmatpush1.msra.mxu0 0.0
        %2451 = vmatprep.subr.mxu0 0.0
        %2452 = vmatpush1.msra.mxu0 0.0
        %2453 = vmatprep.subr.mxu0 0.0
        %2454 = vmatpush1.msra.mxu0 0.0
        %2455 = vmatprep.subr.mxu0 0.0
        %2456 = vmatpush1.msra.mxu0 0.0
        %2457 = vmatprep.subr.mxu0 0.0
        %2458 = vmatpush1.msra.mxu0 0.0
        %2459 = vmatprep.mubr.f32.mxu0 0.0
        %2460 = vmatmul.mubr.f32.gmra.mrb[0].mxu0 %v2390
        %v2461 = vpop.f32.mrb[0].mxu0
        %v2462 = vadd.f32 0.0, %v2461
        %v2463 = vpop.f32.mrb[0].mxu0
        %v2464 = vadd.f32 0.0, %v2463
        %2465 = vmatprep.mubr.f32.mxu0 0.0
        %2466 = vmatmul.mubr.f32.gmra.mrb[0].mxu0 %v2393
        %v2467 = vpop.f32.mrb[0].mxu0
        %v2468 = vadd.f32 0.0, %v2467
        %v2469 = vpop.f32.mrb[0].mxu0
        %v2470 = vadd.f32 0.0, %v2469
        %2471 = vdwg.mxu0
        %v2472 = vadd.f32 %v2366, %v2462
        %v2473 = vadd.f32 %v2367, %v2464
        %v2474 = vadd.f32 %v2368, %v2468
        %v2475 = vadd.f32 %v2369, %v2470
        %2476 = vrot.lane.b32.xlu0 %v1648, 111
        %v2477 = vpop.permute.xlu0 %2476
        %2478 = vrot.lane.b32.xlu0 %v1650, 111
        %v2479 = vpop.permute.xlu0 %2478
        %2480 = vrot.lane.b32.xlu0 %v1649, 111
        %v2481 = vpop.permute.xlu0 %2480
        %2482 = vrot.lane.b32.xlu0 %v1651, 111
        %v2483 = vpop.permute.xlu0 %2482
        %v2484 = vsel %vm1280, %v2477, %v2481
        %v2485 = vsel %vm1280, %v2479, %v2483
        %v2486 = vsel %vm1280, %v2481, %v2477
        %v2487 = vsel %vm1280, %v2483, %v2479
        %v2488 = vmul.f32 %v2484, %v1289
        %v2489 = vmul.f32 %v2486, %v1293
        %v2490 = vmul.f32 %v2485, %v1289
        %v2491 = vmul.f32 %v2487, %v1293
        %s2492 = scalar_lea.vmem %s6, 128
        %v2493 = vld [vmem:[%s2492] sm:$0xff]
        %v2494 = vld [vmem:[%s2492 + $0x8] sm:$0xff]
        %v2496 = vsel %vm1689, %v2493, 0
        %v2499 = vsel %vm1689, %v2494, 0
        %2501 = vmatprep.subr.mxu0 %v2489
        %2502 = vmatpush1.msra.mxu0 %v2488
        %2503 = vmatprep.subr.mxu0 %v2491
        %2504 = vmatpush1.msra.mxu0 %v2490
        %2505 = vmatprep.subr.mxu0 0.0
        %2506 = vmatpush1.msra.mxu0 0.0
        %2507 = vmatprep.subr.mxu0 0.0
        %2508 = vmatpush1.msra.mxu0 0.0
        %2509 = vmatprep.subr.mxu0 0.0
        %2510 = vmatpush1.msra.mxu0 0.0
        %2511 = vmatprep.subr.mxu0 0.0
        %2512 = vmatpush1.msra.mxu0 0.0
        %2513 = vmatprep.subr.mxu0 0.0
        %2514 = vmatpush1.msra.mxu0 0.0
        %2515 = vmatprep.subr.mxu0 0.0
        %2516 = vmatpush1.msra.mxu0 0.0
        %2517 = vmatprep.subr.mxu0 0.0
        %2518 = vmatpush1.msra.mxu0 0.0
        %2519 = vmatprep.subr.mxu0 0.0
        %2520 = vmatpush1.msra.mxu0 0.0
        %2521 = vmatprep.subr.mxu0 0.0
        %2522 = vmatpush1.msra.mxu0 0.0
        %2523 = vmatprep.subr.mxu0 0.0
        %2524 = vmatpush1.msra.mxu0 0.0
        %2525 = vmatprep.subr.mxu0 0.0
        %2526 = vmatpush1.msra.mxu0 0.0
        %2527 = vmatprep.subr.mxu0 0.0
        %2528 = vmatpush1.msra.mxu0 0.0
        %2529 = vmatprep.subr.mxu0 0.0
        %2530 = vmatpush1.msra.mxu0 0.0
        %2531 = vmatprep.subr.mxu0 0.0
        %2532 = vmatpush1.msra.mxu0 0.0
        %2533 = vmatprep.subr.mxu0 0.0
        %2534 = vmatpush1.msra.mxu0 0.0
        %2535 = vmatprep.subr.mxu0 0.0
        %2536 = vmatpush1.msra.mxu0 0.0
        %2537 = vmatprep.subr.mxu0 0.0
        %2538 = vmatpush1.msra.mxu0 0.0
        %2539 = vmatprep.subr.mxu0 0.0
        %2540 = vmatpush1.msra.mxu0 0.0
        %2541 = vmatprep.subr.mxu0 0.0
        %2542 = vmatpush1.msra.mxu0 0.0
        %2543 = vmatprep.subr.mxu0 0.0
        %2544 = vmatpush1.msra.mxu0 0.0
        %2545 = vmatprep.subr.mxu0 0.0
        %2546 = vmatpush1.msra.mxu0 0.0
        %2547 = vmatprep.subr.mxu0 0.0
        %2548 = vmatpush1.msra.mxu0 0.0
        %2549 = vmatprep.subr.mxu0 0.0
        %2550 = vmatpush1.msra.mxu0 0.0
        %2551 = vmatprep.subr.mxu0 0.0
        %2552 = vmatpush1.msra.mxu0 0.0
        %2553 = vmatprep.subr.mxu0 0.0
        %2554 = vmatpush1.msra.mxu0 0.0
        %2555 = vmatprep.subr.mxu0 0.0
        %2556 = vmatpush1.msra.mxu0 0.0
        %2557 = vmatprep.subr.mxu0 0.0
        %2558 = vmatpush1.msra.mxu0 0.0
        %2559 = vmatprep.subr.mxu0 0.0
        %2560 = vmatpush1.msra.mxu0 0.0
        %2561 = vmatprep.subr.mxu0 0.0
        %2562 = vmatpush1.msra.mxu0 0.0
        %2563 = vmatprep.subr.mxu0 0.0
        %2564 = vmatpush1.msra.mxu0 0.0
        %2565 = vmatprep.mubr.f32.mxu0 0.0
        %2566 = vmatmul.mubr.f32.gmra.mrb[0].mxu0 %v2496
        %v2567 = vpop.f32.mrb[0].mxu0
        %v2568 = vadd.f32 0.0, %v2567
        %v2569 = vpop.f32.mrb[0].mxu0
        %v2570 = vadd.f32 0.0, %v2569
        %2571 = vmatprep.mubr.f32.mxu0 0.0
        %2572 = vmatmul.mubr.f32.gmra.mrb[0].mxu0 %v2499
        %v2573 = vpop.f32.mrb[0].mxu0
        %v2574 = vadd.f32 0.0, %v2573
        %v2575 = vpop.f32.mrb[0].mxu0
        %v2576 = vadd.f32 0.0, %v2575
        %2577 = vdwg.mxu0
        %v2578 = vadd.f32 %v2472, %v2568
        %v2579 = vadd.f32 %v2473, %v2570
        %v2580 = vadd.f32 %v2474, %v2574
        %v2581 = vadd.f32 %v2475, %v2576
        %v2582 = vld [vmem:[%s7] sm:$0xff]
        %v2583 = vld [vmem:[%s7 + $0x8] sm:$0xff]
        %2585 = vset.pattern.permute.xlu0 0
        %2586 = vperm.xlu0 %2585, %v2582
        %v2587 = vpop.permute.xlu0 %2586
        %2590 = vset.pattern.permute.xlu0 0
        %2591 = vperm.xlu0 %2590, %v2583
        %v2592 = vpop.permute.xlu0 %2591
        %v2594 = vadd.f32 %v2578, %v2587
        %v2595 = vadd.f32 %v2579, %v2587
        %v2596 = vadd.f32 %v2580, %v2592
        %v2597 = vadd.f32 %v2581, %v2592
        %v2598 = vld [vmem:[%s8] sm:$0xff]
        %v2599 = vld [vmem:[%s8 + $0x8] sm:$0xff]
        %v2600 = vld [vmem:[%s9] sm:$0xff]
        %v2601 = vld [vmem:[%s9 + $0x8] sm:$0xff]
        %v2602 = vadd.f32 %v2594, %v2595
        %2603 = vadd.xlane.f32.xlu0 %v2602
        %v2604 = vpop.xlane.xlu0 %2603
        %v2605 = vadd.f32 %v2596, %v2597
        %2606 = vadd.xlane.f32.xlu0 %v2605
        %v2607 = vpop.xlane.xlu0 %2606
        %v2608 = vsel %vm1420, %v2604, 0.0
        %v2609 = vrot.slane %v2608, 4
        %v2610 = vadd.f32 %v2608, %v2609
        %v2611 = vrot.slane %v2610, 2
        %v2612 = vadd.f32 %v2610, %v2611
        %v2613 = vrot.slane %v2612, 1
        %v2614 = vadd.f32 %v2612, %v2613
        %v2616 = vrot.slane %v2604, 2
        %v2618 = vsel %vm1420, %v2616, 0.0
        %v2619 = vrot.slane %v2618, 4
        %v2620 = vadd.f32 %v2618, %v2619
        %v2621 = vrot.slane %v2620, 2
        %v2622 = vadd.f32 %v2620, %v2621
        %v2623 = vrot.slane %v2622, 1
        %v2624 = vadd.f32 %v2622, %v2623
        %v2625 = vrot.slane %v2604, 4
        %v2627 = vsel %vm1420, %v2625, 0.0
        %v2628 = vrot.slane %v2627, 4
        %v2629 = vadd.f32 %v2627, %v2628
        %v2630 = vrot.slane %v2629, 2
        %v2631 = vadd.f32 %v2629, %v2630
        %v2632 = vrot.slane %v2631, 1
        %v2633 = vadd.f32 %v2631, %v2632
        %v2634 = vrot.slane %v2604, 6
        %v2636 = vsel %vm1420, %v2634, 0.0
        %v2637 = vrot.slane %v2636, 4
        %v2638 = vadd.f32 %v2636, %v2637
        %v2639 = vrot.slane %v2638, 2
        %v2640 = vadd.f32 %v2638, %v2639
        %v2641 = vrot.slane %v2640, 1
        %v2642 = vadd.f32 %v2640, %v2641
        %v2643 = vsel %vm1420, %v2607, 0.0
        %v2644 = vrot.slane %v2643, 4
        %v2645 = vadd.f32 %v2643, %v2644
        %v2646 = vrot.slane %v2645, 2
        %v2647 = vadd.f32 %v2645, %v2646
        %v2648 = vrot.slane %v2647, 1
        %v2649 = vadd.f32 %v2647, %v2648
        %v2651 = vrot.slane %v2607, 2
        %v2653 = vsel %vm1420, %v2651, 0.0
        %v2654 = vrot.slane %v2653, 4
        %v2655 = vadd.f32 %v2653, %v2654
        %v2656 = vrot.slane %v2655, 2
        %v2657 = vadd.f32 %v2655, %v2656
        %v2658 = vrot.slane %v2657, 1
        %v2659 = vadd.f32 %v2657, %v2658
        %v2660 = vrot.slane %v2607, 4
        %v2662 = vsel %vm1420, %v2660, 0.0
        %v2663 = vrot.slane %v2662, 4
        %v2664 = vadd.f32 %v2662, %v2663
        %v2665 = vrot.slane %v2664, 2
        %v2666 = vadd.f32 %v2664, %v2665
        %v2667 = vrot.slane %v2666, 1
        %v2668 = vadd.f32 %v2666, %v2667
        %v2669 = vrot.slane %v2607, 6
        %v2671 = vsel %vm1420, %v2669, 0.0
        %v2672 = vrot.slane %v2671, 4
        %v2673 = vadd.f32 %v2671, %v2672
        %v2674 = vrot.slane %v2673, 2
        %v2675 = vadd.f32 %v2673, %v2674
        %v2676 = vrot.slane %v2675, 1
        %v2677 = vadd.f32 %v2675, %v2676
        %v2678 = vsel %vm1420, %v2614, %v2624
        %v2679 = vsel %vm419, %v2678, %v2633
        %v2680 = vsel %vm1493, %v2679, %v2642
        %v2681 = vsel %vm1420, %v2649, %v2659
        %v2682 = vsel %vm419, %v2681, %v2668
        %v2683 = vsel %vm1493, %v2682, %v2677
        %v2684 = vmul.f32 %v2680, 0.001953125
        %v2685 = vmul.f32 %v2683, 0.001953125
        %2687 = vset.pattern.permute.xlu0 0
        %2688 = vperm.xlu0 %2687, %v2684
        %v2689 = vpop.permute.xlu0 %2688
        %2692 = vset.pattern.permute.xlu0 0
        %2693 = vperm.xlu0 %2692, %v2685
        %v2694 = vpop.permute.xlu0 %2693
        %v2696 = vsub.f32 %v2594, %v2689
        %v2697 = vsub.f32 %v2595, %v2689
        %v2698 = vsub.f32 %v2596, %v2694
        %v2699 = vsub.f32 %v2597, %v2694
        %v2700 = vmul.f32 %v2696, %v2696
        %v2701 = vmul.f32 %v2697, %v2697
        %v2702 = vmul.f32 %v2698, %v2698
        %v2703 = vmul.f32 %v2699, %v2699
        %v2704 = vadd.f32 %v2700, %v2701
        %2705 = vadd.xlane.f32.xlu0 %v2704
        %v2706 = vpop.xlane.xlu0 %2705
        %v2707 = vadd.f32 %v2702, %v2703
        %2708 = vadd.xlane.f32.xlu0 %v2707
        %v2709 = vpop.xlane.xlu0 %2708
        %v2710 = vsel %vm1420, %v2706, 0.0
        %v2711 = vrot.slane %v2710, 4
        %v2712 = vadd.f32 %v2710, %v2711
        %v2713 = vrot.slane %v2712, 2
        %v2714 = vadd.f32 %v2712, %v2713
        %v2715 = vrot.slane %v2714, 1
        %v2716 = vadd.f32 %v2714, %v2715
        %v2718 = vrot.slane %v2706, 2
        %v2720 = vsel %vm1420, %v2718, 0.0
        %v2721 = vrot.slane %v2720, 4
        %v2722 = vadd.f32 %v2720, %v2721
        %v2723 = vrot.slane %v2722, 2
        %v2724 = vadd.f32 %v2722, %v2723
        %v2725 = vrot.slane %v2724, 1
        %v2726 = vadd.f32 %v2724, %v2725
        %v2727 = vrot.slane %v2706, 4
        %v2729 = vsel %vm1420, %v2727, 0.0
        %v2730 = vrot.slane %v2729, 4
        %v2731 = vadd.f32 %v2729, %v2730
        %v2732 = vrot.slane %v2731, 2
        %v2733 = vadd.f32 %v2731, %v2732
        %v2734 = vrot.slane %v2733, 1
        %v2735 = vadd.f32 %v2733, %v2734
        %v2736 = vrot.slane %v2706, 6
        %v2738 = vsel %vm1420, %v2736, 0.0
        %v2739 = vrot.slane %v2738, 4
        %v2740 = vadd.f32 %v2738, %v2739
        %v2741 = vrot.slane %v2740, 2
        %v2742 = vadd.f32 %v2740, %v2741
        %v2743 = vrot.slane %v2742, 1
        %v2744 = vadd.f32 %v2742, %v2743
        %v2745 = vsel %vm1420, %v2709, 0.0
        %v2746 = vrot.slane %v2745, 4
        %v2747 = vadd.f32 %v2745, %v2746
        %v2748 = vrot.slane %v2747, 2
        %v2749 = vadd.f32 %v2747, %v2748
        %v2750 = vrot.slane %v2749, 1
        %v2751 = vadd.f32 %v2749, %v2750
        %v2753 = vrot.slane %v2709, 2
        %v2755 = vsel %vm1420, %v2753, 0.0
        %v2756 = vrot.slane %v2755, 4
        %v2757 = vadd.f32 %v2755, %v2756
        %v2758 = vrot.slane %v2757, 2
        %v2759 = vadd.f32 %v2757, %v2758
        %v2760 = vrot.slane %v2759, 1
        %v2761 = vadd.f32 %v2759, %v2760
        %v2762 = vrot.slane %v2709, 4
        %v2764 = vsel %vm1420, %v2762, 0.0
        %v2765 = vrot.slane %v2764, 4
        %v2766 = vadd.f32 %v2764, %v2765
        %v2767 = vrot.slane %v2766, 2
        %v2768 = vadd.f32 %v2766, %v2767
        %v2769 = vrot.slane %v2768, 1
        %v2770 = vadd.f32 %v2768, %v2769
        %v2771 = vrot.slane %v2709, 6
        %v2773 = vsel %vm1420, %v2771, 0.0
        %v2774 = vrot.slane %v2773, 4
        %v2775 = vadd.f32 %v2773, %v2774
        %v2776 = vrot.slane %v2775, 2
        %v2777 = vadd.f32 %v2775, %v2776
        %v2778 = vrot.slane %v2777, 1
        %v2779 = vadd.f32 %v2777, %v2778
        %v2780 = vsel %vm1420, %v2716, %v2726
        %v2781 = vsel %vm419, %v2780, %v2735
        %v2782 = vsel %vm1493, %v2781, %v2744
        %v2783 = vsel %vm1420, %v2751, %v2761
        %v2784 = vsel %vm419, %v2783, %v2770
        %v2785 = vsel %vm1493, %v2784, %v2779
        %v2786 = vmul.f32 %v2782, 0.001953125
        %v2787 = vmul.f32 %v2785, 0.001953125
        %v2788 = vadd.f32 %v2786, 1e-05
        %v2789 = vadd.f32 %v2787, 1e-05
        %v2790 = vrsqrt.pop %v2788
        %v2791 = vrsqrt.pop %v2789
        %2793 = vset.pattern.permute.xlu0 0
        %2794 = vperm.xlu0 %2793, %v2790
        %v2795 = vpop.permute.xlu0 %2794
        %2798 = vset.pattern.permute.xlu0 0
        %2799 = vperm.xlu0 %2798, %v2791
        %v2800 = vpop.permute.xlu0 %2799
        %v2802 = vmul.f32 %v2696, %v2795
        %v2803 = vmul.f32 %v2697, %v2795
        %v2804 = vmul.f32 %v2698, %v2800
        %v2805 = vmul.f32 %v2699, %v2800
        %2807 = vset.pattern.permute.xlu0 0
        %2808 = vperm.xlu0 %2807, %v2598
        %v2809 = vpop.permute.xlu0 %2808
        %2812 = vset.pattern.permute.xlu0 0
        %2813 = vperm.xlu0 %2812, %v2599
        %v2814 = vpop.permute.xlu0 %2813
        %v2816 = vmul.f32 %v2802, %v2809
        %v2817 = vmul.f32 %v2803, %v2809
        %v2818 = vmul.f32 %v2804, %v2814
        %v2819 = vmul.f32 %v2805, %v2814
        %2821 = vset.pattern.permute.xlu0 0
        %2822 = vperm.xlu0 %2821, %v2600
        %v2823 = vpop.permute.xlu0 %2822
        %2826 = vset.pattern.permute.xlu0 0
        %2827 = vperm.xlu0 %2826, %v2601
        %v2828 = vpop.permute.xlu0 %2827
        %v2830 = vadd.f32 %v2816, %v2823
        %v2831 = vadd.f32 %v2817, %v2823
        %v2832 = vadd.f32 %v2818, %v2828
        %v2833 = vadd.f32 %v2819, %v2828
        %v2834 = vmax.f32 %v2830, 0.0
        %v2835 = vmax.f32 %v2831, 0.0
        %v2836 = vmax.f32 %v2832, 0.0
        %v2837 = vmax.f32 %v2833, 0.0
        %2838 = vst [vmem:[%s352] sm:$0xff] %v2834
        %2839 = vst [vmem:[%s352 + $0x8] sm:$0xff] %v2835
        %2840 = vst [vmem:[%s352 + $0x10] sm:$0xff] %v2836
        %2841 = vst [vmem:[%s352 + $0x18] sm:$0xff] %v2837
        %s2842 = sand.u32 %s247, 1
        %s2843 = scalar_lea.sflag [#allocation3], %s2842
        %s2844 = sand.u32 %s247, 1
        %s2845 = smul.addr %s2844, 32
        %s2846 = scalar_lea.vmem [#allocation2], %s2845
        // Predicated region
        $region61: #{tpu_custom_call.1} parent=59 // pred_check
          %p2847 = pneg %p257
        $region62: #{tpu_custom_call.1} parent=59 // pred_check_branch
          %2849 = sbr.rel (%p2847) target = $region64
        $region63: #{tpu_custom_call.1} parent=59 // pred_region
          %s2851 = ssub.s32 512, 512
          %2852 = vsyncadd %s2843, %s2851
          %s2853 = smul.addr %s24, 4
          %s2854 = smul.addr %s2853, 128
          %s2855 = scalar_lea.hbm %s10, %s2854
          %s2856 = sshll.u32 %s2846, 4
          %s2857 = int_to_ptr.vmem [resolvable:$true] %s2856
          %2862 = dma.vmem_to_hbm [thread:$0]  %s2857, 512, %s2855, %s2843, 256, 256, 16
        $region64: #{tpu_custom_call.1} parent=59 // pred_fallthru
          _
      $region60: #{tpu_custom_call.1} parent=5 // pred_fallthru
        _
      %p2863 = scmp.le.s32.totalorder 2, %s19
      // Predicated region
      $region65: #{tpu_custom_call.1} parent=5 // pred_check
        %p2864 = pneg %p2863
      $region66: #{tpu_custom_call.1} parent=5 // pred_check_branch
        %2866 = sbr.rel (%p2864) target = $region68
      $region67: #{tpu_custom_call.1} parent=5 // pred_region
        %s2867 = ssub.s32 %s19, 2
        // Predicated region
        $region69: #{tpu_custom_call.1} parent=67 // pred_check
          %p2868 = pneg %p263
        $region70: #{tpu_custom_call.1} parent=67 // pred_check_branch
          %2870 = sbr.rel (%p2868) target = $region72
        $region71: #{tpu_custom_call.1} parent=67 // pred_region
          %s2871 = sand.u32 %s248, 1
          %s2872 = scalar_lea.sflag [#allocation3], %s2871
          %s2873 = sand.u32 %s248, 1
          %s2874 = smul.addr %s2873, 32
          %s2875 = scalar_lea.vmem [#allocation2], %s2874
          %2876 = dma.done %s2872, 512
        $region72: #{tpu_custom_call.1} parent=67 // pred_fallthru
          _
      $region68: #{tpu_custom_call.1} parent=5 // pred_fallthru
        _
    $region6: #{tpu_custom_call.1} parent=1 // loop_footer
      %s23 = sadd.s32 1, %s19
    $region7: #{tpu_custom_call.1} parent=1 // loop_footer_branch
      %18 = sbr.rel target = $region3
    $region8: #{tpu_custom_call.1} parent=1 // loop_exit
      _
    %2877 = vsyncpa [#allocation3], 1
    %s2878 = scalar_lea.sflag [#allocation3], 1
    %2879 = vsyncpa %s2878, 1

</llo_original>
